<compile_context>
chip_gen: v6e
topology: v6e:2x2x1
jax: 0.10.0
libtpu: 0.0.40
codegen_flags: <defaults>
</compile_context>

<pallas_src>
import functools

import jax
import jax.numpy as jnp
from jax.experimental import pallas as pl
from jax.experimental.pallas import tpu as pltpu

EPS = 1e-5
_MXU_DTYPE = jnp.bfloat16        # MXU operand dtype (accumulation stays f32)
_ACT_DTYPE = jnp.bfloat16        # inter-stage activation dtype in HBM


# --------------------------------------------------------------------------------------
# generation-aware VMEM budget + row-tile selection
# --------------------------------------------------------------------------------------
def _tpu_vmem_capacity():
    try:
        return pltpu.get_tpu_info().vmem_capacity_bytes
    except Exception:
        return 64 * 1024 * 1024


def _vmem_limit_bytes():
    cap = _tpu_vmem_capacity()
    if cap >= 128 * 1024 * 1024:                       # v5e / v6e: 128 MiB physical
        return 96 * 1024 * 1024
    # v7x-class (64 MiB physical): cap well below physical to leave compiler headroom
    return max(32 * 1024 * 1024, min(48 * 1024 * 1024, (cap * 3) // 4))


def _per_row_bytes(W, Cin, P, Cout):
    """Conservative per-tile-row VMEM bytes for the widest of the four stages."""
    f32, b16 = 4, 2
    conv1 = W * (2 * Cin * f32 + Cin * b16 + P * f32 + 2 * P * b16)
    conv2 = W * (2 * P * b16          # double-buffered bf16 input tile
                 + P * f32            # f32 BN+ReLU temp
                 + P * b16            # bf16 'a'
                 + 2 * P * b16        # left/right shifted copies
                 + 3 * P * b16        # dx-fused slab
                 + 9 * P * b16        # 9-tap slab
                 + P * f32            # f32 matmul result (Co == P)
                 + 2 * P * b16)       # double-buffered bf16 output tile
    conv3 = W * (2 * P * b16 + P * f32 + P * b16 + Cout * f32 + 2 * Cout * b16)
    resid = W * (2 * Cout * b16 + 2 * Cout * f32 + Cout * f32 + 2 * Cout * f32)
    return max(conv1, conv2, conv3, resid)


def _choose_tile_rows(H, W, Cin, P, Cout):
    """Largest divisor of H whose per-step working set fits the VMEM budget."""
    weight_bytes = 2 * (Cin * P + 9 * P * P + P * Cout) * 2     # bf16, double-buffered
    budget = (_vmem_limit_bytes() * 3) // 5 - weight_bytes      # leave headroom
    per_row = _per_row_bytes(W, Cin, P, Cout)
    fit = max(1, budget // per_row)
    cap = min(H, int(fit), 64)
    if H >= 16:
        cap = min(cap, max(1, H // 2))       # ensure >= 2 h-tiles for pipeline depth
    for th in range(int(cap), 0, -1):
        if H % th == 0:
            return th
    return 1


def _compiler_params(dim_semantics):
    return pltpu.CompilerParams(dimension_semantics=dim_semantics,
                                vmem_limit_bytes=_vmem_limit_bytes())


# --------------------------------------------------------------------------------------
# kernels
# --------------------------------------------------------------------------------------
def _conv1x1_kernel(*refs, apply_act):
    """1x1 conv (channel matmul) + per-batch BN partial stats accumulated over h-tiles.

    If apply_act, first applies the previous stage's BN as a fused affine + ReLU (f32).
    """
    if apply_act:
        scale_ref, shift_ref, x_ref, w_ref, y_ref, stats_ref = refs
    else:
        x_ref, w_ref, y_ref, stats_ref = refs
        scale_ref = shift_ref = None

    t = pl.program_id(1)
    _, TH, W, Ci = x_ref.shape
    Co = w_ref.shape[1]

    v = x_ref[0].reshape(TH * W, Ci)
    if apply_act:
        v = jnp.maximum(v.astype(jnp.float32) * scale_ref[...] + shift_ref[...], 0.0)

    y = jnp.dot(v.astype(_MXU_DTYPE), w_ref[...],
                preferred_element_type=jnp.float32)               # (TH*W, Co) f32 acc

    s = jnp.sum(y, axis=0, keepdims=True)
    ss = jnp.sum(y * y, axis=0, keepdims=True)
    part = jnp.concatenate([s, ss], axis=0)                       # (2, Co)

    @pl.when(t == 0)
    def _init():
        stats_ref[0] = part

    @pl.when(t > 0)
    def _accum():
        stats_ref[0] = stats_ref[0] + part

    y_ref[0] = y.reshape(TH, W, Co).astype(y_ref.dtype)           # bf16 store to HBM


def _conv3x3_kernel(scale_ref, shift_ref, x_ref, top_ref, bot_ref, w_ref,
                    y_ref, stats_ref):
    """BN1 affine + ReLU, 3x3 conv (stride 1, pad 1) as one K=9P matmul, BN2 stats.

    The +/-1-row halo comes from the neighbor-row inputs; it is zeroed (image padding)
    at the top of the first tile and the bottom of the last tile.
    """
    t = pl.program_id(1)
    nt = pl.num_programs(1)
    _, TH, W, P = x_ref.shape
    Co = w_ref.shape[1]

    def bn_relu(v):                                               # -> f32
        return jnp.maximum(v.astype(jnp.float32) * scale_ref[...] + shift_ref[...], 0.0)

    body = bn_relu(x_ref[0])                                      # (TH, W, P)
    top = jnp.where(t > 0, bn_relu(top_ref[0]), 0.0)              # (1, W, P)
    bot = jnp.where(t < nt - 1, bn_relu(bot_ref[0]), 0.0)         # (1, W, P)

    a = jnp.concatenate([top, body, bot], axis=0).astype(_MXU_DTYPE)   # (TH+2, W, P)

    # dx taps: concat [col w-1 | col w | col w+1] along channels -> width 3P.
    # TODO(synk): a pltpu.roll on the flattened (rows*W, P) slab + column mask would
    #             move this shuffle work onto the XLU slot (v5e vst relief).
    zcol = jnp.zeros((TH + 2, 1, P), _MXU_DTYPE)
    left = jnp.concatenate([zcol, a[:, :W - 1, :]], axis=1)       # input column w-1
    right = jnp.concatenate([a[:, 1:, :], zcol], axis=1)          # input column w+1
    cat = jnp.concatenate([left, a, right], axis=-1)              # (TH+2, W, 3P)

    # dy taps: stack the three row-shifted slabs along channels -> one K = 9P matmul.
    slab = jnp.concatenate([cat[0:TH], cat[1:TH + 1], cat[2:TH + 2]], axis=-1)
    y = jnp.dot(slab.reshape(TH * W, 9 * P), w_ref[...],
                preferred_element_type=jnp.float32)               # (TH*W, Co) f32 acc

    s = jnp.sum(y, axis=0, keepdims=True)
    ss = jnp.sum(y * y, axis=0, keepdims=True)
    part = jnp.concatenate([s, ss], axis=0)                       # (2, Co)

    @pl.when(t == 0)
    def _init():
        stats_ref[0] = part

    @pl.when(t > 0)
    def _accum():
        stats_ref[0] = stats_ref[0] + part

    y_ref[0] = y.reshape(TH, W, Co).astype(y_ref.dtype)           # bf16 store to HBM


def _bn_residual_kernel(scale_ref, shift_ref, y_ref, x_ref, out_ref):
    """Final BN affine + identity residual add + ReLU (BN math in f32)."""
    y = y_ref[0].astype(jnp.float32)                              # bf16 -> f32
    out_ref[0] = jnp.maximum(y * scale_ref[...] + shift_ref[...] + x_ref[0], 0.0)


# --------------------------------------------------------------------------------------
# pallas_call wrappers: grid = (N, H // TH)
# --------------------------------------------------------------------------------------
def _conv1x1_stage(x, w, TH, scale=None, shift=None):
    N, H, W, Ci = x.shape
    Co = w.shape[1]
    HT = H // TH
    apply_act = scale is not None

    in_specs, args = [], []
    if apply_act:
        in_specs += [pl.BlockSpec((1, Ci), lambda n, t: (0, 0)),
                     pl.BlockSpec((1, Ci), lambda n, t: (0, 0))]
        args += [scale, shift]
    in_specs += [pl.BlockSpec((1, TH, W, Ci), lambda n, t: (n, t, 0, 0)),
                 pl.BlockSpec((Ci, Co), lambda n, t: (0, 0))]
    args += [x, w]

    y, stats = pl.pallas_call(
        functools.partial(_conv1x1_kernel, apply_act=apply_act),
        out_shape=(jax.ShapeDtypeStruct((N, H, W, Co), _ACT_DTYPE),
                   jax.ShapeDtypeStruct((N, 2, Co), jnp.float32)),
        grid=(N, HT),
        in_specs=in_specs,
        out_specs=(pl.BlockSpec((1, TH, W, Co), lambda n, t: (n, t, 0, 0)),
                   pl.BlockSpec((1, 2, Co), lambda n, t: (n, 0, 0))),   # stats accumulator
        compiler_params=_compiler_params(("parallel", "arbitrary")),
        cost_estimate=pl.CostEstimate(
            flops=2 * N * H * W * Ci * Co,
            transcendentals=0,
            bytes_accessed=N * H * W * (Ci * x.dtype.itemsize + Co * 2)
                           + Ci * Co * 2 + N * 2 * Co * 4),
    )(*args)
    return y, stats


def _conv3x3_stage(x, w, scale, shift, TH):
    N, H, W, P = x.shape
    Co = w.shape[1]
    HT = H // TH

    top_map = lambda n, t: (n, jnp.maximum(t * TH - 1, 0), 0, 0)       # row above tile
    bot_map = lambda n, t: (n, jnp.minimum((t + 1) * TH, H - 1), 0, 0)  # row below tile

    y, stats = pl.pallas_call(
        _conv3x3_kernel,
        out_shape=(jax.ShapeDtypeStruct((N, H, W, Co), _ACT_DTYPE),
                   jax.ShapeDtypeStruct((N, 2, Co), jnp.float32)),
        grid=(N, HT),
        in_specs=[pl.BlockSpec((1, P), lambda n, t: (0, 0)),
                  pl.BlockSpec((1, P), lambda n, t: (0, 0)),
                  pl.BlockSpec((1, TH, W, P), lambda n, t: (n, t, 0, 0)),
                  pl.BlockSpec((1, 1, W, P), top_map),
                  pl.BlockSpec((1, 1, W, P), bot_map),
                  pl.BlockSpec((9 * P, Co), lambda n, t: (0, 0))],
        out_specs=(pl.BlockSpec((1, TH, W, Co), lambda n, t: (n, t, 0, 0)),
                   pl.BlockSpec((1, 2, Co), lambda n, t: (n, 0, 0))),
        compiler_params=_compiler_params(("parallel", "arbitrary")),
        cost_estimate=pl.CostEstimate(
            flops=2 * N * H * W * 9 * P * Co,
            transcendentals=0,
            bytes_accessed=N * H * W * (P + Co) * 2 + 9 * P * Co * 2 + N * 2 * Co * 4),
    )(scale, shift, x, x, x, w)
    return y, stats


def _bn_residual_stage(y, x, scale, shift, TH):
    N, H, W, C = y.shape
    HT = H // TH
    return pl.pallas_call(
        _bn_residual_kernel,
        out_shape=jax.ShapeDtypeStruct((N, H, W, C), jnp.float32),
        grid=(N, HT),
        in_specs=[pl.BlockSpec((1, C), lambda n, t: (0, 0)),
                  pl.BlockSpec((1, C), lambda n, t: (0, 0)),
                  pl.BlockSpec((1, TH, W, C), lambda n, t: (n, t, 0, 0)),
                  pl.BlockSpec((1, TH, W, C), lambda n, t: (n, t, 0, 0))],
        out_specs=pl.BlockSpec((1, TH, W, C), lambda n, t: (n, t, 0, 0)),
        compiler_params=_compiler_params(("parallel", "parallel")),
        cost_estimate=pl.CostEstimate(
            flops=3 * N * H * W * C,
            transcendentals=0,
            bytes_accessed=N * H * W * C * (2 + 4 + 4)),
    )(scale, shift, y, x)


# --------------------------------------------------------------------------------------
# full Bottleneck forward
# --------------------------------------------------------------------------------------
def bottleneck_forward(x_nchw, params):
    """params = (w1, g1, b1, w2, g2, b2, w3, g3, b3) in PyTorch shapes."""
    w1, g1, b1, w2, g2, b2, w3, g3, b3 = params
    N, Cin, H, W = x_nchw.shape
    P = w1.shape[0]                 # torch conv1 weight: (planes, inplanes, 1, 1)
    Cout = w3.shape[0]              # = 4 * planes
    assert Cout == Cin, "identity residual requires inplanes == planes * 4"

    TH = _choose_tile_rows(H, W, Cin, P, Cout)

    # NHWC (lane-friendly) inside the kernels.
    x = jnp.transpose(x_nchw, (0, 2, 3, 1)).astype(jnp.float32)

    # weight re-layouts (PyTorch OIHW -> matmul-friendly), bf16 MXU operands
    w1k = jnp.transpose(w1[:, :, 0, 0], (1, 0)).astype(_MXU_DTYPE)            # (Cin, P)
    w2k = (jnp.transpose(w2, (2, 3, 1, 0))                                    # (dy, dx, ci, co)
           .reshape(9 * P, P).astype(_MXU_DTYPE))                             # (9P, P)
    w3k = jnp.transpose(w3[:, :, 0, 0], (1, 0)).astype(_MXU_DTYPE)            # (P, 4P)

    count = N * H * W

    def finalize_bn(stats, gamma, beta):
        tot = jnp.sum(stats, axis=0)                         # (2, C): [sum, sum_sq]
        mean = tot[0] / count
        var = tot[1] / count - mean * mean                   # biased variance (training BN)
        scale = gamma * jax.lax.rsqrt(var + EPS)
        shift = beta - mean * scale
        return (scale.reshape(1, -1).astype(jnp.float32),
                shift.reshape(1, -1).astype(jnp.float32))

    # stage 1: conv1 (1x1) + bn1 partial stats
    y1, s1 = _conv1x1_stage(x, w1k, TH)
    sc1, sh1 = finalize_bn(s1, g1, b1)
    # stage 2: bn1+relu, conv2 (3x3), bn2 partial stats
    y2, s2 = _conv3x3_stage(y1, w2k, sc1, sh1, TH)
    sc2, sh2 = finalize_bn(s2, g2, b2)
    # stage 3: bn2+relu, conv3 (1x1), bn3 partial stats
    y3, s3 = _conv1x1_stage(y2, w3k, TH, scale=sc2, shift=sh2)
    sc3, sh3 = finalize_bn(s3, g3, b3)
    # stage 4: bn3 + identity residual + relu
    out = _bn_residual_stage(y3, x, sc3, sh3, TH)

    return jnp.transpose(out, (0, 3, 1, 2))                  # back to NCHW


# --------------------------------------------------------------------------------------
# pure-JAX reference (mirrors the PyTorch forward, f32 everywhere)
# --------------------------------------------------------------------------------------
def _ref_forward(x, params):
    w1, g1, b1, w2, g2, b2, w3, g3, b3 = params

    def conv(x, w, pad):
        return jax.lax.conv_general_dilated(
            x, w, (1, 1), [(pad, pad), (pad, pad)],
            dimension_numbers=('NCHW', 'OIHW', 'NCHW'))

    def bn(x, g, b):
        mean = x.mean(axis=(0, 2, 3), keepdims=True)
        var = ((x - mean) ** 2).mean(axis=(0, 2, 3), keepdims=True)
        return (x - mean) * jax.lax.rsqrt(var + EPS) * g.reshape(1, -1, 1, 1) \
            + b.reshape(1, -1, 1, 1)

    out = jax.nn.relu(bn(conv(x, w1, 0), g1, b1))
    out = jax.nn.relu(bn(conv(out, w2, 1), g2, b2))
    out = bn(conv(out, w3, 0), g3, b3)
    return jax.nn.relu(out + x)


if __name__ == "__main__":
    # smallest "real" bottleneck-ish config: inplanes = 4*planes, lane-dense Cout = 128
    N, planes, H, W = 2, 32, 16, 16
    inplanes = planes * 4

    key = jax.random.PRNGKey(0)
    ks = jax.random.split(key, 10)
    w1 = jax.random.normal(ks[0], (planes, inplanes, 1, 1), jnp.float32) * 0.1
    w2 = jax.random.normal(ks[1], (planes, planes, 3, 3), jnp.float32) * 0.1
    w3 = jax.random.normal(ks[2], (planes * 4, planes, 1, 1), jnp.float32) * 0.1
    g1 = jax.random.uniform(ks[3], (planes,), jnp.float32, 0.5, 1.5)
    b1 = jax.random.normal(ks[4], (planes,), jnp.float32) * 0.05
    g2 = jax.random.uniform(ks[5], (planes,), jnp.float32, 0.5, 1.5)
    b2 = jax.random.normal(ks[6], (planes,), jnp.float32) * 0.05
    g3 = jax.random.uniform(ks[7], (planes * 4,), jnp.float32, 0.5, 1.5)
    b3 = jax.random.normal(ks[8], (planes * 4,), jnp.float32) * 0.05
    params = (w1, g1, b1, w2, g2, b2, w3, g3, b3)

    x = jax.random.normal(ks[9], (N, inplanes, H, W), jnp.float32)

    fwd = jax.jit(bottleneck_forward)
    out = jax.block_until_ready(fwd(x, params))
    ref = jax.block_until_ready(_ref_forward(x, params))

    assert out.shape == ref.shape == (N, inplanes, H, W)
    rel_l2 = jnp.linalg.norm(out - ref) / jnp.linalg.norm(ref)
    max_abs = jnp.max(jnp.abs(out - ref))
    # bf16 MXU operands + bf16 inter-stage activation storage (f32 accumulation / BN math)
    assert rel_l2 < 2.5e-2, f"relative L2 error too large: {rel_l2}"
    assert jnp.allclose(out, ref, atol=7e-2, rtol=7e-2), \
        f"mismatch vs JAX reference, max|diff|={max_abs}, rel_l2={rel_l2}"

    print("KERNEL_OK")
</pallas_src>

<mosaic_0001>
module attributes {stable_mosaic.version = 11 : i64} {
  func.func @_conv1x1_kernel(%arg0: i32, %arg1: i32, %arg2: memref<1x8x16x128xf32, #tpu.memory_space<vmem>>, %arg3: memref<128x32xbf16, #tpu.memory_space<vmem>>, %arg4: memref<1x8x16x32xbf16, #tpu.memory_space<vmem>>, %arg5: memref<1x2x32xf32, #tpu.memory_space<vmem>>) attributes {dimension_semantics = [#tpu.dimension_semantics<parallel>, #tpu.dimension_semantics<arbitrary>], iteration_bounds = array<i64: 2, 2>, scalar_prefetch = 0 : i64, scratch_operands = 0 : i64, tpu.core_type = #tpu.core_type<tc>, window_params = [{transform_indices = @transform_0, window_bounds = array<i64: 1, 8, 16, 128>}, {pipeline_mode = #tpu.pipeline_mode<synchronous>, transform_indices = @transform_1, window_bounds = array<i64: 128, 32>}, {transform_indices = @transform_2, window_bounds = array<i64: 1, 8, 16, 32>}, {transform_indices = @transform_3, window_bounds = array<i64: 1, 2, 32>}]} {
    %c0 = arith.constant 0 : index
    %c0_0 = arith.constant 0 : index
    %c0_1 = arith.constant 0 : index
    %c0_2 = arith.constant 0 : index
    %0 = vector.load %arg2[%c0, %c0_0, %c0_1, %c0_2] : memref<1x8x16x128xf32, #tpu.memory_space<vmem>>, vector<1x8x16x128xf32>
    %1 = vector.shape_cast %0 : vector<1x8x16x128xf32> to vector<8x16x128xf32>
    %2 = vector.shape_cast %1 : vector<8x16x128xf32> to vector<128x128xf32>
    %3 = arith.truncf %2 : vector<128x128xf32> to vector<128x128xbf16>
    %c0_3 = arith.constant 0 : index
    %c0_4 = arith.constant 0 : index
    %4 = vector.load %arg3[%c0_3, %c0_4] : memref<128x32xbf16, #tpu.memory_space<vmem>>, vector<128x32xbf16>
    %cst = arith.constant dense<0.000000e+00> : vector<128x32xf32>
    %5 = tpu.matmul %3, %4, %cst {dimension_numbers = #tpu.dot_dimension_numbers<[1], [0], [0], [1], [0, 0, 1, 1], [], []>} : vector<128x128xbf16>, vector<128x32xbf16>, vector<128x32xf32> -> vector<128x32xf32>
    %cst_5 = arith.constant dense<0.000000e+00> : vector<32xf32>
    %6 = vector.multi_reduction <add>, %5, %cst_5 [0] : vector<128x32xf32> to vector<32xf32>
    %7 = vector.shape_cast %6 : vector<32xf32> to vector<1x32xf32>
    %8 = arith.mulf %5, %5 : vector<128x32xf32>
    %cst_6 = arith.constant dense<0.000000e+00> : vector<32xf32>
    %9 = vector.multi_reduction <add>, %8, %cst_6 [0] : vector<128x32xf32> to vector<32xf32>
    %10 = vector.shape_cast %9 : vector<32xf32> to vector<1x32xf32>
    %11 = tpu.concatenate %7, %10 in 0 : vector<1x32xf32>, vector<1x32xf32> -> vector<2x32xf32>
    %c0_i32 = arith.constant 0 : i32
    %12 = arith.cmpi eq, %arg1, %c0_i32 : i32
    %13 = arith.extui %12 : i1 to i32
    %c0_i32_7 = arith.constant 0 : i32
    %14 = arith.cmpi ne, %13, %c0_i32_7 : i32
    scf.if %14 {
      %c0_14 = arith.constant 0 : index
      %c0_15 = arith.constant 0 : index
      %c0_16 = arith.constant 0 : index
      %23 = vector.load %arg5[%c0_14, %c0_15, %c0_16] : memref<1x2x32xf32, #tpu.memory_space<vmem>>, vector<1x2x32xf32>
      %24 = vector.shape_cast %23 : vector<1x2x32xf32> to vector<2x32xf32>
      %25 = vector.shape_cast %11 : vector<2x32xf32> to vector<1x2x32xf32>
      tpu.vector_store %arg5[%c0_14, %c0_15, %c0_16], %25 {strides = array<i32>} : memref<1x2x32xf32, #tpu.memory_space<vmem>>, vector<1x2x32xf32>,
    } else {
    }
    %c0_i32_8 = arith.constant 0 : i32
    %15 = arith.cmpi sgt, %arg1, %c0_i32_8 : i32
    %16 = arith.extui %15 : i1 to i32
    %c0_i32_9 = arith.constant 0 : i32
    %17 = arith.cmpi ne, %16, %c0_i32_9 : i32
    scf.if %17 {
      %c0_14 = arith.constant 0 : index
      %c0_15 = arith.constant 0 : index
      %c0_16 = arith.constant 0 : index
      %23 = vector.load %arg5[%c0_14, %c0_15, %c0_16] : memref<1x2x32xf32, #tpu.memory_space<vmem>>, vector<1x2x32xf32>
      %24 = vector.shape_cast %23 : vector<1x2x32xf32> to vector<2x32xf32>
      %25 = arith.addf %24, %11 : vector<2x32xf32>
      %c0_17 = arith.constant 0 : index
      %c0_18 = arith.constant 0 : index
      %c0_19 = arith.constant 0 : index
      %26 = vector.load %arg5[%c0_17, %c0_18, %c0_19] : memref<1x2x32xf32, #tpu.memory_space<vmem>>, vector<1x2x32xf32>
      %27 = vector.shape_cast %26 : vector<1x2x32xf32> to vector<2x32xf32>
      %28 = vector.shape_cast %25 : vector<2x32xf32> to vector<1x2x32xf32>
      tpu.vector_store %arg5[%c0_17, %c0_18, %c0_19], %28 {strides = array<i32>} : memref<1x2x32xf32, #tpu.memory_space<vmem>>, vector<1x2x32xf32>,
    } else {
    }
    %18 = vector.shape_cast %5 : vector<128x32xf32> to vector<8x16x32xf32>
    %19 = arith.truncf %18 : vector<8x16x32xf32> to vector<8x16x32xbf16>
    %c0_10 = arith.constant 0 : index
    %c0_11 = arith.constant 0 : index
    %c0_12 = arith.constant 0 : index
    %c0_13 = arith.constant 0 : index
    %20 = vector.load %arg4[%c0_10, %c0_11, %c0_12, %c0_13] : memref<1x8x16x32xbf16, #tpu.memory_space<vmem>>, vector<1x8x16x32xbf16>
    %21 = vector.shape_cast %20 : vector<1x8x16x32xbf16> to vector<8x16x32xbf16>
    %22 = vector.shape_cast %19 : vector<8x16x32xbf16> to vector<1x8x16x32xbf16>
    tpu.vector_store %arg4[%c0_10, %c0_11, %c0_12, %c0_13], %22 {strides = array<i32>} : memref<1x8x16x32xbf16, #tpu.memory_space<vmem>>, vector<1x8x16x32xbf16>,
    return
  }
  func.func @transform_0(%arg0: i32, %arg1: i32) -> (i32, i32, i32, i32) {
    %c0_i32 = arith.constant 0 : i32
    %c0_i32_0 = arith.constant 0 : i32
    %c0_i32_1 = arith.constant 0 : i32
    return %arg0, %arg1, %c0_i32, %c0_i32_0 : i32, i32, i32, i32
  }
  func.func @transform_1(%arg0: i32, %arg1: i32) -> (i32, i32) {
    %c0_i32 = arith.constant 0 : i32
    %c0_i32_0 = arith.constant 0 : i32
    %c0_i32_1 = arith.constant 0 : i32
    return %c0_i32, %c0_i32_0 : i32, i32
  }
  func.func @transform_2(%arg0: i32, %arg1: i32) -> (i32, i32, i32, i32) {
    %c0_i32 = arith.constant 0 : i32
    %c0_i32_0 = arith.constant 0 : i32
    %c0_i32_1 = arith.constant 0 : i32
    return %arg0, %arg1, %c0_i32, %c0_i32_0 : i32, i32, i32, i32
  }
  func.func @transform_3(%arg0: i32, %arg1: i32) -> (i32, i32, i32) {
    %c0_i32 = arith.constant 0 : i32
    %c0_i32_0 = arith.constant 0 : i32
    %c0_i32_1 = arith.constant 0 : i32
    return %arg0, %c0_i32, %c0_i32_0 : i32, i32, i32
  }
}

module attributes {stable_mosaic.version = 11 : i64} {
  func.func @_conv3x3_kernel(%arg0: i32, %arg1: i32, %arg2: memref<1x32xf32, #tpu.memory_space<vmem>>, %arg3: memref<1x32xf32, #tpu.memory_space<vmem>>, %arg4: memref<1x8x16x32xbf16, #tpu.memory_space<vmem>>, %arg5: memref<1x1x16x32xbf16, #tpu.memory_space<vmem>>, %arg6: memref<1x1x16x32xbf16, #tpu.memory_space<vmem>>, %arg7: memref<288x32xbf16, #tpu.memory_space<vmem>>, %arg8: memref<1x8x16x32xbf16, #tpu.memory_space<vmem>>, %arg9: memref<1x2x32xf32, #tpu.memory_space<vmem>>) attributes {dimension_semantics = [#tpu.dimension_semantics<parallel>, #tpu.dimension_semantics<arbitrary>], iteration_bounds = array<i64: 2, 2>, scalar_prefetch = 0 : i64, scratch_operands = 0 : i64, tpu.core_type = #tpu.core_type<tc>, window_params = [{pipeline_mode = #tpu.pipeline_mode<synchronous>, transform_indices = @transform_0, window_bounds = array<i64: 1, 32>}, {pipeline_mode = #tpu.pipeline_mode<synchronous>, transform_indices = @transform_1, window_bounds = array<i64: 1, 32>}, {transform_indices = @transform_2, window_bounds = array<i64: 1, 8, 16, 32>}, {transform_indices = @transform_3, window_bounds = array<i64: 1, 1, 16, 32>}, {transform_indices = @transform_4, window_bounds = array<i64: 1, 1, 16, 32>}, {pipeline_mode = #tpu.pipeline_mode<synchronous>, transform_indices = @transform_5, window_bounds = array<i64: 288, 32>}, {transform_indices = @transform_6, window_bounds = array<i64: 1, 8, 16, 32>}, {transform_indices = @transform_7, window_bounds = array<i64: 1, 2, 32>}]} {
    %c0 = arith.constant 0 : index
    %c0_0 = arith.constant 0 : index
    %c0_1 = arith.constant 0 : index
    %c0_2 = arith.constant 0 : index
    %0 = vector.load %arg4[%c0, %c0_0, %c0_1, %c0_2] : memref<1x8x16x32xbf16, #tpu.memory_space<vmem>>, vector<1x8x16x32xbf16>
    %1 = vector.shape_cast %0 : vector<1x8x16x32xbf16> to vector<8x16x32xbf16>
    %2 = arith.extf %1 : vector<8x16x32xbf16> to vector<8x16x32xf32>
    %c0_3 = arith.constant 0 : index
    %c0_4 = arith.constant 0 : index
    %3 = vector.load %arg2[%c0_3, %c0_4] : memref<1x32xf32, #tpu.memory_space<vmem>>, vector<1x32xf32>
    %4 = vector.shape_cast %3 : vector<1x32xf32> to vector<1x1x32xf32>
    %5 = vector.broadcast %4 : vector<1x1x32xf32> to vector<8x16x32xf32>
    %6 = arith.mulf %2, %5 : vector<8x16x32xf32>
    %c0_5 = arith.constant 0 : index
    %c0_6 = arith.constant 0 : index
    %7 = vector.load %arg3[%c0_5, %c0_6] : memref<1x32xf32, #tpu.memory_space<vmem>>, vector<1x32xf32>
    %8 = vector.shape_cast %7 : vector<1x32xf32> to vector<1x1x32xf32>
    %9 = vector.broadcast %8 : vector<1x1x32xf32> to vector<8x16x32xf32>
    %10 = arith.addf %6, %9 : vector<8x16x32xf32>
    %cst = arith.constant 0.000000e+00 : f32
    %11 = vector.broadcast %cst : f32 to vector<8x16x32xf32>
    %12 = arith.maximumf %10, %11 : vector<8x16x32xf32>
    %c0_i32 = arith.constant 0 : i32
    %13 = arith.cmpi sgt, %arg1, %c0_i32 : i32
    %c0_7 = arith.constant 0 : index
    %c0_8 = arith.constant 0 : index
    %c0_9 = arith.constant 0 : index
    %c0_10 = arith.constant 0 : index
    %14 = vector.load %arg5[%c0_7, %c0_8, %c0_9, %c0_10] : memref<1x1x16x32xbf16, #tpu.memory_space<vmem>>, vector<1x1x16x32xbf16>
    %15 = vector.shape_cast %14 : vector<1x1x16x32xbf16> to vector<1x16x32xbf16>
    %16 = arith.extf %15 : vector<1x16x32xbf16> to vector<1x16x32xf32>
    %c0_11 = arith.constant 0 : index
    %c0_12 = arith.constant 0 : index
    %17 = vector.load %arg2[%c0_11, %c0_12] : memref<1x32xf32, #tpu.memory_space<vmem>>, vector<1x32xf32>
    %18 = vector.shape_cast %17 : vector<1x32xf32> to vector<1x1x32xf32>
    %19 = vector.broadcast %18 : vector<1x1x32xf32> to vector<1x16x32xf32>
    %20 = arith.mulf %16, %19 : vector<1x16x32xf32>
    %c0_13 = arith.constant 0 : index
    %c0_14 = arith.constant 0 : index
    %21 = vector.load %arg3[%c0_13, %c0_14] : memref<1x32xf32, #tpu.memory_space<vmem>>, vector<1x32xf32>
    %22 = vector.shape_cast %21 : vector<1x32xf32> to vector<1x1x32xf32>
    %23 = vector.broadcast %22 : vector<1x1x32xf32> to vector<1x16x32xf32>
    %24 = arith.addf %20, %23 : vector<1x16x32xf32>
    %cst_15 = arith.constant 0.000000e+00 : f32
    %25 = vector.broadcast %cst_15 : f32 to vector<1x16x32xf32>
    %26 = arith.maximumf %24, %25 : vector<1x16x32xf32>
    %cst_16 = arith.constant 0.000000e+00 : f32
    %27 = vector.broadcast %cst_16 : f32 to vector<1x16x32xf32>
    %28 = arith.select %13, %26, %27 : vector<1x16x32xf32>
    %c1_i32 = arith.constant 1 : i32
    %29 = arith.cmpi slt, %arg1, %c1_i32 : i32
    %c0_17 = arith.constant 0 : index
    %c0_18 = arith.constant 0 : index
    %c0_19 = arith.constant 0 : index
    %c0_20 = arith.constant 0 : index
    %30 = vector.load %arg6[%c0_17, %c0_18, %c0_19, %c0_20] : memref<1x1x16x32xbf16, #tpu.memory_space<vmem>>, vector<1x1x16x32xbf16>
    %31 = vector.shape_cast %30 : vector<1x1x16x32xbf16> to vector<1x16x32xbf16>
    %32 = arith.extf %31 : vector<1x16x32xbf16> to vector<1x16x32xf32>
    %c0_21 = arith.constant 0 : index
    %c0_22 = arith.constant 0 : index
    %33 = vector.load %arg2[%c0_21, %c0_22] : memref<1x32xf32, #tpu.memory_space<vmem>>, vector<1x32xf32>
    %34 = vector.shape_cast %33 : vector<1x32xf32> to vector<1x1x32xf32>
    %35 = vector.broadcast %34 : vector<1x1x32xf32> to vector<1x16x32xf32>
    %36 = arith.mulf %32, %35 : vector<1x16x32xf32>
    %c0_23 = arith.constant 0 : index
    %c0_24 = arith.constant 0 : index
    %37 = vector.load %arg3[%c0_23, %c0_24] : memref<1x32xf32, #tpu.memory_space<vmem>>, vector<1x32xf32>
    %38 = vector.shape_cast %37 : vector<1x32xf32> to vector<1x1x32xf32>
    %39 = vector.broadcast %38 : vector<1x1x32xf32> to vector<1x16x32xf32>
    %40 = arith.addf %36, %39 : vector<1x16x32xf32>
    %cst_25 = arith.constant 0.000000e+00 : f32
    %41 = vector.broadcast %cst_25 : f32 to vector<1x16x32xf32>
    %42 = arith.maximumf %40, %41 : vector<1x16x32xf32>
    %cst_26 = arith.constant 0.000000e+00 : f32
    %43 = vector.broadcast %cst_26 : f32 to vector<1x16x32xf32>
    %44 = arith.select %29, %42, %43 : vector<1x16x32xf32>
    %45 = tpu.concatenate %28, %12, %44 in 0 : vector<1x16x32xf32>, vector<8x16x32xf32>, vector<1x16x32xf32> -> vector<10x16x32xf32>
    %46 = arith.truncf %45 : vector<10x16x32xf32> to vector<10x16x32xbf16>
    %cst_27 = arith.constant 0.000000e+00 : bf16
    %47 = vector.broadcast %cst_27 : bf16 to vector<10x1x32xbf16>
    %48 = vector.extract_strided_slice %46 {offsets = [0, 0, 0], sizes = [10, 15, 32], strides = [1, 1, 1]} : vector<10x16x32xbf16> to vector<10x15x32xbf16>
    %49 = tpu.concatenate %47, %48 in 1 : vector<10x1x32xbf16>, vector<10x15x32xbf16> -> vector<10x16x32xbf16>
    %50 = vector.extract_strided_slice %46 {offsets = [0, 1, 0], sizes = [10, 15, 32], strides = [1, 1, 1]} : vector<10x16x32xbf16> to vector<10x15x32xbf16>
    %51 = tpu.concatenate %50, %47 in 1 : vector<10x15x32xbf16>, vector<10x1x32xbf16> -> vector<10x16x32xbf16>
    %52 = tpu.concatenate %49, %46, %51 in 2 : vector<10x16x32xbf16>, vector<10x16x32xbf16>, vector<10x16x32xbf16> -> vector<10x16x96xbf16>
    %53 = vector.extract_strided_slice %52 {offsets = [0, 0, 0], sizes = [8, 16, 96], strides = [1, 1, 1]} : vector<10x16x96xbf16> to vector<8x16x96xbf16>
    %54 = vector.extract_strided_slice %52 {offsets = [1, 0, 0], sizes = [8, 16, 96], strides = [1, 1, 1]} : vector<10x16x96xbf16> to vector<8x16x96xbf16>
    %55 = vector.extract_strided_slice %52 {offsets = [2, 0, 0], sizes = [8, 16, 96], strides = [1, 1, 1]} : vector<10x16x96xbf16> to vector<8x16x96xbf16>
    %56 = tpu.concatenate %53, %54, %55 in 2 : vector<8x16x96xbf16>, vector<8x16x96xbf16>, vector<8x16x96xbf16> -> vector<8x16x288xbf16>
    %57 = vector.shape_cast %56 : vector<8x16x288xbf16> to vector<128x288xbf16>
    %c0_28 = arith.constant 0 : index
    %c0_29 = arith.constant 0 : index
    %58 = vector.load %arg7[%c0_28, %c0_29] : memref<288x32xbf16, #tpu.memory_space<vmem>>, vector<288x32xbf16>
    %cst_30 = arith.constant dense<0.000000e+00> : vector<128x32xf32>
    %59 = tpu.matmul %57, %58, %cst_30 {dimension_numbers = #tpu.dot_dimension_numbers<[1], [0], [0], [1], [0, 0, 1, 1], [], []>} : vector<128x288xbf16>, vector<288x32xbf16>, vector<128x32xf32> -> vector<128x32xf32>
    %cst_31 = arith.constant dense<0.000000e+00> : vector<32xf32>
    %60 = vector.multi_reduction <add>, %59, %cst_31 [0] : vector<128x32xf32> to vector<32xf32>
    %61 = vector.shape_cast %60 : vector<32xf32> to vector<1x32xf32>
    %62 = arith.mulf %59, %59 : vector<128x32xf32>
    %cst_32 = arith.constant dense<0.000000e+00> : vector<32xf32>
    %63 = vector.multi_reduction <add>, %62, %cst_32 [0] : vector<128x32xf32> to vector<32xf32>
    %64 = vector.shape_cast %63 : vector<32xf32> to vector<1x32xf32>
    %65 = tpu.concatenate %61, %64 in 0 : vector<1x32xf32>, vector<1x32xf32> -> vector<2x32xf32>
    %c0_i32_33 = arith.constant 0 : i32
    %66 = arith.cmpi eq, %arg1, %c0_i32_33 : i32
    %67 = arith.extui %66 : i1 to i32
    %c0_i32_34 = arith.constant 0 : i32
    %68 = arith.cmpi ne, %67, %c0_i32_34 : i32
    scf.if %68 {
      %c0_41 = arith.constant 0 : index
      %c0_42 = arith.constant 0 : index
      %c0_43 = arith.constant 0 : index
      %77 = vector.load %arg9[%c0_41, %c0_42, %c0_43] : memref<1x2x32xf32, #tpu.memory_space<vmem>>, vector<1x2x32xf32>
      %78 = vector.shape_cast %77 : vector<1x2x32xf32> to vector<2x32xf32>
      %79 = vector.shape_cast %65 : vector<2x32xf32> to vector<1x2x32xf32>
      tpu.vector_store %arg9[%c0_41, %c0_42, %c0_43], %79 {strides = array<i32>} : memref<1x2x32xf32, #tpu.memory_space<vmem>>, vector<1x2x32xf32>,
    } else {
    }
    %c0_i32_35 = arith.constant 0 : i32
    %69 = arith.cmpi sgt, %arg1, %c0_i32_35 : i32
    %70 = arith.extui %69 : i1 to i32
    %c0_i32_36 = arith.constant 0 : i32
    %71 = arith.cmpi ne, %70, %c0_i32_36 : i32
    scf.if %71 {
      %c0_41 = arith.constant 0 : index
      %c0_42 = arith.constant 0 : index
      %c0_43 = arith.constant 0 : index
      %77 = vector.load %arg9[%c0_41, %c0_42, %c0_43] : memref<1x2x32xf32, #tpu.memory_space<vmem>>, vector<1x2x32xf32>
      %78 = vector.shape_cast %77 : vector<1x2x32xf32> to vector<2x32xf32>
      %79 = arith.addf %78, %65 : vector<2x32xf32>
      %c0_44 = arith.constant 0 : index
      %c0_45 = arith.constant 0 : index
      %c0_46 = arith.constant 0 : index
      %80 = vector.load %arg9[%c0_44, %c0_45, %c0_46] : memref<1x2x32xf32, #tpu.memory_space<vmem>>, vector<1x2x32xf32>
      %81 = vector.shape_cast %80 : vector<1x2x32xf32> to vector<2x32xf32>
      %82 = vector.shape_cast %79 : vector<2x32xf32> to vector<1x2x32xf32>
      tpu.vector_store %arg9[%c0_44, %c0_45, %c0_46], %82 {strides = array<i32>} : memref<1x2x32xf32, #tpu.memory_space<vmem>>, vector<1x2x32xf32>,
    } else {
    }
    %72 = vector.shape_cast %59 : vector<128x32xf32> to vector<8x16x32xf32>
    %73 = arith.truncf %72 : vector<8x16x32xf32> to vector<8x16x32xbf16>
    %c0_37 = arith.constant 0 : index
    %c0_38 = arith.constant 0 : index
    %c0_39 = arith.constant 0 : index
    %c0_40 = arith.constant 0 : index
    %74 = vector.load %arg8[%c0_37, %c0_38, %c0_39, %c0_40] : memref<1x8x16x32xbf16, #tpu.memory_space<vmem>>, vector<1x8x16x32xbf16>
    %75 = vector.shape_cast %74 : vector<1x8x16x32xbf16> to vector<8x16x32xbf16>
    %76 = vector.shape_cast %73 : vector<8x16x32xbf16> to vector<1x8x16x32xbf16>
    tpu.vector_store %arg8[%c0_37, %c0_38, %c0_39, %c0_40], %76 {strides = array<i32>} : memref<1x8x16x32xbf16, #tpu.memory_space<vmem>>, vector<1x8x16x32xbf16>,
    return
  }
  func.func @transform_0(%arg0: i32, %arg1: i32) -> (i32, i32) {
    %c0_i32 = arith.constant 0 : i32
    %c0_i32_0 = arith.constant 0 : i32
    %c0_i32_1 = arith.constant 0 : i32
    return %c0_i32, %c0_i32_0 : i32, i32
  }
  func.func @transform_1(%arg0: i32, %arg1: i32) -> (i32, i32) {
    %c0_i32 = arith.constant 0 : i32
    %c0_i32_0 = arith.constant 0 : i32
    %c0_i32_1 = arith.constant 0 : i32
    return %c0_i32, %c0_i32_0 : i32, i32
  }
  func.func @transform_2(%arg0: i32, %arg1: i32) -> (i32, i32, i32, i32) {
    %c0_i32 = arith.constant 0 : i32
    %c0_i32_0 = arith.constant 0 : i32
    %c0_i32_1 = arith.constant 0 : i32
    return %arg0, %arg1, %c0_i32, %c0_i32_0 : i32, i32, i32, i32
  }
  func.func @transform_3(%arg0: i32, %arg1: i32) -> (i32, i32, i32, i32) {
    %c8_i32 = arith.constant 8 : i32
    %0 = arith.muli %arg1, %c8_i32 : i32
    %c1_i32 = arith.constant 1 : i32
    %1 = arith.subi %0, %c1_i32 : i32
    %c0_i32 = arith.constant 0 : i32
    %2 = arith.maxsi %1, %c0_i32 : i32
    %c0_i32_0 = arith.constant 0 : i32
    %c0_i32_1 = arith.constant 0 : i32
    %c0_i32_2 = arith.constant 0 : i32
    return %arg0, %2, %c0_i32_0, %c0_i32_1 : i32, i32, i32, i32
  }
  func.func @transform_4(%arg0: i32, %arg1: i32) -> (i32, i32, i32, i32) {
    %c1_i32 = arith.constant 1 : i32
    %0 = arith.addi %arg1, %c1_i32 : i32
    %c8_i32 = arith.constant 8 : i32
    %1 = arith.muli %0, %c8_i32 : i32
    %c15_i32 = arith.constant 15 : i32
    %2 = arith.minsi %1, %c15_i32 : i32
    %c0_i32 = arith.constant 0 : i32
    %c0_i32_0 = arith.constant 0 : i32
    %c0_i32_1 = arith.constant 0 : i32
    return %arg0, %2, %c0_i32, %c0_i32_0 : i32, i32, i32, i32
  }
  func.func @transform_5(%arg0: i32, %arg1: i32) -> (i32, i32) {
    %c0_i32 = arith.constant 0 : i32
    %c0_i32_0 = arith.constant 0 : i32
    %c0_i32_1 = arith.constant 0 : i32
    return %c0_i32, %c0_i32_0 : i32, i32
  }
  func.func @transform_6(%arg0: i32, %arg1: i32) -> (i32, i32, i32, i32) {
    %c0_i32 = arith.constant 0 : i32
    %c0_i32_0 = arith.constant 0 : i32
    %c0_i32_1 = arith.constant 0 : i32
    return %arg0, %arg1, %c0_i32, %c0_i32_0 : i32, i32, i32, i32
  }
  func.func @transform_7(%arg0: i32, %arg1: i32) -> (i32, i32, i32) {
    %c0_i32 = arith.constant 0 : i32
    %c0_i32_0 = arith.constant 0 : i32
    %c0_i32_1 = arith.constant 0 : i32
    return %arg0, %c0_i32, %c0_i32_0 : i32, i32, i32
  }
}

module attributes {stable_mosaic.version = 11 : i64} {
  func.func @_conv1x1_kernel(%arg0: i32, %arg1: i32, %arg2: memref<1x32xf32, #tpu.memory_space<vmem>>, %arg3: memref<1x32xf32, #tpu.memory_space<vmem>>, %arg4: memref<1x8x16x32xbf16, #tpu.memory_space<vmem>>, %arg5: memref<32x128xbf16, #tpu.memory_space<vmem>>, %arg6: memref<1x8x16x128xbf16, #tpu.memory_space<vmem>>, %arg7: memref<1x2x128xf32, #tpu.memory_space<vmem>>) attributes {dimension_semantics = [#tpu.dimension_semantics<parallel>, #tpu.dimension_semantics<arbitrary>], iteration_bounds = array<i64: 2, 2>, scalar_prefetch = 0 : i64, scratch_operands = 0 : i64, tpu.core_type = #tpu.core_type<tc>, window_params = [{pipeline_mode = #tpu.pipeline_mode<synchronous>, transform_indices = @transform_0, window_bounds = array<i64: 1, 32>}, {pipeline_mode = #tpu.pipeline_mode<synchronous>, transform_indices = @transform_1, window_bounds = array<i64: 1, 32>}, {transform_indices = @transform_2, window_bounds = array<i64: 1, 8, 16, 32>}, {pipeline_mode = #tpu.pipeline_mode<synchronous>, transform_indices = @transform_3, window_bounds = array<i64: 32, 128>}, {transform_indices = @transform_4, window_bounds = array<i64: 1, 8, 16, 128>}, {transform_indices = @transform_5, window_bounds = array<i64: 1, 2, 128>}]} {
    %c0 = arith.constant 0 : index
    %c0_0 = arith.constant 0 : index
    %c0_1 = arith.constant 0 : index
    %c0_2 = arith.constant 0 : index
    %0 = vector.load %arg4[%c0, %c0_0, %c0_1, %c0_2] : memref<1x8x16x32xbf16, #tpu.memory_space<vmem>>, vector<1x8x16x32xbf16>
    %1 = vector.shape_cast %0 : vector<1x8x16x32xbf16> to vector<8x16x32xbf16>
    %2 = vector.shape_cast %1 : vector<8x16x32xbf16> to vector<128x32xbf16>
    %3 = arith.extf %2 : vector<128x32xbf16> to vector<128x32xf32>
    %c0_3 = arith.constant 0 : index
    %c0_4 = arith.constant 0 : index
    %4 = vector.load %arg2[%c0_3, %c0_4] : memref<1x32xf32, #tpu.memory_space<vmem>>, vector<1x32xf32>
    %5 = vector.broadcast %4 : vector<1x32xf32> to vector<128x32xf32>
    %6 = arith.mulf %3, %5 : vector<128x32xf32>
    %c0_5 = arith.constant 0 : index
    %c0_6 = arith.constant 0 : index
    %7 = vector.load %arg3[%c0_5, %c0_6] : memref<1x32xf32, #tpu.memory_space<vmem>>, vector<1x32xf32>
    %8 = vector.broadcast %7 : vector<1x32xf32> to vector<128x32xf32>
    %9 = arith.addf %6, %8 : vector<128x32xf32>
    %cst = arith.constant 0.000000e+00 : f32
    %10 = vector.broadcast %cst : f32 to vector<128x32xf32>
    %11 = arith.maximumf %9, %10 : vector<128x32xf32>
    %12 = arith.truncf %11 : vector<128x32xf32> to vector<128x32xbf16>
    %c0_7 = arith.constant 0 : index
    %c0_8 = arith.constant 0 : index
    %13 = vector.load %arg5[%c0_7, %c0_8] : memref<32x128xbf16, #tpu.memory_space<vmem>>, vector<32x128xbf16>
    %cst_9 = arith.constant dense<0.000000e+00> : vector<128x128xf32>
    %14 = tpu.matmul %12, %13, %cst_9 {dimension_numbers = #tpu.dot_dimension_numbers<[1], [0], [0], [1], [0, 0, 1, 1], [], []>} : vector<128x32xbf16>, vector<32x128xbf16>, vector<128x128xf32> -> vector<128x128xf32>
    %cst_10 = arith.constant dense<0.000000e+00> : vector<128xf32>
    %15 = vector.multi_reduction <add>, %14, %cst_10 [0] : vector<128x128xf32> to vector<128xf32>
    %16 = vector.shape_cast %15 : vector<128xf32> to vector<1x128xf32>
    %17 = arith.mulf %14, %14 : vector<128x128xf32>
    %cst_11 = arith.constant dense<0.000000e+00> : vector<128xf32>
    %18 = vector.multi_reduction <add>, %17, %cst_11 [0] : vector<128x128xf32> to vector<128xf32>
    %19 = vector.shape_cast %18 : vector<128xf32> to vector<1x128xf32>
    %20 = tpu.concatenate %16, %19 in 0 : vector<1x128xf32>, vector<1x128xf32> -> vector<2x128xf32>
    %c0_i32 = arith.constant 0 : i32
    %21 = arith.cmpi eq, %arg1, %c0_i32 : i32
    %22 = arith.extui %21 : i1 to i32
    %c0_i32_12 = arith.constant 0 : i32
    %23 = arith.cmpi ne, %22, %c0_i32_12 : i32
    scf.if %23 {
      %c0_19 = arith.constant 0 : index
      %c0_20 = arith.constant 0 : index
      %c0_21 = arith.constant 0 : index
      %32 = vector.load %arg7[%c0_19, %c0_20, %c0_21] : memref<1x2x128xf32, #tpu.memory_space<vmem>>, vector<1x2x128xf32>
      %33 = vector.shape_cast %32 : vector<1x2x128xf32> to vector<2x128xf32>
      %34 = vector.shape_cast %20 : vector<2x128xf32> to vector<1x2x128xf32>
      tpu.vector_store %arg7[%c0_19, %c0_20, %c0_21], %34 {strides = array<i32>} : memref<1x2x128xf32, #tpu.memory_space<vmem>>, vector<1x2x128xf32>,
    } else {
    }
    %c0_i32_13 = arith.constant 0 : i32
    %24 = arith.cmpi sgt, %arg1, %c0_i32_13 : i32
    %25 = arith.extui %24 : i1 to i32
    %c0_i32_14 = arith.constant 0 : i32
    %26 = arith.cmpi ne, %25, %c0_i32_14 : i32
    scf.if %26 {
      %c0_19 = arith.constant 0 : index
      %c0_20 = arith.constant 0 : index
      %c0_21 = arith.constant 0 : index
      %32 = vector.load %arg7[%c0_19, %c0_20, %c0_21] : memref<1x2x128xf32, #tpu.memory_space<vmem>>, vector<1x2x128xf32>
      %33 = vector.shape_cast %32 : vector<1x2x128xf32> to vector<2x128xf32>
      %34 = arith.addf %33, %20 : vector<2x128xf32>
      %c0_22 = arith.constant 0 : index
      %c0_23 = arith.constant 0 : index
      %c0_24 = arith.constant 0 : index
      %35 = vector.load %arg7[%c0_22, %c0_23, %c0_24] : memref<1x2x128xf32, #tpu.memory_space<vmem>>, vector<1x2x128xf32>
      %36 = vector.shape_cast %35 : vector<1x2x128xf32> to vector<2x128xf32>
      %37 = vector.shape_cast %34 : vector<2x128xf32> to vector<1x2x128xf32>
      tpu.vector_store %arg7[%c0_22, %c0_23, %c0_24], %37 {strides = array<i32>} : memref<1x2x128xf32, #tpu.memory_space<vmem>>, vector<1x2x128xf32>,
    } else {
    }
    %27 = vector.shape_cast %14 : vector<128x128xf32> to vector<8x16x128xf32>
    %28 = arith.truncf %27 : vector<8x16x128xf32> to vector<8x16x128xbf16>
    %c0_15 = arith.constant 0 : index
    %c0_16 = arith.constant 0 : index
    %c0_17 = arith.constant 0 : index
    %c0_18 = arith.constant 0 : index
    %29 = vector.load %arg6[%c0_15, %c0_16, %c0_17, %c0_18] : memref<1x8x16x128xbf16, #tpu.memory_space<vmem>>, vector<1x8x16x128xbf16>
    %30 = vector.shape_cast %29 : vector<1x8x16x128xbf16> to vector<8x16x128xbf16>
    %31 = vector.shape_cast %28 : vector<8x16x128xbf16> to vector<1x8x16x128xbf16>
    tpu.vector_store %arg6[%c0_15, %c0_16, %c0_17, %c0_18], %31 {strides = array<i32>} : memref<1x8x16x128xbf16, #tpu.memory_space<vmem>>, vector<1x8x16x128xbf16>,
    return
  }
  func.func @transform_0(%arg0: i32, %arg1: i32) -> (i32, i32) {
    %c0_i32 = arith.constant 0 : i32
    %c0_i32_0 = arith.constant 0 : i32
    %c0_i32_1 = arith.constant 0 : i32
    return %c0_i32, %c0_i32_0 : i32, i32
  }
  func.func @transform_1(%arg0: i32, %arg1: i32) -> (i32, i32) {
    %c0_i32 = arith.constant 0 : i32
    %c0_i32_0 = arith.constant 0 : i32
    %c0_i32_1 = arith.constant 0 : i32
    return %c0_i32, %c0_i32_0 : i32, i32
  }
  func.func @transform_2(%arg0: i32, %arg1: i32) -> (i32, i32, i32, i32) {
    %c0_i32 = arith.constant 0 : i32
    %c0_i32_0 = arith.constant 0 : i32
    %c0_i32_1 = arith.constant 0 : i32
    return %arg0, %arg1, %c0_i32, %c0_i32_0 : i32, i32, i32, i32
  }
  func.func @transform_3(%arg0: i32, %arg1: i32) -> (i32, i32) {
    %c0_i32 = arith.constant 0 : i32
    %c0_i32_0 = arith.constant 0 : i32
    %c0_i32_1 = arith.constant 0 : i32
    return %c0_i32, %c0_i32_0 : i32, i32
  }
  func.func @transform_4(%arg0: i32, %arg1: i32) -> (i32, i32, i32, i32) {
    %c0_i32 = arith.constant 0 : i32
    %c0_i32_0 = arith.constant 0 : i32
    %c0_i32_1 = arith.constant 0 : i32
    return %arg0, %arg1, %c0_i32, %c0_i32_0 : i32, i32, i32, i32
  }
  func.func @transform_5(%arg0: i32, %arg1: i32) -> (i32, i32, i32) {
    %c0_i32 = arith.constant 0 : i32
    %c0_i32_0 = arith.constant 0 : i32
    %c0_i32_1 = arith.constant 0 : i32
    return %arg0, %c0_i32, %c0_i32_0 : i32, i32, i32
  }
}

module attributes {stable_mosaic.version = 11 : i64} {
  func.func @_bn_residual_kernel(%arg0: i32, %arg1: i32, %arg2: memref<1x128xf32, #tpu.memory_space<vmem>>, %arg3: memref<1x128xf32, #tpu.memory_space<vmem>>, %arg4: memref<1x8x16x128xbf16, #tpu.memory_space<vmem>>, %arg5: memref<1x8x16x128xf32, #tpu.memory_space<vmem>>, %arg6: memref<1x8x16x128xf32, #tpu.memory_space<vmem>>) attributes {dimension_semantics = [#tpu.dimension_semantics<parallel>, #tpu.dimension_semantics<parallel>], iteration_bounds = array<i64: 2, 2>, scalar_prefetch = 0 : i64, scratch_operands = 0 : i64, tpu.core_type = #tpu.core_type<tc>, window_params = [{pipeline_mode = #tpu.pipeline_mode<synchronous>, transform_indices = @transform_0, window_bounds = array<i64: 1, 128>}, {pipeline_mode = #tpu.pipeline_mode<synchronous>, transform_indices = @transform_1, window_bounds = array<i64: 1, 128>}, {transform_indices = @transform_2, window_bounds = array<i64: 1, 8, 16, 128>}, {transform_indices = @transform_3, window_bounds = array<i64: 1, 8, 16, 128>}, {transform_indices = @transform_4, window_bounds = array<i64: 1, 8, 16, 128>}]} {
    %c0 = arith.constant 0 : index
    %c0_0 = arith.constant 0 : index
    %c0_1 = arith.constant 0 : index
    %c0_2 = arith.constant 0 : index
    %0 = vector.load %arg4[%c0, %c0_0, %c0_1, %c0_2] : memref<1x8x16x128xbf16, #tpu.memory_space<vmem>>, vector<1x8x16x128xbf16>
    %1 = vector.shape_cast %0 : vector<1x8x16x128xbf16> to vector<8x16x128xbf16>
    %2 = arith.extf %1 : vector<8x16x128xbf16> to vector<8x16x128xf32>
    %c0_3 = arith.constant 0 : index
    %c0_4 = arith.constant 0 : index
    %3 = vector.load %arg2[%c0_3, %c0_4] : memref<1x128xf32, #tpu.memory_space<vmem>>, vector<1x128xf32>
    %4 = vector.shape_cast %3 : vector<1x128xf32> to vector<1x1x128xf32>
    %5 = vector.broadcast %4 : vector<1x1x128xf32> to vector<8x16x128xf32>
    %6 = arith.mulf %2, %5 : vector<8x16x128xf32>
    %c0_5 = arith.constant 0 : index
    %c0_6 = arith.constant 0 : index
    %7 = vector.load %arg3[%c0_5, %c0_6] : memref<1x128xf32, #tpu.memory_space<vmem>>, vector<1x128xf32>
    %8 = vector.shape_cast %7 : vector<1x128xf32> to vector<1x1x128xf32>
    %9 = vector.broadcast %8 : vector<1x1x128xf32> to vector<8x16x128xf32>
    %10 = arith.addf %6, %9 : vector<8x16x128xf32>
    %c0_7 = arith.constant 0 : index
    %c0_8 = arith.constant 0 : index
    %c0_9 = arith.constant 0 : index
    %c0_10 = arith.constant 0 : index
    %11 = vector.load %arg5[%c0_7, %c0_8, %c0_9, %c0_10] : memref<1x8x16x128xf32, #tpu.memory_space<vmem>>, vector<1x8x16x128xf32>
    %12 = vector.shape_cast %11 : vector<1x8x16x128xf32> to vector<8x16x128xf32>
    %13 = arith.addf %10, %12 : vector<8x16x128xf32>
    %cst = arith.constant 0.000000e+00 : f32
    %14 = vector.broadcast %cst : f32 to vector<8x16x128xf32>
    %15 = arith.maximumf %13, %14 : vector<8x16x128xf32>
    %c0_11 = arith.constant 0 : index
    %c0_12 = arith.constant 0 : index
    %c0_13 = arith.constant 0 : index
    %c0_14 = arith.constant 0 : index
    %16 = vector.load %arg6[%c0_11, %c0_12, %c0_13, %c0_14] : memref<1x8x16x128xf32, #tpu.memory_space<vmem>>, vector<1x8x16x128xf32>
    %17 = vector.shape_cast %16 : vector<1x8x16x128xf32> to vector<8x16x128xf32>
    %18 = vector.shape_cast %15 : vector<8x16x128xf32> to vector<1x8x16x128xf32>
    tpu.vector_store %arg6[%c0_11, %c0_12, %c0_13, %c0_14], %18 {strides = array<i32>} : memref<1x8x16x128xf32, #tpu.memory_space<vmem>>, vector<1x8x16x128xf32>,
    return
  }
  func.func @transform_0(%arg0: i32, %arg1: i32) -> (i32, i32) {
    %c0_i32 = arith.constant 0 : i32
    %c0_i32_0 = arith.constant 0 : i32
    %c0_i32_1 = arith.constant 0 : i32
    return %c0_i32, %c0_i32_0 : i32, i32
  }
  func.func @transform_1(%arg0: i32, %arg1: i32) -> (i32, i32) {
    %c0_i32 = arith.constant 0 : i32
    %c0_i32_0 = arith.constant 0 : i32
    %c0_i32_1 = arith.constant 0 : i32
    return %c0_i32, %c0_i32_0 : i32, i32
  }
  func.func @transform_2(%arg0: i32, %arg1: i32) -> (i32, i32, i32, i32) {
    %c0_i32 = arith.constant 0 : i32
    %c0_i32_0 = arith.constant 0 : i32
    %c0_i32_1 = arith.constant 0 : i32
    return %arg0, %arg1, %c0_i32, %c0_i32_0 : i32, i32, i32, i32
  }
  func.func @transform_3(%arg0: i32, %arg1: i32) -> (i32, i32, i32, i32) {
    %c0_i32 = arith.constant 0 : i32
    %c0_i32_0 = arith.constant 0 : i32
    %c0_i32_1 = arith.constant 0 : i32
    return %arg0, %arg1, %c0_i32, %c0_i32_0 : i32, i32, i32, i32
  }
  func.func @transform_4(%arg0: i32, %arg1: i32) -> (i32, i32, i32, i32) {
    %c0_i32 = arith.constant 0 : i32
    %c0_i32_0 = arith.constant 0 : i32
    %c0_i32_1 = arith.constant 0 : i32
    return %arg0, %arg1, %c0_i32, %c0_i32_0 : i32, i32, i32, i32
  }
}

</mosaic_0001>

<llo_original>
// kernel: bottleneck_forward.7
$region0: #{bottleneck_forward.7}
  #allocation0 [shape = 'u32[]', space=smem, size = 0x4, offset = 0x4, fixed_abs, tag = 'smem constant byte address 0x4 - core index']
  #allocation1 [shape = 'u32[144,128]{1,0:T(1,128)}', space=vmem, size = 0x12000, scoped, tag = 'internal scratch']
  %s0 = inlined_call_operand.vmem [shape: f32[1,128], index: 0, kind: input, shape index: {}]
  %s1 = inlined_call_operand.vmem [shape: f32[1,128], index: 1, kind: input, shape index: {}]
  %s2 = inlined_call_operand.vmem [shape: bf16[2,16,16,128], index: 2, kind: input, shape index: {}]
  %s3 = inlined_call_operand.vmem [shape: f32[2,16,16,128], index: 3, kind: input, shape index: {}]
  %s4 = inlined_call_operand.hbm [shape: f32[2,16,16,128], index: 4, kind: output, shape index: {}]
  %s5 = sld [smem:[#allocation0]]
  $region49: #{bottleneck_forward.7} parent=0
    _
  %s7 = ssub.s32 1, %s5
  %s8 = scalar_select 0, %s7, %s5
  $region1: #{bottleneck_forward.7} parent=0
    #allocation2 [shape = 'u8[131072]{0}', space=vmem, size = 0x20000, scoped, tag = 'output window, operand 0']
    #allocation3 [shape = 's32[2]{0}', space=sflag, size = 0x8, scoped, tag = 'scoped memory for bottleneck_forward.7']
    %9 = vsyncpa [#allocation3], 0
    %s10 = scalar_lea.sflag [#allocation3], 1
    %11 = vsyncpa %s10, 0
    loop: start=0, step=1, limit=6
    $region2: #{bottleneck_forward.7} parent=1 // loop_pre_header
      _
    $region3: #{bottleneck_forward.7} parent=1 // loop_header
      %s13 = sphi 0, %s17
      %p14 = scmp.ge.s32.totalorder %s13, 6
      %s20 = sphi 0, %s32
      %s21 = sphi 0, %s28
      %s22 = sphi 0, %s20
      %s23 = sphi 0, %s21
      %s24 = sphi 0, %s22
      %s25 = sphi 0, %s23
      %s33 = sphi 0, %s33
      %s35 = sphi 0, %s33
      %s36 = sphi 0, %s35
      %s50 = sphi 0, %s36
      %s54 = sphi 0, %s54
      %s56 = sphi 0, %s54
      %s57 = sphi 0, %s56
      %s71 = sphi 0, %s57
      %s79 = sphi 0, %s81
      %s82 = sphi 0, %s79
      %s83 = sphi 0, %s82
      %s99 = sphi 0, %s83
      %s107 = sphi 0, %s109
      %s110 = sphi 0, %s107
      %s111 = sphi 0, %s110
      %s127 = sphi 0, %s111
      %s135 = sphi 0, %s137
      %s138 = sphi 0, %s135
      %s139 = sphi 0, %s138
      %s155 = sphi 0, %s139
    $region4: #{bottleneck_forward.7} parent=1 // loop_header_branch
      %16 = sbr.rel (%p14) target = $region8
    $region5: #{bottleneck_forward.7} parent=1 // loop_body
      %s18 = ssub.s32 %s13, 1
      %s19 = ssub.s32 %s13, 2
      %s26 = sadd.s32 1, %s21
      %p27 = scmp.ge.s32.totalorder %s26, 2
      %s28 = scalar_select %p27, 0, %s26
      %s29 = sadd.s32 1, %s20
      %s30 = scalar_select %p27, %s29, %s20
      %p31 = scmp.ge.s32.totalorder %s30, 2
      %s32 = scalar_select %p31, 0, %s30
      %s34 = sadd.s32 %s33, 1
      %p37 = scmp.eq.s32.totalorder %s13, 3
      %p38 = scmp.ne.s32.totalorder %s33, %s35
      %p39 = scmp.eq.s32.totalorder %s13, 0
      %p40 = por %p38, %p39
      %p41 = scmp.ne.s32.totalorder %s33, %s35
      %p42 = scmp.eq.s32.totalorder %s18, 3
      %p43 = por %p41, %p42
      %p44 = scmp.ne.s32.totalorder %s35, %s36
      %p45 = scmp.eq.s32.totalorder %s18, 0
      %p46 = por %p44, %p45
      %p47 = scmp.ne.s32.totalorder %s35, %s36
      %p48 = scmp.eq.s32.totalorder %s19, 3
      %p49 = por %p47, %p48
      %p51 = scmp.ne.s32.totalorder %s36, %s50
      %p52 = scmp.eq.s32.totalorder %s19, 0
      %p53 = por %p51, %p52
      %s55 = sadd.s32 %s54, 1
      %p58 = scmp.eq.s32.totalorder %s13, 3
      %p59 = scmp.ne.s32.totalorder %s54, %s56
      %p60 = scmp.eq.s32.totalorder %s13, 0
      %p61 = por %p59, %p60
      %p62 = scmp.ne.s32.totalorder %s54, %s56
      %p63 = scmp.eq.s32.totalorder %s18, 3
      %p64 = por %p62, %p63
      %p65 = scmp.ne.s32.totalorder %s56, %s57
      %p66 = scmp.eq.s32.totalorder %s18, 0
      %p67 = por %p65, %p66
      %p68 = scmp.ne.s32.totalorder %s56, %s57
      %p69 = scmp.eq.s32.totalorder %s19, 3
      %p70 = por %p68, %p69
      %p72 = scmp.ne.s32.totalorder %s57, %s71
      %p73 = scmp.eq.s32.totalorder %s19, 0
      %p74 = por %p72, %p73
      %s75 = ssub.s32 %s20, %s32
      %s76 = ssub.s32 %s21, %s28
      %s77 = sor.u32 %s75, %s76
      %p78 = scmp.eq.s32.totalorder %s77, 0
      %s80 = sadd.s32 %s79, 1
      %s81 = scalar_select %p78, %s79, %s80
      %p84 = pneg %p78
      %p85 = scmp.eq.s32.totalorder %s13, 3
      %p86 = por %p84, %p85
      %p87 = scmp.ne.s32.totalorder %s79, %s82
      %p88 = scmp.eq.s32.totalorder %s13, 0
      %p89 = por %p87, %p88
      %p90 = scmp.ne.s32.totalorder %s79, %s82
      %p91 = scmp.eq.s32.totalorder %s18, 3
      %p92 = por %p90, %p91
      %p93 = scmp.ne.s32.totalorder %s82, %s83
      %p94 = scmp.eq.s32.totalorder %s18, 0
      %p95 = por %p93, %p94
      %p96 = scmp.ne.s32.totalorder %s82, %s83
      %p97 = scmp.eq.s32.totalorder %s19, 3
      %p98 = por %p96, %p97
      %p100 = scmp.ne.s32.totalorder %s83, %s99
      %p101 = scmp.eq.s32.totalorder %s19, 0
      %p102 = por %p100, %p101
      %s103 = ssub.s32 %s20, %s32
      %s104 = ssub.s32 %s21, %s28
      %s105 = sor.u32 %s103, %s104
      %p106 = scmp.eq.s32.totalorder %s105, 0
      %s108 = sadd.s32 %s107, 1
      %s109 = scalar_select %p106, %s107, %s108
      %p112 = pneg %p106
      %p113 = scmp.eq.s32.totalorder %s13, 3
      %p114 = por %p112, %p113
      %p115 = scmp.ne.s32.totalorder %s107, %s110
      %p116 = scmp.eq.s32.totalorder %s13, 0
      %p117 = por %p115, %p116
      %p118 = scmp.ne.s32.totalorder %s107, %s110
      %p119 = scmp.eq.s32.totalorder %s18, 3
      %p120 = por %p118, %p119
      %p121 = scmp.ne.s32.totalorder %s110, %s111
      %p122 = scmp.eq.s32.totalorder %s18, 0
      %p123 = por %p121, %p122
      %p124 = scmp.ne.s32.totalorder %s110, %s111
      %p125 = scmp.eq.s32.totalorder %s19, 3
      %p126 = por %p124, %p125
      %p128 = scmp.ne.s32.totalorder %s111, %s127
      %p129 = scmp.eq.s32.totalorder %s19, 0
      %p130 = por %p128, %p129
      %s131 = ssub.s32 %s20, %s32
      %s132 = ssub.s32 %s21, %s28
      %s133 = sor.u32 %s131, %s132
      %p134 = scmp.eq.s32.totalorder %s133, 0
      %s136 = sadd.s32 %s135, 1
      %s137 = scalar_select %p134, %s135, %s136
      %p140 = pneg %p134
      %p141 = scmp.eq.s32.totalorder %s13, 3
      %p142 = por %p140, %p141
      %p143 = scmp.ne.s32.totalorder %s135, %s138
      %p144 = scmp.eq.s32.totalorder %s13, 0
      %p145 = por %p143, %p144
      %p146 = scmp.ne.s32.totalorder %s135, %s138
      %p147 = scmp.eq.s32.totalorder %s18, 3
      %p148 = por %p146, %p147
      %p149 = scmp.ne.s32.totalorder %s138, %s139
      %p150 = scmp.eq.s32.totalorder %s18, 0
      %p151 = por %p149, %p150
      %p152 = scmp.ne.s32.totalorder %s138, %s139
      %p153 = scmp.eq.s32.totalorder %s19, 3
      %p154 = por %p152, %p153
      %p156 = scmp.ne.s32.totalorder %s139, %s155
      %p157 = scmp.eq.s32.totalorder %s19, 0
      %p158 = por %p156, %p157
      %p159 = scmp.le.s32.totalorder 1, %s13
      %p160 = scmp.lt.s32.totalorder %s13, 5
      %p161 = pnand %p159, %p160
      %p162 = pneg %p161
      // Predicated region
      $region9: #{bottleneck_forward.7} parent=5 // pred_check
        _
      $region10: #{bottleneck_forward.7} parent=5 // pred_check_branch
        %164 = sbr.rel (%p161) target = $region12
      $region11: #{bottleneck_forward.7} parent=5 // pred_region
        %s165 = ssub.s32 %s13, 1
        // Predicated region
        $region13: #{bottleneck_forward.7} parent=11 // pred_check
          %p166 = pneg %p46
        $region14: #{bottleneck_forward.7} parent=11 // pred_check_branch
          %168 = sbr.rel (%p166) target = $region16
        $region15: #{bottleneck_forward.7} parent=11 // pred_region
          _
        $region16: #{bottleneck_forward.7} parent=11 // pred_fallthru
          _
        // Predicated region
        $region17: #{bottleneck_forward.7} parent=11 // pred_check
          %p169 = pneg %p67
        $region18: #{bottleneck_forward.7} parent=11 // pred_check_branch
          %171 = sbr.rel (%p169) target = $region20
        $region19: #{bottleneck_forward.7} parent=11 // pred_region
          _
        $region20: #{bottleneck_forward.7} parent=11 // pred_fallthru
          _
      $region12: #{bottleneck_forward.7} parent=5 // pred_fallthru
        _
      %p172 = scmp.lt.s32.totalorder %s13, 4
      // Predicated region
      $region21: #{bottleneck_forward.7} parent=5 // pred_check
        %p173 = pneg %p172
      $region22: #{bottleneck_forward.7} parent=5 // pred_check_branch
        %175 = sbr.rel (%p173) target = $region24
      $region23: #{bottleneck_forward.7} parent=5 // pred_region
        // Predicated region
        $region25: #{bottleneck_forward.7} parent=23 // pred_check
          %p176 = pneg %p89
        $region26: #{bottleneck_forward.7} parent=23 // pred_check_branch
          %178 = sbr.rel (%p176) target = $region28
        $region27: #{bottleneck_forward.7} parent=23 // pred_region
          %s179 = smul.u32 8, %s21
          %p180 = scmp.lt.s32.totalorder %s20, 1
          %s181 = scalar_select %p180, %s20, 1
          %p182 = scmp.lt.s32.totalorder %s179, 15
          %s183 = scalar_select %p182, %s179, 15
          %s184 = smul.addr %s183, 2
          %s185 = smul.addr %s181, 32
          %s186 = sadd.s32 %s184, %s185
          %s187 = smul.addr %s186, 4
          %s188 = scalar_lea.vmem %s2, %s187
          %s189 = smul.u32 8, %s21
        $region28: #{bottleneck_forward.7} parent=23 // pred_fallthru
          _
        // Predicated region
        $region29: #{bottleneck_forward.7} parent=23 // pred_check
          %p190 = pneg %p117
        $region30: #{bottleneck_forward.7} parent=23 // pred_check_branch
          %192 = sbr.rel (%p190) target = $region32
        $region31: #{bottleneck_forward.7} parent=23 // pred_region
          %s193 = smul.u32 8, %s21
          %p194 = scmp.lt.s32.totalorder %s20, 1
          %s195 = scalar_select %p194, %s20, 1
          %p196 = scmp.lt.s32.totalorder %s193, 15
          %s197 = scalar_select %p196, %s193, 15
          %s198 = smul.addr %s197, 2
          %s199 = smul.addr %s195, 32
          %s200 = sadd.s32 %s198, %s199
          %s201 = smul.addr %s200, 8
          %s202 = scalar_lea.vmem %s3, %s201
          %s203 = smul.u32 8, %s21
        $region32: #{bottleneck_forward.7} parent=23 // pred_fallthru
          _
      $region24: #{bottleneck_forward.7} parent=5 // pred_fallthru
        _
      %p204 = scmp.le.s32.totalorder 1, %s13
      %p205 = scmp.lt.s32.totalorder %s13, 5
      %p206 = pnand %p204, %p205
      %p207 = pneg %p206
      // Predicated region
      $region33: #{bottleneck_forward.7} parent=5 // pred_check
        _
      $region34: #{bottleneck_forward.7} parent=5 // pred_check_branch
        %209 = sbr.rel (%p206) target = $region36
      $region35: #{bottleneck_forward.7} parent=5 // pred_region
        %s210 = ssub.s32 %s13, 1
        %p211 = pneg %p46
        %p212 = pneg %p43
        %p213 = pneg %p67
        %p214 = pneg %p64
        %s215 = smul.u32 8, %s23
        %p216 = scmp.lt.s32.totalorder %s22, 1
        %s217 = scalar_select %p216, %s22, 1
        %p218 = scmp.lt.s32.totalorder %s215, 15
        %s219 = scalar_select %p218, %s215, 15
        %s220 = smul.addr %s219, 2
        %s221 = smul.addr %s217, 32
        %s222 = sadd.s32 %s220, %s221
        %s223 = smul.addr %s222, 4
        %s224 = scalar_lea.vmem %s2, %s223
        %p225 = pneg %p95
        %p226 = pneg %p92
        %s227 = smul.u32 8, %s23
        %p228 = scmp.lt.s32.totalorder %s22, 1
        %s229 = scalar_select %p228, %s22, 1
        %p230 = scmp.lt.s32.totalorder %s227, 15
        %s231 = scalar_select %p230, %s227, 15
        %s232 = smul.addr %s231, 2
        %s233 = smul.addr %s229, 32
        %s234 = sadd.s32 %s232, %s233
        %s235 = smul.addr %s234, 8
        %s236 = scalar_lea.vmem %s3, %s235
        %p237 = pneg %p123
        %p238 = pneg %p120
        %p239 = pneg %p151
        %p240 = pneg %p148
        %s241 = sand.u32 %s138, 1
        %s242 = scalar_lea.sflag [#allocation3], %s241
        %s243 = sand.u32 %s138, 1
        %s244 = smul.addr %s243, 128
        %s245 = scalar_lea.vmem [#allocation2], %s244
        %s246 = smul.u32 8, %s23
        %p247 = scmp.lt.s32.totalorder %s22, 1
        %s248 = scalar_select %p247, %s22, 1
        %p249 = scmp.lt.s32.totalorder %s246, 15
        %s250 = scalar_select %p249, %s246, 15
        %s251 = smul.addr %s250, 2
        %s252 = smul.addr %s248, 32
        %s253 = sadd.s32 %s251, %s252
        %s254 = smul.addr %s253, 4
        %s255 = scalar_lea.vmem %s2, %s254
        %s256 = smul.u32 8, %s23
        %s257 = smul.u32 8, %s23
        %p258 = scmp.lt.s32.totalorder %s22, 1
        %s259 = scalar_select %p258, %s22, 1
        %p260 = scmp.lt.s32.totalorder %s257, 15
        %s261 = scalar_select %p260, %s257, 15
        %s262 = smul.addr %s261, 2
        %s263 = smul.addr %s259, 32
        %s264 = sadd.s32 %s262, %s263
        %s265 = smul.addr %s264, 8
        %s266 = scalar_lea.vmem %s3, %s265
        %s267 = smul.u32 8, %s23
        %s268 = smul.u32 8, %s23
        %v269 = vld [vmem:[%s255] sm:$0xf]
        %v270 = vld [vmem:[%s255 + $0x4] sm:$0xf]
        %v271 = vld [vmem:[%s255 + $0x8] sm:$0xf]
        %v272 = vld [vmem:[%s255 + $0xc] sm:$0xf]
        %v273 = vld [vmem:[%s255 + $0x10] sm:$0xf]
        %v274 = vld [vmem:[%s255 + $0x14] sm:$0xf]
        %v275 = vld [vmem:[%s255 + $0x18] sm:$0xf]
        %v276 = vld [vmem:[%s255 + $0x1c] sm:$0xf]
        %v277 = vld [vmem:[%s255 + $0x20] sm:$0xf]
        %v278 = vld [vmem:[%s255 + $0x24] sm:$0xf]
        %v279 = vld [vmem:[%s255 + $0x28] sm:$0xf]
        %v280 = vld [vmem:[%s255 + $0x2c] sm:$0xf]
        %v281 = vld [vmem:[%s255 + $0x30] sm:$0xf]
        %v282 = vld [vmem:[%s255 + $0x34] sm:$0xf]
        %v283 = vld [vmem:[%s255 + $0x38] sm:$0xf]
        %v284 = vld [vmem:[%s255 + $0x3c] sm:$0xf]
        %v285 = vunpack.c.l.bf16 %v269
        %v286 = vunpack.c.l.bf16 %v270
        %v287 = vunpack.c.l.bf16 %v271
        %v288 = vunpack.c.l.bf16 %v272
        %v289 = vunpack.c.l.bf16 %v273
        %v290 = vunpack.c.l.bf16 %v274
        %v291 = vunpack.c.l.bf16 %v275
        %v292 = vunpack.c.l.bf16 %v276
        %v293 = vunpack.c.l.bf16 %v277
        %v294 = vunpack.c.l.bf16 %v278
        %v295 = vunpack.c.l.bf16 %v279
        %v296 = vunpack.c.l.bf16 %v280
        %v297 = vunpack.c.l.bf16 %v281
        %v298 = vunpack.c.l.bf16 %v282
        %v299 = vunpack.c.l.bf16 %v283
        %v300 = vunpack.c.l.bf16 %v284
        %v301 = vld [vmem:[%s0] sm:$0x1]
        %v303 = vlaneseq
        %v304 = vshrl.u32 %v303, 7
        %v305 = vsub.s32 0, %v304
        %v306 = vrot.slane %v301, %v305
        %v308 = vmul.f32 %v285, %v306
        %v309 = vmul.f32 %v286, %v306
        %v310 = vmul.f32 %v287, %v306
        %v311 = vmul.f32 %v288, %v306
        %v312 = vmul.f32 %v289, %v306
        %v313 = vmul.f32 %v290, %v306
        %v314 = vmul.f32 %v291, %v306
        %v315 = vmul.f32 %v292, %v306
        %v316 = vmul.f32 %v293, %v306
        %v317 = vmul.f32 %v294, %v306
        %v318 = vmul.f32 %v295, %v306
        %v319 = vmul.f32 %v296, %v306
        %v320 = vmul.f32 %v297, %v306
        %v321 = vmul.f32 %v298, %v306
        %v322 = vmul.f32 %v299, %v306
        %v323 = vmul.f32 %v300, %v306
        %v324 = vld [vmem:[%s1] sm:$0x1]
        %v326 = vlaneseq
        %v327 = vshrl.u32 %v326, 7
        %v328 = vsub.s32 0, %v327
        %v329 = vrot.slane %v324, %v328
        %v331 = vadd.f32 %v308, %v329
        %v332 = vadd.f32 %v309, %v329
        %v333 = vadd.f32 %v310, %v329
        %v334 = vadd.f32 %v311, %v329
        %v335 = vadd.f32 %v312, %v329
        %v336 = vadd.f32 %v313, %v329
        %v337 = vadd.f32 %v314, %v329
        %v338 = vadd.f32 %v315, %v329
        %v339 = vadd.f32 %v316, %v329
        %v340 = vadd.f32 %v317, %v329
        %v341 = vadd.f32 %v318, %v329
        %v342 = vadd.f32 %v319, %v329
        %v343 = vadd.f32 %v320, %v329
        %v344 = vadd.f32 %v321, %v329
        %v345 = vadd.f32 %v322, %v329
        %v346 = vadd.f32 %v323, %v329
        %v347 = vld [vmem:[%s266] sm:$0xff]
        %v348 = vld [vmem:[%s266 + $0x8] sm:$0xff]
        %v349 = vld [vmem:[%s266 + $0x10] sm:$0xff]
        %v350 = vld [vmem:[%s266 + $0x18] sm:$0xff]
        %v351 = vld [vmem:[%s266 + $0x20] sm:$0xff]
        %v352 = vld [vmem:[%s266 + $0x28] sm:$0xff]
        %v353 = vld [vmem:[%s266 + $0x30] sm:$0xff]
        %v354 = vld [vmem:[%s266 + $0x38] sm:$0xff]
        %v355 = vld [vmem:[%s266 + $0x40] sm:$0xff]
        %v356 = vld [vmem:[%s266 + $0x48] sm:$0xff]
        %v357 = vld [vmem:[%s266 + $0x50] sm:$0xff]
        %v358 = vld [vmem:[%s266 + $0x58] sm:$0xff]
        %v359 = vld [vmem:[%s266 + $0x60] sm:$0xff]
        %v360 = vld [vmem:[%s266 + $0x68] sm:$0xff]
        %v361 = vld [vmem:[%s266 + $0x70] sm:$0xff]
        %v362 = vld [vmem:[%s266 + $0x78] sm:$0xff]
        %v363 = vadd.f32 %v331, %v347
        %v364 = vadd.f32 %v332, %v348
        %v365 = vadd.f32 %v333, %v349
        %v366 = vadd.f32 %v334, %v350
        %v367 = vadd.f32 %v335, %v351
        %v368 = vadd.f32 %v336, %v352
        %v369 = vadd.f32 %v337, %v353
        %v370 = vadd.f32 %v338, %v354
        %v371 = vadd.f32 %v339, %v355
        %v372 = vadd.f32 %v340, %v356
        %v373 = vadd.f32 %v341, %v357
        %v374 = vadd.f32 %v342, %v358
        %v375 = vadd.f32 %v343, %v359
        %v376 = vadd.f32 %v344, %v360
        %v377 = vadd.f32 %v345, %v361
        %v378 = vadd.f32 %v346, %v362
        %v379 = vmax.f32 %v363, 0.0
        %v380 = vmax.f32 %v364, 0.0
        %v381 = vmax.f32 %v365, 0.0
        %v382 = vmax.f32 %v366, 0.0
        %v383 = vmax.f32 %v367, 0.0
        %v384 = vmax.f32 %v368, 0.0
        %v385 = vmax.f32 %v369, 0.0
        %v386 = vmax.f32 %v370, 0.0
        %v387 = vmax.f32 %v371, 0.0
        %v388 = vmax.f32 %v372, 0.0
        %v389 = vmax.f32 %v373, 0.0
        %v390 = vmax.f32 %v374, 0.0
        %v391 = vmax.f32 %v375, 0.0
        %v392 = vmax.f32 %v376, 0.0
        %v393 = vmax.f32 %v377, 0.0
        %v394 = vmax.f32 %v378, 0.0
        %395 = vst [vmem:[%s245] sm:$0xff] %v379
        %396 = vst [vmem:[%s245 + $0x8] sm:$0xff] %v380
        %397 = vst [vmem:[%s245 + $0x10] sm:$0xff] %v381
        %398 = vst [vmem:[%s245 + $0x18] sm:$0xff] %v382
        %399 = vst [vmem:[%s245 + $0x20] sm:$0xff] %v383
        %400 = vst [vmem:[%s245 + $0x28] sm:$0xff] %v384
        %401 = vst [vmem:[%s245 + $0x30] sm:$0xff] %v385
        %402 = vst [vmem:[%s245 + $0x38] sm:$0xff] %v386
        %403 = vst [vmem:[%s245 + $0x40] sm:$0xff] %v387
        %404 = vst [vmem:[%s245 + $0x48] sm:$0xff] %v388
        %405 = vst [vmem:[%s245 + $0x50] sm:$0xff] %v389
        %406 = vst [vmem:[%s245 + $0x58] sm:$0xff] %v390
        %407 = vst [vmem:[%s245 + $0x60] sm:$0xff] %v391
        %408 = vst [vmem:[%s245 + $0x68] sm:$0xff] %v392
        %409 = vst [vmem:[%s245 + $0x70] sm:$0xff] %v393
        %410 = vst [vmem:[%s245 + $0x78] sm:$0xff] %v394
        %s411 = sand.u32 %s138, 1
        %s412 = scalar_lea.sflag [#allocation3], %s411
        %s413 = sand.u32 %s138, 1
        %s414 = smul.addr %s413, 128
        %s415 = scalar_lea.vmem [#allocation2], %s414
        // Predicated region
        $region37: #{bottleneck_forward.7} parent=35 // pred_check
          %p416 = pneg %p148
        $region38: #{bottleneck_forward.7} parent=35 // pred_check_branch
          %418 = sbr.rel (%p416) target = $region40
        $region39: #{bottleneck_forward.7} parent=35 // pred_region
          %s419 = smul.u32 8, %s23
          %s421 = ssub.s32 2048, 2048
          %422 = vsyncadd %s412, %s421
          %s423 = smul.addr %s419, 2
          %s424 = smul.addr %s22, 32
          %s425 = sadd.s32 %s423, %s424
          %s426 = smul.addr %s425, 128
          %s427 = scalar_lea.hbm %s4, %s426
          %s428 = sshll.u32 %s415, 4
          %s429 = int_to_ptr.vmem [resolvable:$true] %s428
          %434 = dma.vmem_to_hbm [thread:$0]  %s429, 2048, %s427, %s412, 128, 128, 8
        $region40: #{bottleneck_forward.7} parent=35 // pred_fallthru
          _
      $region36: #{bottleneck_forward.7} parent=5 // pred_fallthru
        _
      %p435 = scmp.le.s32.totalorder 2, %s13
      // Predicated region
      $region41: #{bottleneck_forward.7} parent=5 // pred_check
        %p436 = pneg %p435
      $region42: #{bottleneck_forward.7} parent=5 // pred_check_branch
        %438 = sbr.rel (%p436) target = $region44
      $region43: #{bottleneck_forward.7} parent=5 // pred_region
        %s439 = ssub.s32 %s13, 2
        // Predicated region
        $region45: #{bottleneck_forward.7} parent=43 // pred_check
          %p440 = pneg %p154
        $region46: #{bottleneck_forward.7} parent=43 // pred_check_branch
          %442 = sbr.rel (%p440) target = $region48
        $region47: #{bottleneck_forward.7} parent=43 // pred_region
          %s443 = sand.u32 %s139, 1
          %s444 = scalar_lea.sflag [#allocation3], %s443
          %s445 = sand.u32 %s139, 1
          %s446 = smul.addr %s445, 128
          %s447 = scalar_lea.vmem [#allocation2], %s446
          %448 = dma.done %s444, 2048
        $region48: #{bottleneck_forward.7} parent=43 // pred_fallthru
          _
      $region44: #{bottleneck_forward.7} parent=5 // pred_fallthru
        _
    $region6: #{bottleneck_forward.7} parent=1 // loop_footer
      %s17 = sadd.s32 1, %s13
    $region7: #{bottleneck_forward.7} parent=1 // loop_footer_branch
      %12 = sbr.rel target = $region3
    $region8: #{bottleneck_forward.7} parent=1 // loop_exit
      _
    %449 = vsyncpa [#allocation3], 1
    %s450 = scalar_lea.sflag [#allocation3], 1
    %451 = vsyncpa %s450, 1

// kernel: bottleneck_forward.6
$region0: #{bottleneck_forward.6}
  #allocation0 [shape = 'u32[]', space=smem, size = 0x4, offset = 0x4, fixed_abs, tag = 'smem constant byte address 0x4 - core index']
  #allocation1 [shape = 'u32[144,128]{1,0:T(1,128)}', space=vmem, size = 0x12000, scoped, tag = 'internal scratch']
  %s0 = inlined_call_operand.vmem [shape: f32[1,32], index: 0, kind: input, shape index: {}]
  %s1 = inlined_call_operand.vmem [shape: f32[1,32], index: 1, kind: input, shape index: {}]
  %s2 = inlined_call_operand.vmem [shape: bf16[2,16,16,32], index: 2, kind: input, shape index: {}]
  %s3 = inlined_call_operand.vmem [shape: bf16[32,128], index: 3, kind: input, shape index: {}]
  %s4 = inlined_call_operand.vmem [shape: bf16[2,16,16,128], index: 4, kind: output, shape index: {0}]
  %s5 = inlined_call_operand.vmem [shape: f32[2,2,128], index: 5, kind: output, shape index: {1}]
  %6 = xla_tuple %s4, %s5
  %s7 = sld [smem:[#allocation0]]
  $region65: #{bottleneck_forward.6} parent=0
    _
  %s9 = ssub.s32 1, %s7
  %s10 = scalar_select 0, %s9, %s7
  loop: start=0, step=1, limit=6
  $region2: #{bottleneck_forward.6} parent=0 // loop_pre_header
    _
  $region3: #{bottleneck_forward.6} parent=0 // loop_header
    %s12 = sphi 0, %s16
    %p13 = scmp.ge.s32.totalorder %s12, 6
    %s19 = sphi 0, %s31
    %s20 = sphi 0, %s27
    %s21 = sphi 0, %s19
    %s22 = sphi 0, %s20
    %s23 = sphi 0, %s21
    %s24 = sphi 0, %s22
    %s32 = sphi 0, %s32
    %s34 = sphi 0, %s32
    %s35 = sphi 0, %s34
    %s49 = sphi 0, %s35
    %s53 = sphi 0, %s53
    %s55 = sphi 0, %s53
    %s56 = sphi 0, %s55
    %s70 = sphi 0, %s56
    %s78 = sphi 0, %s80
    %s81 = sphi 0, %s78
    %s82 = sphi 0, %s81
    %s98 = sphi 0, %s82
    %s102 = sphi 0, %s102
    %s104 = sphi 0, %s102
    %s105 = sphi 0, %s104
    %s119 = sphi 0, %s105
    %s127 = sphi 0, %s129
    %s130 = sphi 0, %s127
    %s131 = sphi 0, %s130
    %s147 = sphi 0, %s131
    %s153 = sphi 0, %s155
    %s156 = sphi 0, %s153
    %s157 = sphi 0, %s156
    %s173 = sphi 0, %s157
  $region4: #{bottleneck_forward.6} parent=0 // loop_header_branch
    %15 = sbr.rel (%p13) target = $region8
  $region5: #{bottleneck_forward.6} parent=0 // loop_body
    %s17 = ssub.s32 %s12, 1
    %s18 = ssub.s32 %s12, 2
    %s25 = sadd.s32 1, %s20
    %p26 = scmp.ge.s32.totalorder %s25, 2
    %s27 = scalar_select %p26, 0, %s25
    %s28 = sadd.s32 1, %s19
    %s29 = scalar_select %p26, %s28, %s19
    %p30 = scmp.ge.s32.totalorder %s29, 2
    %s31 = scalar_select %p30, 0, %s29
    %s33 = sadd.s32 %s32, 1
    %p36 = scmp.eq.s32.totalorder %s12, 3
    %p37 = scmp.ne.s32.totalorder %s32, %s34
    %p38 = scmp.eq.s32.totalorder %s12, 0
    %p39 = por %p37, %p38
    %p40 = scmp.ne.s32.totalorder %s32, %s34
    %p41 = scmp.eq.s32.totalorder %s17, 3
    %p42 = por %p40, %p41
    %p43 = scmp.ne.s32.totalorder %s34, %s35
    %p44 = scmp.eq.s32.totalorder %s17, 0
    %p45 = por %p43, %p44
    %p46 = scmp.ne.s32.totalorder %s34, %s35
    %p47 = scmp.eq.s32.totalorder %s18, 3
    %p48 = por %p46, %p47
    %p50 = scmp.ne.s32.totalorder %s35, %s49
    %p51 = scmp.eq.s32.totalorder %s18, 0
    %p52 = por %p50, %p51
    %s54 = sadd.s32 %s53, 1
    %p57 = scmp.eq.s32.totalorder %s12, 3
    %p58 = scmp.ne.s32.totalorder %s53, %s55
    %p59 = scmp.eq.s32.totalorder %s12, 0
    %p60 = por %p58, %p59
    %p61 = scmp.ne.s32.totalorder %s53, %s55
    %p62 = scmp.eq.s32.totalorder %s17, 3
    %p63 = por %p61, %p62
    %p64 = scmp.ne.s32.totalorder %s55, %s56
    %p65 = scmp.eq.s32.totalorder %s17, 0
    %p66 = por %p64, %p65
    %p67 = scmp.ne.s32.totalorder %s55, %s56
    %p68 = scmp.eq.s32.totalorder %s18, 3
    %p69 = por %p67, %p68
    %p71 = scmp.ne.s32.totalorder %s56, %s70
    %p72 = scmp.eq.s32.totalorder %s18, 0
    %p73 = por %p71, %p72
    %s74 = ssub.s32 %s19, %s31
    %s75 = ssub.s32 %s20, %s27
    %s76 = sor.u32 %s74, %s75
    %p77 = scmp.eq.s32.totalorder %s76, 0
    %s79 = sadd.s32 %s78, 1
    %s80 = scalar_select %p77, %s78, %s79
    %p83 = pneg %p77
    %p84 = scmp.eq.s32.totalorder %s12, 3
    %p85 = por %p83, %p84
    %p86 = scmp.ne.s32.totalorder %s78, %s81
    %p87 = scmp.eq.s32.totalorder %s12, 0
    %p88 = por %p86, %p87
    %p89 = scmp.ne.s32.totalorder %s78, %s81
    %p90 = scmp.eq.s32.totalorder %s17, 3
    %p91 = por %p89, %p90
    %p92 = scmp.ne.s32.totalorder %s81, %s82
    %p93 = scmp.eq.s32.totalorder %s17, 0
    %p94 = por %p92, %p93
    %p95 = scmp.ne.s32.totalorder %s81, %s82
    %p96 = scmp.eq.s32.totalorder %s18, 3
    %p97 = por %p95, %p96
    %p99 = scmp.ne.s32.totalorder %s82, %s98
    %p100 = scmp.eq.s32.totalorder %s18, 0
    %p101 = por %p99, %p100
    %s103 = sadd.s32 %s102, 1
    %p106 = scmp.eq.s32.totalorder %s12, 3
    %p107 = scmp.ne.s32.totalorder %s102, %s104
    %p108 = scmp.eq.s32.totalorder %s12, 0
    %p109 = por %p107, %p108
    %p110 = scmp.ne.s32.totalorder %s102, %s104
    %p111 = scmp.eq.s32.totalorder %s17, 3
    %p112 = por %p110, %p111
    %p113 = scmp.ne.s32.totalorder %s104, %s105
    %p114 = scmp.eq.s32.totalorder %s17, 0
    %p115 = por %p113, %p114
    %p116 = scmp.ne.s32.totalorder %s104, %s105
    %p117 = scmp.eq.s32.totalorder %s18, 3
    %p118 = por %p116, %p117
    %p120 = scmp.ne.s32.totalorder %s105, %s119
    %p121 = scmp.eq.s32.totalorder %s18, 0
    %p122 = por %p120, %p121
    %s123 = ssub.s32 %s19, %s31
    %s124 = ssub.s32 %s20, %s27
    %s125 = sor.u32 %s123, %s124
    %p126 = scmp.eq.s32.totalorder %s125, 0
    %s128 = sadd.s32 %s127, 1
    %s129 = scalar_select %p126, %s127, %s128
    %p132 = pneg %p126
    %p133 = scmp.eq.s32.totalorder %s12, 3
    %p134 = por %p132, %p133
    %p135 = scmp.ne.s32.totalorder %s127, %s130
    %p136 = scmp.eq.s32.totalorder %s12, 0
    %p137 = por %p135, %p136
    %p138 = scmp.ne.s32.totalorder %s127, %s130
    %p139 = scmp.eq.s32.totalorder %s17, 3
    %p140 = por %p138, %p139
    %p141 = scmp.ne.s32.totalorder %s130, %s131
    %p142 = scmp.eq.s32.totalorder %s17, 0
    %p143 = por %p141, %p142
    %p144 = scmp.ne.s32.totalorder %s130, %s131
    %p145 = scmp.eq.s32.totalorder %s18, 3
    %p146 = por %p144, %p145
    %p148 = scmp.ne.s32.totalorder %s131, %s147
    %p149 = scmp.eq.s32.totalorder %s18, 0
    %p150 = por %p148, %p149
    %s151 = ssub.s32 %s19, %s31
    %p152 = scmp.eq.s32.totalorder %s151, 0
    %s154 = sadd.s32 %s153, 1
    %s155 = scalar_select %p152, %s153, %s154
    %p158 = pneg %p152
    %p159 = scmp.eq.s32.totalorder %s12, 3
    %p160 = por %p158, %p159
    %p161 = scmp.ne.s32.totalorder %s153, %s156
    %p162 = scmp.eq.s32.totalorder %s12, 0
    %p163 = por %p161, %p162
    %p164 = scmp.ne.s32.totalorder %s153, %s156
    %p165 = scmp.eq.s32.totalorder %s17, 3
    %p166 = por %p164, %p165
    %p167 = scmp.ne.s32.totalorder %s156, %s157
    %p168 = scmp.eq.s32.totalorder %s17, 0
    %p169 = por %p167, %p168
    %p170 = scmp.ne.s32.totalorder %s156, %s157
    %p171 = scmp.eq.s32.totalorder %s18, 3
    %p172 = por %p170, %p171
    %p174 = scmp.ne.s32.totalorder %s157, %s173
    %p175 = scmp.eq.s32.totalorder %s18, 0
    %p176 = por %p174, %p175
    %p177 = scmp.le.s32.totalorder 1, %s12
    %p178 = scmp.lt.s32.totalorder %s12, 5
    %p179 = pnand %p177, %p178
    %p180 = pneg %p179
    // Predicated region
    $region9: #{bottleneck_forward.6} parent=5 // pred_check
      _
    $region10: #{bottleneck_forward.6} parent=5 // pred_check_branch
      %182 = sbr.rel (%p179) target = $region12
    $region11: #{bottleneck_forward.6} parent=5 // pred_region
      %s183 = ssub.s32 %s12, 1
      // Predicated region
      $region13: #{bottleneck_forward.6} parent=11 // pred_check
        %p184 = pneg %p45
      $region14: #{bottleneck_forward.6} parent=11 // pred_check_branch
        %186 = sbr.rel (%p184) target = $region16
      $region15: #{bottleneck_forward.6} parent=11 // pred_region
        _
      $region16: #{bottleneck_forward.6} parent=11 // pred_fallthru
        _
      // Predicated region
      $region17: #{bottleneck_forward.6} parent=11 // pred_check
        %p187 = pneg %p66
      $region18: #{bottleneck_forward.6} parent=11 // pred_check_branch
        %189 = sbr.rel (%p187) target = $region20
      $region19: #{bottleneck_forward.6} parent=11 // pred_region
        _
      $region20: #{bottleneck_forward.6} parent=11 // pred_fallthru
        _
      // Predicated region
      $region21: #{bottleneck_forward.6} parent=11 // pred_check
        %p190 = pneg %p115
      $region22: #{bottleneck_forward.6} parent=11 // pred_check_branch
        %192 = sbr.rel (%p190) target = $region24
      $region23: #{bottleneck_forward.6} parent=11 // pred_region
        _
      $region24: #{bottleneck_forward.6} parent=11 // pred_fallthru
        _
    $region12: #{bottleneck_forward.6} parent=5 // pred_fallthru
      _
    %p193 = scmp.lt.s32.totalorder %s12, 4
    // Predicated region
    $region25: #{bottleneck_forward.6} parent=5 // pred_check
      %p194 = pneg %p193
    $region26: #{bottleneck_forward.6} parent=5 // pred_check_branch
      %196 = sbr.rel (%p194) target = $region28
    $region27: #{bottleneck_forward.6} parent=5 // pred_region
      // Predicated region
      $region29: #{bottleneck_forward.6} parent=27 // pred_check
        %p197 = pneg %p88
      $region30: #{bottleneck_forward.6} parent=27 // pred_check_branch
        %199 = sbr.rel (%p197) target = $region32
      $region31: #{bottleneck_forward.6} parent=27 // pred_region
        %s200 = smul.u32 8, %s20
        %p201 = scmp.lt.s32.totalorder %s19, 1
        %s202 = scalar_select %p201, %s19, 1
        %p203 = scmp.lt.s32.totalorder %s200, 15
        %s204 = scalar_select %p203, %s200, 15
        %s205 = smul.addr %s204, 2
        %s206 = smul.addr %s202, 32
        %s207 = sadd.s32 %s205, %s206
        %s208 = smul.addr %s207, 4
        %s209 = scalar_lea.vmem %s2, %s208
        %s210 = smul.u32 8, %s20
      $region32: #{bottleneck_forward.6} parent=27 // pred_fallthru
        _
    $region28: #{bottleneck_forward.6} parent=5 // pred_fallthru
      _
    %p211 = scmp.le.s32.totalorder 1, %s12
    %p212 = scmp.lt.s32.totalorder %s12, 5
    %p213 = pnand %p211, %p212
    %p214 = pneg %p213
    // Predicated region
    $region33: #{bottleneck_forward.6} parent=5 // pred_check
      _
    $region34: #{bottleneck_forward.6} parent=5 // pred_check_branch
      %216 = sbr.rel (%p213) target = $region36
    $region35: #{bottleneck_forward.6} parent=5 // pred_region
      %s217 = ssub.s32 %s12, 1
      %p218 = pneg %p45
      %p219 = pneg %p42
      %p220 = pneg %p66
      %p221 = pneg %p63
      %s222 = smul.u32 8, %s22
      %p223 = scmp.lt.s32.totalorder %s21, 1
      %s224 = scalar_select %p223, %s21, 1
      %p225 = scmp.lt.s32.totalorder %s222, 15
      %s226 = scalar_select %p225, %s222, 15
      %s227 = smul.addr %s226, 2
      %s228 = smul.addr %s224, 32
      %s229 = sadd.s32 %s227, %s228
      %s230 = smul.addr %s229, 4
      %s231 = scalar_lea.vmem %s2, %s230
      %p232 = pneg %p94
      %p233 = pneg %p91
      %p234 = pneg %p115
      %p235 = pneg %p112
      %p236 = pneg %p143
      %p237 = pneg %p140
      %s238 = smul.u32 8, %s22
      %p239 = scmp.lt.s32.totalorder %s21, 1
      %s240 = scalar_select %p239, %s21, 1
      %p241 = scmp.lt.s32.totalorder %s238, 15
      %s242 = scalar_select %p241, %s238, 15
      %s243 = smul.addr %s242, 2
      %s244 = smul.addr %s240, 32
      %s245 = sadd.s32 %s243, %s244
      %s246 = smul.addr %s245, 4
      %s247 = scalar_lea.vmem %s4, %s246
      %p248 = pneg %p169
      %p249 = pneg %p166
      %p250 = scmp.lt.s32.totalorder %s21, 1
      %s251 = scalar_select %p250, %s21, 1
      %s252 = smul.addr %s251, 2
      %s253 = scalar_lea.vmem %s5, %s252
      %s254 = smul.u32 8, %s22
      %p255 = scmp.lt.s32.totalorder %s21, 1
      %s256 = scalar_select %p255, %s21, 1
      %p257 = scmp.lt.s32.totalorder %s254, 15
      %s258 = scalar_select %p257, %s254, 15
      %s259 = smul.addr %s258, 2
      %s260 = smul.addr %s256, 32
      %s261 = sadd.s32 %s259, %s260
      %s262 = smul.addr %s261, 4
      %s263 = scalar_lea.vmem %s2, %s262
      %s264 = smul.u32 8, %s22
      %s265 = smul.u32 8, %s22
      %p266 = scmp.lt.s32.totalorder %s21, 1
      %s267 = scalar_select %p266, %s21, 1
      %p268 = scmp.lt.s32.totalorder %s265, 15
      %s269 = scalar_select %p268, %s265, 15
      %s270 = smul.addr %s269, 2
      %s271 = smul.addr %s267, 32
      %s272 = sadd.s32 %s270, %s271
      %s273 = smul.addr %s272, 4
      %s274 = scalar_lea.vmem %s4, %s273
      %s275 = smul.u32 8, %s22
      %p276 = scmp.lt.s32.totalorder %s21, 1
      %s277 = scalar_select %p276, %s21, 1
      %s278 = smul.addr %s277, 2
      %s279 = scalar_lea.vmem %s5, %s278
      %v281 = vld [vmem:[%s263] sm:$0xf]
      %v282 = vld [vmem:[%s263 + $0x4] sm:$0xf]
      %v283 = vld [vmem:[%s263 + $0x8] sm:$0xf]
      %v284 = vld [vmem:[%s263 + $0xc] sm:$0xf]
      %v285 = vld [vmem:[%s263 + $0x10] sm:$0xf]
      %v286 = vld [vmem:[%s263 + $0x14] sm:$0xf]
      %v287 = vld [vmem:[%s263 + $0x18] sm:$0xf]
      %v288 = vld [vmem:[%s263 + $0x1c] sm:$0xf]
      %v289 = vld [vmem:[%s263 + $0x20] sm:$0xf]
      %v290 = vld [vmem:[%s263 + $0x24] sm:$0xf]
      %v291 = vld [vmem:[%s263 + $0x28] sm:$0xf]
      %v292 = vld [vmem:[%s263 + $0x2c] sm:$0xf]
      %v293 = vld [vmem:[%s263 + $0x30] sm:$0xf]
      %v294 = vld [vmem:[%s263 + $0x34] sm:$0xf]
      %v295 = vld [vmem:[%s263 + $0x38] sm:$0xf]
      %v296 = vld [vmem:[%s263 + $0x3c] sm:$0xf]
      %v297 = vunpack.c.l.bf16 %v281
      %v298 = vunpack.c.l.bf16 %v282
      %v299 = vunpack.c.l.bf16 %v283
      %v300 = vunpack.c.l.bf16 %v284
      %v301 = vunpack.c.l.bf16 %v285
      %v302 = vunpack.c.l.bf16 %v286
      %v303 = vunpack.c.l.bf16 %v287
      %v304 = vunpack.c.l.bf16 %v288
      %v305 = vunpack.c.l.bf16 %v289
      %v306 = vunpack.c.l.bf16 %v290
      %v307 = vunpack.c.l.bf16 %v291
      %v308 = vunpack.c.l.bf16 %v292
      %v309 = vunpack.c.l.bf16 %v293
      %v310 = vunpack.c.l.bf16 %v294
      %v311 = vunpack.c.l.bf16 %v295
      %v312 = vunpack.c.l.bf16 %v296
      %v313 = vld [vmem:[%s0] sm:$0x1]
      %v315 = vlaneseq
      %v316 = vshrl.u32 %v315, 7
      %v317 = vsub.s32 0, %v316
      %v318 = vrot.slane %v313, %v317
      %v320 = vmul.f32 %v297, %v318
      %v321 = vmul.f32 %v298, %v318
      %v322 = vmul.f32 %v299, %v318
      %v323 = vmul.f32 %v300, %v318
      %v324 = vmul.f32 %v301, %v318
      %v325 = vmul.f32 %v302, %v318
      %v326 = vmul.f32 %v303, %v318
      %v327 = vmul.f32 %v304, %v318
      %v328 = vmul.f32 %v305, %v318
      %v329 = vmul.f32 %v306, %v318
      %v330 = vmul.f32 %v307, %v318
      %v331 = vmul.f32 %v308, %v318
      %v332 = vmul.f32 %v309, %v318
      %v333 = vmul.f32 %v310, %v318
      %v334 = vmul.f32 %v311, %v318
      %v335 = vmul.f32 %v312, %v318
      %v336 = vld [vmem:[%s1] sm:$0x1]
      %v338 = vlaneseq
      %v339 = vshrl.u32 %v338, 7
      %v340 = vsub.s32 0, %v339
      %v341 = vrot.slane %v336, %v340
      %v343 = vadd.f32 %v320, %v341
      %v344 = vadd.f32 %v321, %v341
      %v345 = vadd.f32 %v322, %v341
      %v346 = vadd.f32 %v323, %v341
      %v347 = vadd.f32 %v324, %v341
      %v348 = vadd.f32 %v325, %v341
      %v349 = vadd.f32 %v326, %v341
      %v350 = vadd.f32 %v327, %v341
      %v351 = vadd.f32 %v328, %v341
      %v352 = vadd.f32 %v329, %v341
      %v353 = vadd.f32 %v330, %v341
      %v354 = vadd.f32 %v331, %v341
      %v355 = vadd.f32 %v332, %v341
      %v356 = vadd.f32 %v333, %v341
      %v357 = vadd.f32 %v334, %v341
      %v358 = vadd.f32 %v335, %v341
      %v359 = vmax.f32 %v343, 0.0
      %v360 = vmax.f32 %v344, 0.0
      %v361 = vmax.f32 %v345, 0.0
      %v362 = vmax.f32 %v346, 0.0
      %v363 = vmax.f32 %v347, 0.0
      %v364 = vmax.f32 %v348, 0.0
      %v365 = vmax.f32 %v349, 0.0
      %v366 = vmax.f32 %v350, 0.0
      %v367 = vmax.f32 %v351, 0.0
      %v368 = vmax.f32 %v352, 0.0
      %v369 = vmax.f32 %v353, 0.0
      %v370 = vmax.f32 %v354, 0.0
      %v371 = vmax.f32 %v355, 0.0
      %v372 = vmax.f32 %v356, 0.0
      %v373 = vmax.f32 %v357, 0.0
      %v374 = vmax.f32 %v358, 0.0
      %v375 = vpack.c.bf16 %v360, %v359
      %v376 = vpack.c.bf16 %v362, %v361
      %v377 = vpack.c.bf16 %v364, %v363
      %v378 = vpack.c.bf16 %v366, %v365
      %v379 = vpack.c.bf16 %v368, %v367
      %v380 = vpack.c.bf16 %v370, %v369
      %v381 = vpack.c.bf16 %v372, %v371
      %v382 = vpack.c.bf16 %v374, %v373
      %v383 = vld [vmem:[%s3] sm:$0xf]
      %v384 = vld [vmem:[%s3 + $0x4] sm:$0xf]
      %v385 = vld [vmem:[%s3 + $0x8] sm:$0xf]
      %v386 = vld [vmem:[%s3 + $0xc] sm:$0xf]
      %v391 = vunpack.c.l.b16 %v383
      %v392 = vunpack.c.l.b16 %v384
      %v393 = vunpack.c.l.b16 %v385
      %v394 = vunpack.c.l.b16 %v386
      %v395 = vpack.c.b16 %v392, %v391
      %v396 = vpack.c.b16 %v394, %v393
      %vm399 = vcmask 261120
      %v401 = vsel %vm399, %v375, 0
      %v404 = vsel %vm399, %v376, 0
      %v407 = vsel %vm399, %v377, 0
      %v410 = vsel %vm399, %v378, 0
      %v413 = vsel %vm399, %v379, 0
      %v416 = vsel %vm399, %v380, 0
      %v419 = vsel %vm399, %v381, 0
      %v422 = vsel %vm399, %v382, 0
      %424 = vmatprep.subr.bf16.mxu0 0
      %425 = vmatpush1.bf16.msra.mxu0 0
      %426 = vmatprep.subr.bf16.mxu0 0
      %427 = vmatpush1.bf16.msra.mxu0 0
      %428 = vmatprep.subr.bf16.mxu0 0
      %429 = vmatpush1.bf16.msra.mxu0 0
      %430 = vmatprep.subr.bf16.mxu0 0
      %431 = vmatpush1.bf16.msra.mxu0 0
      %432 = vmatprep.subr.bf16.mxu0 0
      %433 = vmatpush1.bf16.msra.mxu0 0
      %434 = vmatprep.subr.bf16.mxu0 0
      %435 = vmatpush1.bf16.msra.mxu0 0
      %436 = vmatprep.subr.bf16.mxu0 0
      %437 = vmatpush1.bf16.msra.mxu0 %v396
      %438 = vmatprep.subr.bf16.mxu0 0
      %439 = vmatpush1.bf16.msra.mxu0 %v395
      %440 = vmatprep.subr.bf16.mxu0 0
      %441 = vmatpush2.bf16.msra.mxu0 0
      %442 = vmatprep.subr.bf16.mxu0 0
      %443 = vmatpush2.bf16.msra.mxu0 0
      %444 = vmatprep.subr.bf16.mxu0 0
      %445 = vmatpush2.bf16.msra.mxu0 0
      %446 = vmatprep.subr.bf16.mxu0 0
      %447 = vmatpush2.bf16.msra.mxu0 0
      %448 = vmatprep.subr.bf16.mxu0 0
      %449 = vmatpush2.bf16.msra.mxu0 0
      %450 = vmatprep.subr.bf16.mxu0 0
      %451 = vmatpush2.bf16.msra.mxu0 0
      %452 = vmatprep.subr.bf16.mxu0 0
      %453 = vmatpush2.bf16.msra.mxu0 0
      %454 = vmatprep.subr.bf16.mxu0 0
      %455 = vmatpush2.bf16.msra.mxu0 0
      %456 = vmatprep.mubr.bf16.mxu0 0
      %457 = vmatmul.mubr.bf16.gmra.mxu0 %v401
      %v458 = vpop.f32.mrf.mxu0
      %v459 = vadd.f32 0.0, %v458
      %v460 = vpop.f32.mrf.mxu0
      %v461 = vpop.f32.mrf.mxu0
      %v462 = vadd.f32 0.0, %v461
      %v463 = vpop.f32.mrf.mxu0
      %464 = vmatprep.mubr.bf16.mxu0 0
      %465 = vmatmul.mubr.bf16.gmra.mxu0 %v404
      %v466 = vpop.f32.mrf.mxu0
      %v467 = vadd.f32 0.0, %v466
      %v468 = vpop.f32.mrf.mxu0
      %v469 = vpop.f32.mrf.mxu0
      %v470 = vadd.f32 0.0, %v469
      %v471 = vpop.f32.mrf.mxu0
      %472 = vmatprep.mubr.bf16.mxu0 0
      %473 = vmatmul.mubr.bf16.gmra.mxu0 %v407
      %v474 = vpop.f32.mrf.mxu0
      %v475 = vadd.f32 0.0, %v474
      %v476 = vpop.f32.mrf.mxu0
      %v477 = vpop.f32.mrf.mxu0
      %v478 = vadd.f32 0.0, %v477
      %v479 = vpop.f32.mrf.mxu0
      %480 = vmatprep.mubr.bf16.mxu0 0
      %481 = vmatmul.mubr.bf16.gmra.mxu0 %v410
      %v482 = vpop.f32.mrf.mxu0
      %v483 = vadd.f32 0.0, %v482
      %v484 = vpop.f32.mrf.mxu0
      %v485 = vpop.f32.mrf.mxu0
      %v486 = vadd.f32 0.0, %v485
      %v487 = vpop.f32.mrf.mxu0
      %488 = vmatprep.mubr.bf16.mxu0 0
      %489 = vmatmul.mubr.bf16.gmra.mxu0 %v413
      %v490 = vpop.f32.mrf.mxu0
      %v491 = vadd.f32 0.0, %v490
      %v492 = vpop.f32.mrf.mxu0
      %v493 = vpop.f32.mrf.mxu0
      %v494 = vadd.f32 0.0, %v493
      %v495 = vpop.f32.mrf.mxu0
      %496 = vmatprep.mubr.bf16.mxu0 0
      %497 = vmatmul.mubr.bf16.gmra.mxu0 %v416
      %v498 = vpop.f32.mrf.mxu0
      %v499 = vadd.f32 0.0, %v498
      %v500 = vpop.f32.mrf.mxu0
      %v501 = vpop.f32.mrf.mxu0
      %v502 = vadd.f32 0.0, %v501
      %v503 = vpop.f32.mrf.mxu0
      %504 = vmatprep.mubr.bf16.mxu0 0
      %505 = vmatmul.mubr.bf16.gmra.mxu0 %v419
      %v506 = vpop.f32.mrf.mxu0
      %v507 = vadd.f32 0.0, %v506
      %v508 = vpop.f32.mrf.mxu0
      %v509 = vpop.f32.mrf.mxu0
      %v510 = vadd.f32 0.0, %v509
      %v511 = vpop.f32.mrf.mxu0
      %512 = vmatprep.mubr.bf16.mxu0 0
      %513 = vmatmul.mubr.bf16.gmra.mxu0 %v422
      %v514 = vpop.f32.mrf.mxu0
      %v515 = vadd.f32 0.0, %v514
      %v516 = vpop.f32.mrf.mxu0
      %v517 = vpop.f32.mrf.mxu0
      %v518 = vadd.f32 0.0, %v517
      %v519 = vpop.f32.mrf.mxu0
      %520 = vdwg.mxu0
      %v521 = vadd.f32 %v459, %v462
      %v522 = vadd.f32 %v521, %v467
      %v523 = vadd.f32 %v522, %v470
      %v524 = vadd.f32 %v523, %v475
      %v525 = vadd.f32 %v524, %v478
      %v526 = vadd.f32 %v525, %v483
      %v527 = vadd.f32 %v526, %v486
      %v528 = vadd.f32 %v527, %v491
      %v529 = vadd.f32 %v528, %v494
      %v530 = vadd.f32 %v529, %v499
      %v531 = vadd.f32 %v530, %v502
      %v532 = vadd.f32 %v531, %v507
      %v533 = vadd.f32 %v532, %v510
      %v534 = vadd.f32 %v533, %v515
      %v535 = vadd.f32 %v534, %v518
      %v536 = vrot.slane %v535, 4
      %v537 = vadd.f32 %v535, %v536
      %v538 = vrot.slane %v537, 2
      %v539 = vadd.f32 %v537, %v538
      %v540 = vrot.slane %v539, 1
      %v541 = vadd.f32 %v539, %v540
      %v542 = vmul.f32 %v459, %v459
      %v543 = vmul.f32 %v462, %v462
      %v544 = vmul.f32 %v467, %v467
      %v545 = vmul.f32 %v470, %v470
      %v546 = vmul.f32 %v475, %v475
      %v547 = vmul.f32 %v478, %v478
      %v548 = vmul.f32 %v483, %v483
      %v549 = vmul.f32 %v486, %v486
      %v550 = vmul.f32 %v491, %v491
      %v551 = vmul.f32 %v494, %v494
      %v552 = vmul.f32 %v499, %v499
      %v553 = vmul.f32 %v502, %v502
      %v554 = vmul.f32 %v507, %v507
      %v555 = vmul.f32 %v510, %v510
      %v556 = vmul.f32 %v515, %v515
      %v557 = vmul.f32 %v518, %v518
      %v558 = vadd.f32 %v542, %v543
      %v559 = vadd.f32 %v558, %v544
      %v560 = vadd.f32 %v559, %v545
      %v561 = vadd.f32 %v560, %v546
      %v562 = vadd.f32 %v561, %v547
      %v563 = vadd.f32 %v562, %v548
      %v564 = vadd.f32 %v563, %v549
      %v565 = vadd.f32 %v564, %v550
      %v566 = vadd.f32 %v565, %v551
      %v567 = vadd.f32 %v566, %v552
      %v568 = vadd.f32 %v567, %v553
      %v569 = vadd.f32 %v568, %v554
      %v570 = vadd.f32 %v569, %v555
      %v571 = vadd.f32 %v570, %v556
      %v572 = vadd.f32 %v571, %v557
      %v573 = vrot.slane %v572, 4
      %v574 = vadd.f32 %v572, %v573
      %v575 = vrot.slane %v574, 2
      %v576 = vadd.f32 %v574, %v575
      %v577 = vrot.slane %v576, 1
      %v578 = vadd.f32 %v576, %v577
      %vm579 = vcmask 1040384
      %v580 = vsel %vm579, %v541, %v578
      %p581 = scmp.eq.s32.totalorder %s22, 0
      // Predicated region
      $region37: #{bottleneck_forward.6} parent=35 // pred_check
        %p582 = pneg %p581
      $region38: #{bottleneck_forward.6} parent=35 // pred_check_branch
        %584 = sbr.rel (%p582) target = $region40
      $region39: #{bottleneck_forward.6} parent=35 // pred_region
        %585 = vst [vmem:[%s279] sm:$0x3] %v580
      $region40: #{bottleneck_forward.6} parent=35 // pred_fallthru
        _
      %p586 = scmp.gt.s32.totalorder %s22, 0
      // Predicated region
      $region41: #{bottleneck_forward.6} parent=35 // pred_check
        %p587 = pneg %p586
      $region42: #{bottleneck_forward.6} parent=35 // pred_check_branch
        %589 = sbr.rel (%p587) target = $region44
      $region43: #{bottleneck_forward.6} parent=35 // pred_region
        %v590 = vld [vmem:[%s279] sm:$0x3]
        %v591 = vadd.f32 %v590, %v580
        %592 = vst [vmem:[%s279] sm:$0x3] %v591
      $region44: #{bottleneck_forward.6} parent=35 // pred_fallthru
        _
      %v593 = vpack.c.bf16 %v462, %v459
      %v594 = vpack.c.bf16 %v470, %v467
      %v595 = vpack.c.bf16 %v478, %v475
      %v596 = vpack.c.bf16 %v486, %v483
      %v597 = vpack.c.bf16 %v494, %v491
      %v598 = vpack.c.bf16 %v502, %v499
      %v599 = vpack.c.bf16 %v510, %v507
      %v600 = vpack.c.bf16 %v518, %v515
      %v609 = vunpack.c.l.b16 %v593
      %v610 = vunpack.c.h.b16 %v593
      %v611 = vunpack.c.l.b16 %v594
      %v612 = vunpack.c.h.b16 %v594
      %v613 = vunpack.c.l.b16 %v595
      %v614 = vunpack.c.h.b16 %v595
      %v615 = vunpack.c.l.b16 %v596
      %v616 = vunpack.c.h.b16 %v596
      %v617 = vunpack.c.l.b16 %v597
      %v618 = vunpack.c.h.b16 %v597
      %v619 = vunpack.c.l.b16 %v598
      %v620 = vunpack.c.h.b16 %v598
      %v621 = vunpack.c.l.b16 %v599
      %v622 = vunpack.c.h.b16 %v599
      %v623 = vunpack.c.l.b16 %v600
      %v624 = vunpack.c.h.b16 %v600
      %v625 = vpack.c.b16 %v609, %v609
      %v626 = vpack.c.b16 %v610, %v610
      %v627 = vpack.c.b16 %v611, %v611
      %v628 = vpack.c.b16 %v612, %v612
      %v629 = vpack.c.b16 %v613, %v613
      %v630 = vpack.c.b16 %v614, %v614
      %v631 = vpack.c.b16 %v615, %v615
      %v632 = vpack.c.b16 %v616, %v616
      %v633 = vpack.c.b16 %v617, %v617
      %v634 = vpack.c.b16 %v618, %v618
      %v635 = vpack.c.b16 %v619, %v619
      %v636 = vpack.c.b16 %v620, %v620
      %v637 = vpack.c.b16 %v621, %v621
      %v638 = vpack.c.b16 %v622, %v622
      %v639 = vpack.c.b16 %v623, %v623
      %v640 = vpack.c.b16 %v624, %v624
      %657 = vst [vmem:[%s274] sm:$0xf] %v625
      %658 = vst [vmem:[%s274 + $0x4] sm:$0xf] %v626
      %659 = vst [vmem:[%s274 + $0x8] sm:$0xf] %v627
      %660 = vst [vmem:[%s274 + $0xc] sm:$0xf] %v628
      %661 = vst [vmem:[%s274 + $0x10] sm:$0xf] %v629
      %662 = vst [vmem:[%s274 + $0x14] sm:$0xf] %v630
      %663 = vst [vmem:[%s274 + $0x18] sm:$0xf] %v631
      %664 = vst [vmem:[%s274 + $0x1c] sm:$0xf] %v632
      %665 = vst [vmem:[%s274 + $0x20] sm:$0xf] %v633
      %666 = vst [vmem:[%s274 + $0x24] sm:$0xf] %v634
      %667 = vst [vmem:[%s274 + $0x28] sm:$0xf] %v635
      %668 = vst [vmem:[%s274 + $0x2c] sm:$0xf] %v636
      %669 = vst [vmem:[%s274 + $0x30] sm:$0xf] %v637
      %670 = vst [vmem:[%s274 + $0x34] sm:$0xf] %v638
      %671 = vst [vmem:[%s274 + $0x38] sm:$0xf] %v639
      %672 = vst [vmem:[%s274 + $0x3c] sm:$0xf] %v640
      %s673 = smul.u32 8, %s22
      %p674 = scmp.lt.s32.totalorder %s21, 1
      %s675 = scalar_select %p674, %s21, 1
      %p676 = scmp.lt.s32.totalorder %s673, 15
      %s677 = scalar_select %p676, %s673, 15
      %s678 = smul.addr %s677, 2
      %s679 = smul.addr %s675, 32
      %s680 = sadd.s32 %s678, %s679
      %s681 = smul.addr %s680, 4
      %s682 = scalar_lea.vmem %s4, %s681
      %p683 = scmp.lt.s32.totalorder %s21, 1
      %s684 = scalar_select %p683, %s21, 1
      %s685 = smul.addr %s684, 2
      %s686 = scalar_lea.vmem %s5, %s685
      // Predicated region
      $region45: #{bottleneck_forward.6} parent=35 // pred_check
        %p687 = pneg %p140
      $region46: #{bottleneck_forward.6} parent=35 // pred_check_branch
        %689 = sbr.rel (%p687) target = $region48
      $region47: #{bottleneck_forward.6} parent=35 // pred_region
        %s690 = smul.u32 8, %s22
      $region48: #{bottleneck_forward.6} parent=35 // pred_fallthru
        _
      // Predicated region
      $region49: #{bottleneck_forward.6} parent=35 // pred_check
        %p691 = pneg %p166
      $region50: #{bottleneck_forward.6} parent=35 // pred_check_branch
        %693 = sbr.rel (%p691) target = $region52
      $region51: #{bottleneck_forward.6} parent=35 // pred_region
        _
      $region52: #{bottleneck_forward.6} parent=35 // pred_fallthru
        _
    $region36: #{bottleneck_forward.6} parent=5 // pred_fallthru
      _
    %p694 = scmp.le.s32.totalorder 2, %s12
    // Predicated region
    $region53: #{bottleneck_forward.6} parent=5 // pred_check
      %p695 = pneg %p694
    $region54: #{bottleneck_forward.6} parent=5 // pred_check_branch
      %697 = sbr.rel (%p695) target = $region56
    $region55: #{bottleneck_forward.6} parent=5 // pred_region
      %s698 = ssub.s32 %s12, 2
      // Predicated region
      $region57: #{bottleneck_forward.6} parent=55 // pred_check
        %p699 = pneg %p146
      $region58: #{bottleneck_forward.6} parent=55 // pred_check_branch
        %701 = sbr.rel (%p699) target = $region60
      $region59: #{bottleneck_forward.6} parent=55 // pred_region
        %s702 = smul.u32 8, %s24
        %p703 = scmp.lt.s32.totalorder %s23, 1
        %s704 = scalar_select %p703, %s23, 1
        %p705 = scmp.lt.s32.totalorder %s702, 15
        %s706 = scalar_select %p705, %s702, 15
        %s707 = smul.addr %s706, 2
        %s708 = smul.addr %s704, 32
        %s709 = sadd.s32 %s707, %s708
        %s710 = smul.addr %s709, 4
        %s711 = scalar_lea.vmem %s4, %s710
      $region60: #{bottleneck_forward.6} parent=55 // pred_fallthru
        _
      // Predicated region
      $region61: #{bottleneck_forward.6} parent=55 // pred_check
        %p712 = pneg %p172
      $region62: #{bottleneck_forward.6} parent=55 // pred_check_branch
        %714 = sbr.rel (%p712) target = $region64
      $region63: #{bottleneck_forward.6} parent=55 // pred_region
        %p715 = scmp.lt.s32.totalorder %s23, 1
        %s716 = scalar_select %p715, %s23, 1
        %s717 = smul.addr %s716, 2
        %s718 = scalar_lea.vmem %s5, %s717
      $region64: #{bottleneck_forward.6} parent=55 // pred_fallthru
        _
    $region56: #{bottleneck_forward.6} parent=5 // pred_fallthru
      _
  $region6: #{bottleneck_forward.6} parent=0 // loop_footer
    %s16 = sadd.s32 1, %s12
  $region7: #{bottleneck_forward.6} parent=0 // loop_footer_branch
    %11 = sbr.rel target = $region3
  $region8: #{bottleneck_forward.6} parent=0 // loop_exit
    _

// kernel: bottleneck_forward.4
$region0: #{bottleneck_forward.4}
  #allocation0 [shape = 'u32[]', space=smem, size = 0x4, offset = 0x4, fixed_abs, tag = 'smem constant byte address 0x4 - core index']
  #allocation1 [shape = 'u32[144,128]{1,0:T(1,128)}', space=vmem, size = 0x12000, scoped, tag = 'internal scratch']
  %s0 = inlined_call_operand.vmem [shape: f32[2,16,16,128], index: 0, kind: input, shape index: {}]
  %s1 = inlined_call_operand.vmem [shape: bf16[128,32], index: 1, kind: input, shape index: {}]
  %s2 = inlined_call_operand.vmem [shape: bf16[2,16,16,32], index: 2, kind: output, shape index: {0}]
  %s3 = inlined_call_operand.vmem [shape: f32[2,2,32], index: 3, kind: output, shape index: {1}]
  %4 = xla_tuple %s2, %s3
  %s5 = sld [smem:[#allocation0]]
  $region57: #{bottleneck_forward.4} parent=0
    _
  %s7 = ssub.s32 1, %s5
  %s8 = scalar_select 0, %s7, %s5
  loop: start=0, step=1, limit=6
  $region2: #{bottleneck_forward.4} parent=0 // loop_pre_header
    _
  $region3: #{bottleneck_forward.4} parent=0 // loop_header
    %s10 = sphi 0, %s14
    %p11 = scmp.ge.s32.totalorder %s10, 6
    %s17 = sphi 0, %s29
    %s18 = sphi 0, %s25
    %s19 = sphi 0, %s17
    %s20 = sphi 0, %s18
    %s21 = sphi 0, %s19
    %s22 = sphi 0, %s20
    %s34 = sphi 0, %s36
    %s37 = sphi 0, %s34
    %s38 = sphi 0, %s37
    %s54 = sphi 0, %s38
    %s58 = sphi 0, %s58
    %s60 = sphi 0, %s58
    %s61 = sphi 0, %s60
    %s75 = sphi 0, %s61
    %s83 = sphi 0, %s85
    %s86 = sphi 0, %s83
    %s87 = sphi 0, %s86
    %s103 = sphi 0, %s87
    %s109 = sphi 0, %s111
    %s112 = sphi 0, %s109
    %s113 = sphi 0, %s112
    %s129 = sphi 0, %s113
  $region4: #{bottleneck_forward.4} parent=0 // loop_header_branch
    %13 = sbr.rel (%p11) target = $region8
  $region5: #{bottleneck_forward.4} parent=0 // loop_body
    %s15 = ssub.s32 %s10, 1
    %s16 = ssub.s32 %s10, 2
    %s23 = sadd.s32 1, %s18
    %p24 = scmp.ge.s32.totalorder %s23, 2
    %s25 = scalar_select %p24, 0, %s23
    %s26 = sadd.s32 1, %s17
    %s27 = scalar_select %p24, %s26, %s17
    %p28 = scmp.ge.s32.totalorder %s27, 2
    %s29 = scalar_select %p28, 0, %s27
    %s30 = ssub.s32 %s17, %s29
    %s31 = ssub.s32 %s18, %s25
    %s32 = sor.u32 %s30, %s31
    %p33 = scmp.eq.s32.totalorder %s32, 0
    %s35 = sadd.s32 %s34, 1
    %s36 = scalar_select %p33, %s34, %s35
    %p39 = pneg %p33
    %p40 = scmp.eq.s32.totalorder %s10, 3
    %p41 = por %p39, %p40
    %p42 = scmp.ne.s32.totalorder %s34, %s37
    %p43 = scmp.eq.s32.totalorder %s10, 0
    %p44 = por %p42, %p43
    %p45 = scmp.ne.s32.totalorder %s34, %s37
    %p46 = scmp.eq.s32.totalorder %s15, 3
    %p47 = por %p45, %p46
    %p48 = scmp.ne.s32.totalorder %s37, %s38
    %p49 = scmp.eq.s32.totalorder %s15, 0
    %p50 = por %p48, %p49
    %p51 = scmp.ne.s32.totalorder %s37, %s38
    %p52 = scmp.eq.s32.totalorder %s16, 3
    %p53 = por %p51, %p52
    %p55 = scmp.ne.s32.totalorder %s38, %s54
    %p56 = scmp.eq.s32.totalorder %s16, 0
    %p57 = por %p55, %p56
    %s59 = sadd.s32 %s58, 1
    %p62 = scmp.eq.s32.totalorder %s10, 3
    %p63 = scmp.ne.s32.totalorder %s58, %s60
    %p64 = scmp.eq.s32.totalorder %s10, 0
    %p65 = por %p63, %p64
    %p66 = scmp.ne.s32.totalorder %s58, %s60
    %p67 = scmp.eq.s32.totalorder %s15, 3
    %p68 = por %p66, %p67
    %p69 = scmp.ne.s32.totalorder %s60, %s61
    %p70 = scmp.eq.s32.totalorder %s15, 0
    %p71 = por %p69, %p70
    %p72 = scmp.ne.s32.totalorder %s60, %s61
    %p73 = scmp.eq.s32.totalorder %s16, 3
    %p74 = por %p72, %p73
    %p76 = scmp.ne.s32.totalorder %s61, %s75
    %p77 = scmp.eq.s32.totalorder %s16, 0
    %p78 = por %p76, %p77
    %s79 = ssub.s32 %s17, %s29
    %s80 = ssub.s32 %s18, %s25
    %s81 = sor.u32 %s79, %s80
    %p82 = scmp.eq.s32.totalorder %s81, 0
    %s84 = sadd.s32 %s83, 1
    %s85 = scalar_select %p82, %s83, %s84
    %p88 = pneg %p82
    %p89 = scmp.eq.s32.totalorder %s10, 3
    %p90 = por %p88, %p89
    %p91 = scmp.ne.s32.totalorder %s83, %s86
    %p92 = scmp.eq.s32.totalorder %s10, 0
    %p93 = por %p91, %p92
    %p94 = scmp.ne.s32.totalorder %s83, %s86
    %p95 = scmp.eq.s32.totalorder %s15, 3
    %p96 = por %p94, %p95
    %p97 = scmp.ne.s32.totalorder %s86, %s87
    %p98 = scmp.eq.s32.totalorder %s15, 0
    %p99 = por %p97, %p98
    %p100 = scmp.ne.s32.totalorder %s86, %s87
    %p101 = scmp.eq.s32.totalorder %s16, 3
    %p102 = por %p100, %p101
    %p104 = scmp.ne.s32.totalorder %s87, %s103
    %p105 = scmp.eq.s32.totalorder %s16, 0
    %p106 = por %p104, %p105
    %s107 = ssub.s32 %s17, %s29
    %p108 = scmp.eq.s32.totalorder %s107, 0
    %s110 = sadd.s32 %s109, 1
    %s111 = scalar_select %p108, %s109, %s110
    %p114 = pneg %p108
    %p115 = scmp.eq.s32.totalorder %s10, 3
    %p116 = por %p114, %p115
    %p117 = scmp.ne.s32.totalorder %s109, %s112
    %p118 = scmp.eq.s32.totalorder %s10, 0
    %p119 = por %p117, %p118
    %p120 = scmp.ne.s32.totalorder %s109, %s112
    %p121 = scmp.eq.s32.totalorder %s15, 3
    %p122 = por %p120, %p121
    %p123 = scmp.ne.s32.totalorder %s112, %s113
    %p124 = scmp.eq.s32.totalorder %s15, 0
    %p125 = por %p123, %p124
    %p126 = scmp.ne.s32.totalorder %s112, %s113
    %p127 = scmp.eq.s32.totalorder %s16, 3
    %p128 = por %p126, %p127
    %p130 = scmp.ne.s32.totalorder %s113, %s129
    %p131 = scmp.eq.s32.totalorder %s16, 0
    %p132 = por %p130, %p131
    %p133 = scmp.le.s32.totalorder 1, %s10
    %p134 = scmp.lt.s32.totalorder %s10, 5
    %p135 = pnand %p133, %p134
    %p136 = pneg %p135
    // Predicated region
    $region9: #{bottleneck_forward.4} parent=5 // pred_check
      _
    $region10: #{bottleneck_forward.4} parent=5 // pred_check_branch
      %138 = sbr.rel (%p135) target = $region12
    $region11: #{bottleneck_forward.4} parent=5 // pred_region
      %s139 = ssub.s32 %s10, 1
      // Predicated region
      $region13: #{bottleneck_forward.4} parent=11 // pred_check
        %p140 = pneg %p71
      $region14: #{bottleneck_forward.4} parent=11 // pred_check_branch
        %142 = sbr.rel (%p140) target = $region16
      $region15: #{bottleneck_forward.4} parent=11 // pred_region
        _
      $region16: #{bottleneck_forward.4} parent=11 // pred_fallthru
        _
    $region12: #{bottleneck_forward.4} parent=5 // pred_fallthru
      _
    %p143 = scmp.lt.s32.totalorder %s10, 4
    // Predicated region
    $region17: #{bottleneck_forward.4} parent=5 // pred_check
      %p144 = pneg %p143
    $region18: #{bottleneck_forward.4} parent=5 // pred_check_branch
      %146 = sbr.rel (%p144) target = $region20
    $region19: #{bottleneck_forward.4} parent=5 // pred_region
      // Predicated region
      $region21: #{bottleneck_forward.4} parent=19 // pred_check
        %p147 = pneg %p44
      $region22: #{bottleneck_forward.4} parent=19 // pred_check_branch
        %149 = sbr.rel (%p147) target = $region24
      $region23: #{bottleneck_forward.4} parent=19 // pred_region
        %s150 = smul.u32 8, %s18
        %p151 = scmp.lt.s32.totalorder %s17, 1
        %s152 = scalar_select %p151, %s17, 1
        %p153 = scmp.lt.s32.totalorder %s150, 15
        %s154 = scalar_select %p153, %s150, 15
        %s155 = smul.addr %s154, 2
        %s156 = smul.addr %s152, 32
        %s157 = sadd.s32 %s155, %s156
        %s158 = smul.addr %s157, 8
        %s159 = scalar_lea.vmem %s0, %s158
        %s160 = smul.u32 8, %s18
      $region24: #{bottleneck_forward.4} parent=19 // pred_fallthru
        _
    $region20: #{bottleneck_forward.4} parent=5 // pred_fallthru
      _
    %p161 = scmp.le.s32.totalorder 1, %s10
    %p162 = scmp.lt.s32.totalorder %s10, 5
    %p163 = pnand %p161, %p162
    %p164 = pneg %p163
    // Predicated region
    $region25: #{bottleneck_forward.4} parent=5 // pred_check
      _
    $region26: #{bottleneck_forward.4} parent=5 // pred_check_branch
      %166 = sbr.rel (%p163) target = $region28
    $region27: #{bottleneck_forward.4} parent=5 // pred_region
      %s167 = ssub.s32 %s10, 1
      %s168 = smul.u32 8, %s20
      %p169 = scmp.lt.s32.totalorder %s19, 1
      %s170 = scalar_select %p169, %s19, 1
      %p171 = scmp.lt.s32.totalorder %s168, 15
      %s172 = scalar_select %p171, %s168, 15
      %s173 = smul.addr %s172, 2
      %s174 = smul.addr %s170, 32
      %s175 = sadd.s32 %s173, %s174
      %s176 = smul.addr %s175, 8
      %s177 = scalar_lea.vmem %s0, %s176
      %p178 = pneg %p50
      %p179 = pneg %p47
      %p180 = pneg %p71
      %p181 = pneg %p68
      %p182 = pneg %p99
      %p183 = pneg %p96
      %s184 = smul.u32 8, %s20
      %p185 = scmp.lt.s32.totalorder %s19, 1
      %s186 = scalar_select %p185, %s19, 1
      %p187 = scmp.lt.s32.totalorder %s184, 15
      %s188 = scalar_select %p187, %s184, 15
      %s189 = smul.addr %s188, 2
      %s190 = smul.addr %s186, 32
      %s191 = sadd.s32 %s189, %s190
      %s192 = smul.addr %s191, 4
      %s193 = scalar_lea.vmem %s2, %s192
      %p194 = pneg %p125
      %p195 = pneg %p122
      %p196 = scmp.lt.s32.totalorder %s19, 1
      %s197 = scalar_select %p196, %s19, 1
      %s198 = smul.addr %s197, 2
      %s199 = scalar_lea.vmem %s3, %s198
      %s200 = smul.u32 8, %s20
      %p201 = scmp.lt.s32.totalorder %s19, 1
      %s202 = scalar_select %p201, %s19, 1
      %p203 = scmp.lt.s32.totalorder %s200, 15
      %s204 = scalar_select %p203, %s200, 15
      %s205 = smul.addr %s204, 2
      %s206 = smul.addr %s202, 32
      %s207 = sadd.s32 %s205, %s206
      %s208 = smul.addr %s207, 8
      %s209 = scalar_lea.vmem %s0, %s208
      %s210 = smul.u32 8, %s20
      %s211 = smul.u32 8, %s20
      %p212 = scmp.lt.s32.totalorder %s19, 1
      %s213 = scalar_select %p212, %s19, 1
      %p214 = scmp.lt.s32.totalorder %s211, 15
      %s215 = scalar_select %p214, %s211, 15
      %s216 = smul.addr %s215, 2
      %s217 = smul.addr %s213, 32
      %s218 = sadd.s32 %s216, %s217
      %s219 = smul.addr %s218, 4
      %s220 = scalar_lea.vmem %s2, %s219
      %s221 = smul.u32 8, %s20
      %p222 = scmp.lt.s32.totalorder %s19, 1
      %s223 = scalar_select %p222, %s19, 1
      %s224 = smul.addr %s223, 2
      %s225 = scalar_lea.vmem %s3, %s224
      %v227 = vld [vmem:[%s209] sm:$0xff]
      %v228 = vld [vmem:[%s209 + $0x8] sm:$0xff]
      %v229 = vld [vmem:[%s209 + $0x10] sm:$0xff]
      %v230 = vld [vmem:[%s209 + $0x18] sm:$0xff]
      %v231 = vld [vmem:[%s209 + $0x20] sm:$0xff]
      %v232 = vld [vmem:[%s209 + $0x28] sm:$0xff]
      %v233 = vld [vmem:[%s209 + $0x30] sm:$0xff]
      %v234 = vld [vmem:[%s209 + $0x38] sm:$0xff]
      %v235 = vld [vmem:[%s209 + $0x40] sm:$0xff]
      %v236 = vld [vmem:[%s209 + $0x48] sm:$0xff]
      %v237 = vld [vmem:[%s209 + $0x50] sm:$0xff]
      %v238 = vld [vmem:[%s209 + $0x58] sm:$0xff]
      %v239 = vld [vmem:[%s209 + $0x60] sm:$0xff]
      %v240 = vld [vmem:[%s209 + $0x68] sm:$0xff]
      %v241 = vld [vmem:[%s209 + $0x70] sm:$0xff]
      %v242 = vld [vmem:[%s209 + $0x78] sm:$0xff]
      %v243 = vpack.c.bf16 %v228, %v227
      %v244 = vpack.c.bf16 %v230, %v229
      %v245 = vpack.c.bf16 %v232, %v231
      %v246 = vpack.c.bf16 %v234, %v233
      %v247 = vpack.c.bf16 %v236, %v235
      %v248 = vpack.c.bf16 %v238, %v237
      %v249 = vpack.c.bf16 %v240, %v239
      %v250 = vpack.c.bf16 %v242, %v241
      %v251 = vld [vmem:[%s1] sm:$0xf]
      %v252 = vld [vmem:[%s1 + $0x4] sm:$0xf]
      %v253 = vld [vmem:[%s1 + $0x8] sm:$0xf]
      %v254 = vld [vmem:[%s1 + $0xc] sm:$0xf]
      %v255 = vld [vmem:[%s1 + $0x10] sm:$0xf]
      %v256 = vld [vmem:[%s1 + $0x14] sm:$0xf]
      %v257 = vld [vmem:[%s1 + $0x18] sm:$0xf]
      %v258 = vld [vmem:[%s1 + $0x1c] sm:$0xf]
      %v259 = vld [vmem:[%s1 + $0x20] sm:$0xf]
      %v260 = vld [vmem:[%s1 + $0x24] sm:$0xf]
      %v261 = vld [vmem:[%s1 + $0x28] sm:$0xf]
      %v262 = vld [vmem:[%s1 + $0x2c] sm:$0xf]
      %v263 = vld [vmem:[%s1 + $0x30] sm:$0xf]
      %v264 = vld [vmem:[%s1 + $0x34] sm:$0xf]
      %v265 = vld [vmem:[%s1 + $0x38] sm:$0xf]
      %v266 = vld [vmem:[%s1 + $0x3c] sm:$0xf]
      %v283 = vunpack.c.l.b16 %v251
      %v284 = vunpack.c.l.b16 %v252
      %v285 = vunpack.c.l.b16 %v253
      %v286 = vunpack.c.l.b16 %v254
      %v287 = vunpack.c.l.b16 %v255
      %v288 = vunpack.c.l.b16 %v256
      %v289 = vunpack.c.l.b16 %v257
      %v290 = vunpack.c.l.b16 %v258
      %v291 = vunpack.c.l.b16 %v259
      %v292 = vunpack.c.l.b16 %v260
      %v293 = vunpack.c.l.b16 %v261
      %v294 = vunpack.c.l.b16 %v262
      %v295 = vunpack.c.l.b16 %v263
      %v296 = vunpack.c.l.b16 %v264
      %v297 = vunpack.c.l.b16 %v265
      %v298 = vunpack.c.l.b16 %v266
      %v299 = vpack.c.b16 %v284, %v283
      %v300 = vpack.c.b16 %v286, %v285
      %v301 = vpack.c.b16 %v288, %v287
      %v302 = vpack.c.b16 %v290, %v289
      %v303 = vpack.c.b16 %v292, %v291
      %v304 = vpack.c.b16 %v294, %v293
      %v305 = vpack.c.b16 %v296, %v295
      %v306 = vpack.c.b16 %v298, %v297
      %315 = vmatprep.subr.bf16.mxu0 0
      %316 = vmatpush1.bf16.msra.mxu0 %v306
      %317 = vmatprep.subr.bf16.mxu0 0
      %318 = vmatpush1.bf16.msra.mxu0 %v305
      %319 = vmatprep.subr.bf16.mxu0 0
      %320 = vmatpush1.bf16.msra.mxu0 %v304
      %321 = vmatprep.subr.bf16.mxu0 0
      %322 = vmatpush1.bf16.msra.mxu0 %v303
      %323 = vmatprep.subr.bf16.mxu0 0
      %324 = vmatpush1.bf16.msra.mxu0 %v302
      %325 = vmatprep.subr.bf16.mxu0 0
      %326 = vmatpush1.bf16.msra.mxu0 %v301
      %327 = vmatprep.subr.bf16.mxu0 0
      %328 = vmatpush1.bf16.msra.mxu0 %v300
      %329 = vmatprep.subr.bf16.mxu0 0
      %330 = vmatpush1.bf16.msra.mxu0 %v299
      %331 = vmatprep.subr.bf16.mxu0 0
      %332 = vmatpush2.bf16.msra.mxu0 0
      %333 = vmatprep.subr.bf16.mxu0 0
      %334 = vmatpush2.bf16.msra.mxu0 0
      %335 = vmatprep.subr.bf16.mxu0 0
      %336 = vmatpush2.bf16.msra.mxu0 0
      %337 = vmatprep.subr.bf16.mxu0 0
      %338 = vmatpush2.bf16.msra.mxu0 0
      %339 = vmatprep.subr.bf16.mxu0 0
      %340 = vmatpush2.bf16.msra.mxu0 0
      %341 = vmatprep.subr.bf16.mxu0 0
      %342 = vmatpush2.bf16.msra.mxu0 0
      %343 = vmatprep.subr.bf16.mxu0 0
      %344 = vmatpush2.bf16.msra.mxu0 0
      %345 = vmatprep.subr.bf16.mxu0 0
      %346 = vmatpush2.bf16.msra.mxu0 0
      %347 = vmatprep.mubr.bf16.mxu0 0
      %348 = vmatmul.mubr.bf16.gmra.mxu0 %v243
      %v349 = vpop.f32.mrf.mxu0
      %v350 = vadd.f32 0.0, %v349
      %v351 = vpop.f32.mrf.mxu0
      %v352 = vpop.f32.mrf.mxu0
      %v353 = vadd.f32 0.0, %v352
      %v354 = vpop.f32.mrf.mxu0
      %355 = vmatprep.mubr.bf16.mxu0 0
      %356 = vmatmul.mubr.bf16.gmra.mxu0 %v244
      %v357 = vpop.f32.mrf.mxu0
      %v358 = vadd.f32 0.0, %v357
      %v359 = vpop.f32.mrf.mxu0
      %v360 = vpop.f32.mrf.mxu0
      %v361 = vadd.f32 0.0, %v360
      %v362 = vpop.f32.mrf.mxu0
      %363 = vmatprep.mubr.bf16.mxu0 0
      %364 = vmatmul.mubr.bf16.gmra.mxu0 %v245
      %v365 = vpop.f32.mrf.mxu0
      %v366 = vadd.f32 0.0, %v365
      %v367 = vpop.f32.mrf.mxu0
      %v368 = vpop.f32.mrf.mxu0
      %v369 = vadd.f32 0.0, %v368
      %v370 = vpop.f32.mrf.mxu0
      %371 = vmatprep.mubr.bf16.mxu0 0
      %372 = vmatmul.mubr.bf16.gmra.mxu0 %v246
      %v373 = vpop.f32.mrf.mxu0
      %v374 = vadd.f32 0.0, %v373
      %v375 = vpop.f32.mrf.mxu0
      %v376 = vpop.f32.mrf.mxu0
      %v377 = vadd.f32 0.0, %v376
      %v378 = vpop.f32.mrf.mxu0
      %379 = vmatprep.mubr.bf16.mxu0 0
      %380 = vmatmul.mubr.bf16.gmra.mxu0 %v247
      %v381 = vpop.f32.mrf.mxu0
      %v382 = vadd.f32 0.0, %v381
      %v383 = vpop.f32.mrf.mxu0
      %v384 = vpop.f32.mrf.mxu0
      %v385 = vadd.f32 0.0, %v384
      %v386 = vpop.f32.mrf.mxu0
      %387 = vmatprep.mubr.bf16.mxu0 0
      %388 = vmatmul.mubr.bf16.gmra.mxu0 %v248
      %v389 = vpop.f32.mrf.mxu0
      %v390 = vadd.f32 0.0, %v389
      %v391 = vpop.f32.mrf.mxu0
      %v392 = vpop.f32.mrf.mxu0
      %v393 = vadd.f32 0.0, %v392
      %v394 = vpop.f32.mrf.mxu0
      %395 = vmatprep.mubr.bf16.mxu0 0
      %396 = vmatmul.mubr.bf16.gmra.mxu0 %v249
      %v397 = vpop.f32.mrf.mxu0
      %v398 = vadd.f32 0.0, %v397
      %v399 = vpop.f32.mrf.mxu0
      %v400 = vpop.f32.mrf.mxu0
      %v401 = vadd.f32 0.0, %v400
      %v402 = vpop.f32.mrf.mxu0
      %403 = vmatprep.mubr.bf16.mxu0 0
      %404 = vmatmul.mubr.bf16.gmra.mxu0 %v250
      %v405 = vpop.f32.mrf.mxu0
      %v406 = vadd.f32 0.0, %v405
      %v407 = vpop.f32.mrf.mxu0
      %v408 = vpop.f32.mrf.mxu0
      %v409 = vadd.f32 0.0, %v408
      %v410 = vpop.f32.mrf.mxu0
      %411 = vdwg.mxu0
      %vm412 = vcmask 261120
      %v413 = vsel %vm412, %v350, 0.0
      %v414 = vsel %vm412, %v353, 0.0
      %v415 = vadd.f32 %v413, %v414
      %v416 = vsel %vm412, %v358, 0.0
      %v417 = vadd.f32 %v415, %v416
      %v418 = vsel %vm412, %v361, 0.0
      %v419 = vadd.f32 %v417, %v418
      %v420 = vsel %vm412, %v366, 0.0
      %v421 = vadd.f32 %v419, %v420
      %v422 = vsel %vm412, %v369, 0.0
      %v423 = vadd.f32 %v421, %v422
      %v424 = vsel %vm412, %v374, 0.0
      %v425 = vadd.f32 %v423, %v424
      %v426 = vsel %vm412, %v377, 0.0
      %v427 = vadd.f32 %v425, %v426
      %v428 = vsel %vm412, %v382, 0.0
      %v429 = vadd.f32 %v427, %v428
      %v430 = vsel %vm412, %v385, 0.0
      %v431 = vadd.f32 %v429, %v430
      %v432 = vsel %vm412, %v390, 0.0
      %v433 = vadd.f32 %v431, %v432
      %v434 = vsel %vm412, %v393, 0.0
      %v435 = vadd.f32 %v433, %v434
      %v436 = vsel %vm412, %v398, 0.0
      %v437 = vadd.f32 %v435, %v436
      %v438 = vsel %vm412, %v401, 0.0
      %v439 = vadd.f32 %v437, %v438
      %v440 = vsel %vm412, %v406, 0.0
      %v441 = vadd.f32 %v439, %v440
      %v442 = vsel %vm412, %v409, 0.0
      %v443 = vadd.f32 %v441, %v442
      %v444 = vrot.slane %v443, 4
      %v445 = vadd.f32 %v443, %v444
      %v446 = vrot.slane %v445, 2
      %v447 = vadd.f32 %v445, %v446
      %v448 = vrot.slane %v447, 1
      %v449 = vadd.f32 %v447, %v448
      %v450 = vmul.f32 %v350, %v350
      %v451 = vmul.f32 %v353, %v353
      %v452 = vmul.f32 %v358, %v358
      %v453 = vmul.f32 %v361, %v361
      %v454 = vmul.f32 %v366, %v366
      %v455 = vmul.f32 %v369, %v369
      %v456 = vmul.f32 %v374, %v374
      %v457 = vmul.f32 %v377, %v377
      %v458 = vmul.f32 %v382, %v382
      %v459 = vmul.f32 %v385, %v385
      %v460 = vmul.f32 %v390, %v390
      %v461 = vmul.f32 %v393, %v393
      %v462 = vmul.f32 %v398, %v398
      %v463 = vmul.f32 %v401, %v401
      %v464 = vmul.f32 %v406, %v406
      %v465 = vmul.f32 %v409, %v409
      %v466 = vsel %vm412, %v450, 0.0
      %v467 = vsel %vm412, %v451, 0.0
      %v468 = vadd.f32 %v466, %v467
      %v469 = vsel %vm412, %v452, 0.0
      %v470 = vadd.f32 %v468, %v469
      %v471 = vsel %vm412, %v453, 0.0
      %v472 = vadd.f32 %v470, %v471
      %v473 = vsel %vm412, %v454, 0.0
      %v474 = vadd.f32 %v472, %v473
      %v475 = vsel %vm412, %v455, 0.0
      %v476 = vadd.f32 %v474, %v475
      %v477 = vsel %vm412, %v456, 0.0
      %v478 = vadd.f32 %v476, %v477
      %v479 = vsel %vm412, %v457, 0.0
      %v480 = vadd.f32 %v478, %v479
      %v481 = vsel %vm412, %v458, 0.0
      %v482 = vadd.f32 %v480, %v481
      %v483 = vsel %vm412, %v459, 0.0
      %v484 = vadd.f32 %v482, %v483
      %v485 = vsel %vm412, %v460, 0.0
      %v486 = vadd.f32 %v484, %v485
      %v487 = vsel %vm412, %v461, 0.0
      %v488 = vadd.f32 %v486, %v487
      %v489 = vsel %vm412, %v462, 0.0
      %v490 = vadd.f32 %v488, %v489
      %v491 = vsel %vm412, %v463, 0.0
      %v492 = vadd.f32 %v490, %v491
      %v493 = vsel %vm412, %v464, 0.0
      %v494 = vadd.f32 %v492, %v493
      %v495 = vsel %vm412, %v465, 0.0
      %v496 = vadd.f32 %v494, %v495
      %v497 = vrot.slane %v496, 4
      %v498 = vadd.f32 %v496, %v497
      %v499 = vrot.slane %v498, 2
      %v500 = vadd.f32 %v498, %v499
      %v501 = vrot.slane %v500, 1
      %v502 = vadd.f32 %v500, %v501
      %vm503 = vcmask 1040384
      %v504 = vsel %vm503, %v449, %v502
      %p505 = scmp.eq.s32.totalorder %s20, 0
      // Predicated region
      $region29: #{bottleneck_forward.4} parent=27 // pred_check
        %p506 = pneg %p505
      $region30: #{bottleneck_forward.4} parent=27 // pred_check_branch
        %508 = sbr.rel (%p506) target = $region32
      $region31: #{bottleneck_forward.4} parent=27 // pred_region
        %vm509 = vcmask 254976
        %510 = vst.msk [vmem:[%s225] sm:$0x3] %vm509, %v504
      $region32: #{bottleneck_forward.4} parent=27 // pred_fallthru
        _
      %p511 = scmp.gt.s32.totalorder %s20, 0
      // Predicated region
      $region33: #{bottleneck_forward.4} parent=27 // pred_check
        %p512 = pneg %p511
      $region34: #{bottleneck_forward.4} parent=27 // pred_check_branch
        %514 = sbr.rel (%p512) target = $region36
      $region35: #{bottleneck_forward.4} parent=27 // pred_region
        %v515 = vld [vmem:[%s225] sm:$0x3]
        %v516 = vadd.f32 %v515, %v504
        %vm517 = vcmask 254976
        %518 = vst.msk [vmem:[%s225] sm:$0x3] %vm517, %v516
      $region36: #{bottleneck_forward.4} parent=27 // pred_fallthru
        _
      %v519 = vpack.c.bf16 %v353, %v350
      %v520 = vpack.c.bf16 %v361, %v358
      %v521 = vpack.c.bf16 %v369, %v366
      %v522 = vpack.c.bf16 %v377, %v374
      %v523 = vpack.c.bf16 %v385, %v382
      %v524 = vpack.c.bf16 %v393, %v390
      %v525 = vpack.c.bf16 %v401, %v398
      %v526 = vpack.c.bf16 %v409, %v406
      %v535 = vunpack.c.l.b16 %v519
      %v536 = vunpack.c.h.b16 %v519
      %v537 = vunpack.c.l.b16 %v520
      %v538 = vunpack.c.h.b16 %v520
      %v539 = vunpack.c.l.b16 %v521
      %v540 = vunpack.c.h.b16 %v521
      %v541 = vunpack.c.l.b16 %v522
      %v542 = vunpack.c.h.b16 %v522
      %v543 = vunpack.c.l.b16 %v523
      %v544 = vunpack.c.h.b16 %v523
      %v545 = vunpack.c.l.b16 %v524
      %v546 = vunpack.c.h.b16 %v524
      %v547 = vunpack.c.l.b16 %v525
      %v548 = vunpack.c.h.b16 %v525
      %v549 = vunpack.c.l.b16 %v526
      %v550 = vunpack.c.h.b16 %v526
      %v551 = vpack.c.b16 %v535, %v535
      %v552 = vpack.c.b16 %v536, %v536
      %v553 = vpack.c.b16 %v537, %v537
      %v554 = vpack.c.b16 %v538, %v538
      %v555 = vpack.c.b16 %v539, %v539
      %v556 = vpack.c.b16 %v540, %v540
      %v557 = vpack.c.b16 %v541, %v541
      %v558 = vpack.c.b16 %v542, %v542
      %v559 = vpack.c.b16 %v543, %v543
      %v560 = vpack.c.b16 %v544, %v544
      %v561 = vpack.c.b16 %v545, %v545
      %v562 = vpack.c.b16 %v546, %v546
      %v563 = vpack.c.b16 %v547, %v547
      %v564 = vpack.c.b16 %v548, %v548
      %v565 = vpack.c.b16 %v549, %v549
      %v566 = vpack.c.b16 %v550, %v550
      %vm583 = vcmask 257024
      %584 = vst.msk [vmem:[%s220] sm:$0xf] %vm583, %v551
      %585 = vst.msk [vmem:[%s220 + $0x4] sm:$0xf] %vm583, %v552
      %586 = vst.msk [vmem:[%s220 + $0x8] sm:$0xf] %vm583, %v553
      %587 = vst.msk [vmem:[%s220 + $0xc] sm:$0xf] %vm583, %v554
      %588 = vst.msk [vmem:[%s220 + $0x10] sm:$0xf] %vm583, %v555
      %589 = vst.msk [vmem:[%s220 + $0x14] sm:$0xf] %vm583, %v556
      %590 = vst.msk [vmem:[%s220 + $0x18] sm:$0xf] %vm583, %v557
      %591 = vst.msk [vmem:[%s220 + $0x1c] sm:$0xf] %vm583, %v558
      %592 = vst.msk [vmem:[%s220 + $0x20] sm:$0xf] %vm583, %v559
      %593 = vst.msk [vmem:[%s220 + $0x24] sm:$0xf] %vm583, %v560
      %594 = vst.msk [vmem:[%s220 + $0x28] sm:$0xf] %vm583, %v561
      %595 = vst.msk [vmem:[%s220 + $0x2c] sm:$0xf] %vm583, %v562
      %596 = vst.msk [vmem:[%s220 + $0x30] sm:$0xf] %vm583, %v563
      %597 = vst.msk [vmem:[%s220 + $0x34] sm:$0xf] %vm583, %v564
      %598 = vst.msk [vmem:[%s220 + $0x38] sm:$0xf] %vm583, %v565
      %599 = vst.msk [vmem:[%s220 + $0x3c] sm:$0xf] %vm583, %v566
      %s600 = smul.u32 8, %s20
      %p601 = scmp.lt.s32.totalorder %s19, 1
      %s602 = scalar_select %p601, %s19, 1
      %p603 = scmp.lt.s32.totalorder %s600, 15
      %s604 = scalar_select %p603, %s600, 15
      %s605 = smul.addr %s604, 2
      %s606 = smul.addr %s602, 32
      %s607 = sadd.s32 %s605, %s606
      %s608 = smul.addr %s607, 4
      %s609 = scalar_lea.vmem %s2, %s608
      %p610 = scmp.lt.s32.totalorder %s19, 1
      %s611 = scalar_select %p610, %s19, 1
      %s612 = smul.addr %s611, 2
      %s613 = scalar_lea.vmem %s3, %s612
      // Predicated region
      $region37: #{bottleneck_forward.4} parent=27 // pred_check
        %p614 = pneg %p96
      $region38: #{bottleneck_forward.4} parent=27 // pred_check_branch
        %616 = sbr.rel (%p614) target = $region40
      $region39: #{bottleneck_forward.4} parent=27 // pred_region
        %s617 = smul.u32 8, %s20
      $region40: #{bottleneck_forward.4} parent=27 // pred_fallthru
        _
      // Predicated region
      $region41: #{bottleneck_forward.4} parent=27 // pred_check
        %p618 = pneg %p122
      $region42: #{bottleneck_forward.4} parent=27 // pred_check_branch
        %620 = sbr.rel (%p618) target = $region44
      $region43: #{bottleneck_forward.4} parent=27 // pred_region
        _
      $region44: #{bottleneck_forward.4} parent=27 // pred_fallthru
        _
    $region28: #{bottleneck_forward.4} parent=5 // pred_fallthru
      _
    %p621 = scmp.le.s32.totalorder 2, %s10
    // Predicated region
    $region45: #{bottleneck_forward.4} parent=5 // pred_check
      %p622 = pneg %p621
    $region46: #{bottleneck_forward.4} parent=5 // pred_check_branch
      %624 = sbr.rel (%p622) target = $region48
    $region47: #{bottleneck_forward.4} parent=5 // pred_region
      %s625 = ssub.s32 %s10, 2
      // Predicated region
      $region49: #{bottleneck_forward.4} parent=47 // pred_check
        %p626 = pneg %p102
      $region50: #{bottleneck_forward.4} parent=47 // pred_check_branch
        %628 = sbr.rel (%p626) target = $region52
      $region51: #{bottleneck_forward.4} parent=47 // pred_region
        %s629 = smul.u32 8, %s22
        %p630 = scmp.lt.s32.totalorder %s21, 1
        %s631 = scalar_select %p630, %s21, 1
        %p632 = scmp.lt.s32.totalorder %s629, 15
        %s633 = scalar_select %p632, %s629, 15
        %s634 = smul.addr %s633, 2
        %s635 = smul.addr %s631, 32
        %s636 = sadd.s32 %s634, %s635
        %s637 = smul.addr %s636, 4
        %s638 = scalar_lea.vmem %s2, %s637
      $region52: #{bottleneck_forward.4} parent=47 // pred_fallthru
        _
      // Predicated region
      $region53: #{bottleneck_forward.4} parent=47 // pred_check
        %p639 = pneg %p128
      $region54: #{bottleneck_forward.4} parent=47 // pred_check_branch
        %641 = sbr.rel (%p639) target = $region56
      $region55: #{bottleneck_forward.4} parent=47 // pred_region
        %p642 = scmp.lt.s32.totalorder %s21, 1
        %s643 = scalar_select %p642, %s21, 1
        %s644 = smul.addr %s643, 2
        %s645 = scalar_lea.vmem %s3, %s644
      $region56: #{bottleneck_forward.4} parent=47 // pred_fallthru
        _
    $region48: #{bottleneck_forward.4} parent=5 // pred_fallthru
      _
  $region6: #{bottleneck_forward.4} parent=0 // loop_footer
    %s14 = sadd.s32 1, %s10
  $region7: #{bottleneck_forward.4} parent=0 // loop_footer_branch
    %9 = sbr.rel target = $region3
  $region8: #{bottleneck_forward.4} parent=0 // loop_exit
    _

// kernel: bottleneck_forward.5
$region0: #{bottleneck_forward.5}
  #allocation0 [shape = 'u32[]', space=smem, size = 0x4, offset = 0x4, fixed_abs, tag = 'smem constant byte address 0x4 - core index']
  #allocation1 [shape = 'u32[144,128]{1,0:T(1,128)}', space=vmem, size = 0x12000, scoped, tag = 'internal scratch']
  %s0 = inlined_call_operand.vmem [shape: f32[1,32], index: 0, kind: input, shape index: {}]
  %s1 = inlined_call_operand.vmem [shape: f32[1,32], index: 1, kind: input, shape index: {}]
  %s2 = inlined_call_operand.vmem [shape: bf16[2,16,16,32], index: 2, kind: input, shape index: {}, may-alias: {2,3,4}]
  %s3 = inlined_call_operand.vmem [shape: bf16[2,16,16,32], index: 3, kind: input, shape index: {}, may-alias: {2,3,4}]
  %s4 = inlined_call_operand.vmem [shape: bf16[2,16,16,32], index: 4, kind: input, shape index: {}, may-alias: {2,3,4}]
  %s5 = inlined_call_operand.vmem [shape: bf16[288,32], index: 5, kind: input, shape index: {}]
  %s6 = inlined_call_operand.vmem [shape: bf16[2,16,16,32], index: 6, kind: output, shape index: {0}]
  %s7 = inlined_call_operand.vmem [shape: f32[2,2,32], index: 7, kind: output, shape index: {1}]
  %8 = xla_tuple %s6, %s7
  %s9 = sld [smem:[#allocation0]]
  $region73: #{bottleneck_forward.5} parent=0
    _
  %s11 = ssub.s32 1, %s9
  %s12 = scalar_select 0, %s11, %s9
  loop: start=0, step=1, limit=6
  $region2: #{bottleneck_forward.5} parent=0 // loop_pre_header
    _
  $region3: #{bottleneck_forward.5} parent=0 // loop_header
    %s14 = sphi 0, %s18
    %p15 = scmp.ge.s32.totalorder %s14, 6
    %s21 = sphi 0, %s33
    %s22 = sphi 0, %s29
    %s23 = sphi 0, %s21
    %s24 = sphi 0, %s22
    %s25 = sphi 0, %s23
    %s26 = sphi 0, %s24
    %s34 = sphi 0, %s34
    %s36 = sphi 0, %s34
    %s37 = sphi 0, %s36
    %s51 = sphi 0, %s37
    %s55 = sphi 0, %s55
    %s57 = sphi 0, %s55
    %s58 = sphi 0, %s57
    %s72 = sphi 0, %s58
    %s80 = sphi 0, %s82
    %s83 = sphi 0, %s80
    %s84 = sphi 0, %s83
    %s100 = sphi 0, %s84
    %s116 = sphi 0, %s118
    %s119 = sphi 0, %s116
    %s120 = sphi 0, %s119
    %s136 = sphi 0, %s120
    %s152 = sphi 0, %s154
    %s155 = sphi 0, %s152
    %s156 = sphi 0, %s155
    %s172 = sphi 0, %s156
    %s176 = sphi 0, %s176
    %s178 = sphi 0, %s176
    %s179 = sphi 0, %s178
    %s193 = sphi 0, %s179
    %s201 = sphi 0, %s203
    %s204 = sphi 0, %s201
    %s205 = sphi 0, %s204
    %s221 = sphi 0, %s205
    %s227 = sphi 0, %s229
    %s230 = sphi 0, %s227
    %s231 = sphi 0, %s230
    %s247 = sphi 0, %s231
  $region4: #{bottleneck_forward.5} parent=0 // loop_header_branch
    %17 = sbr.rel (%p15) target = $region8
  $region5: #{bottleneck_forward.5} parent=0 // loop_body
    %s19 = ssub.s32 %s14, 1
    %s20 = ssub.s32 %s14, 2
    %s27 = sadd.s32 1, %s22
    %p28 = scmp.ge.s32.totalorder %s27, 2
    %s29 = scalar_select %p28, 0, %s27
    %s30 = sadd.s32 1, %s21
    %s31 = scalar_select %p28, %s30, %s21
    %p32 = scmp.ge.s32.totalorder %s31, 2
    %s33 = scalar_select %p32, 0, %s31
    %s35 = sadd.s32 %s34, 1
    %p38 = scmp.eq.s32.totalorder %s14, 3
    %p39 = scmp.ne.s32.totalorder %s34, %s36
    %p40 = scmp.eq.s32.totalorder %s14, 0
    %p41 = por %p39, %p40
    %p42 = scmp.ne.s32.totalorder %s34, %s36
    %p43 = scmp.eq.s32.totalorder %s19, 3
    %p44 = por %p42, %p43
    %p45 = scmp.ne.s32.totalorder %s36, %s37
    %p46 = scmp.eq.s32.totalorder %s19, 0
    %p47 = por %p45, %p46
    %p48 = scmp.ne.s32.totalorder %s36, %s37
    %p49 = scmp.eq.s32.totalorder %s20, 3
    %p50 = por %p48, %p49
    %p52 = scmp.ne.s32.totalorder %s37, %s51
    %p53 = scmp.eq.s32.totalorder %s20, 0
    %p54 = por %p52, %p53
    %s56 = sadd.s32 %s55, 1
    %p59 = scmp.eq.s32.totalorder %s14, 3
    %p60 = scmp.ne.s32.totalorder %s55, %s57
    %p61 = scmp.eq.s32.totalorder %s14, 0
    %p62 = por %p60, %p61
    %p63 = scmp.ne.s32.totalorder %s55, %s57
    %p64 = scmp.eq.s32.totalorder %s19, 3
    %p65 = por %p63, %p64
    %p66 = scmp.ne.s32.totalorder %s57, %s58
    %p67 = scmp.eq.s32.totalorder %s19, 0
    %p68 = por %p66, %p67
    %p69 = scmp.ne.s32.totalorder %s57, %s58
    %p70 = scmp.eq.s32.totalorder %s20, 3
    %p71 = por %p69, %p70
    %p73 = scmp.ne.s32.totalorder %s58, %s72
    %p74 = scmp.eq.s32.totalorder %s20, 0
    %p75 = por %p73, %p74
    %s76 = ssub.s32 %s21, %s33
    %s77 = ssub.s32 %s22, %s29
    %s78 = sor.u32 %s76, %s77
    %p79 = scmp.eq.s32.totalorder %s78, 0
    %s81 = sadd.s32 %s80, 1
    %s82 = scalar_select %p79, %s80, %s81
    %p85 = pneg %p79
    %p86 = scmp.eq.s32.totalorder %s14, 3
    %p87 = por %p85, %p86
    %p88 = scmp.ne.s32.totalorder %s80, %s83
    %p89 = scmp.eq.s32.totalorder %s14, 0
    %p90 = por %p88, %p89
    %p91 = scmp.ne.s32.totalorder %s80, %s83
    %p92 = scmp.eq.s32.totalorder %s19, 3
    %p93 = por %p91, %p92
    %p94 = scmp.ne.s32.totalorder %s83, %s84
    %p95 = scmp.eq.s32.totalorder %s19, 0
    %p96 = por %p94, %p95
    %p97 = scmp.ne.s32.totalorder %s83, %s84
    %p98 = scmp.eq.s32.totalorder %s20, 3
    %p99 = por %p97, %p98
    %p101 = scmp.ne.s32.totalorder %s84, %s100
    %p102 = scmp.eq.s32.totalorder %s20, 0
    %p103 = por %p101, %p102
    %s104 = smul.u32 %s22, 8
    %s105 = ssub.s32 %s104, 1
    %p106 = scmp.gt.s32.totalorder %s105, 0
    %s107 = scalar_select %p106, %s105, 0
    %s108 = smul.u32 %s29, 8
    %s109 = ssub.s32 %s108, 1
    %p110 = scmp.gt.s32.totalorder %s109, 0
    %s111 = scalar_select %p110, %s109, 0
    %s112 = ssub.s32 %s21, %s33
    %s113 = ssub.s32 %s107, %s111
    %s114 = sor.u32 %s112, %s113
    %p115 = scmp.eq.s32.totalorder %s114, 0
    %s117 = sadd.s32 %s116, 1
    %s118 = scalar_select %p115, %s116, %s117
    %p121 = pneg %p115
    %p122 = scmp.eq.s32.totalorder %s14, 3
    %p123 = por %p121, %p122
    %p124 = scmp.ne.s32.totalorder %s116, %s119
    %p125 = scmp.eq.s32.totalorder %s14, 0
    %p126 = por %p124, %p125
    %p127 = scmp.ne.s32.totalorder %s116, %s119
    %p128 = scmp.eq.s32.totalorder %s19, 3
    %p129 = por %p127, %p128
    %p130 = scmp.ne.s32.totalorder %s119, %s120
    %p131 = scmp.eq.s32.totalorder %s19, 0
    %p132 = por %p130, %p131
    %p133 = scmp.ne.s32.totalorder %s119, %s120
    %p134 = scmp.eq.s32.totalorder %s20, 3
    %p135 = por %p133, %p134
    %p137 = scmp.ne.s32.totalorder %s120, %s136
    %p138 = scmp.eq.s32.totalorder %s20, 0
    %p139 = por %p137, %p138
    %s140 = sadd.s32 %s22, 1
    %s141 = smul.u32 %s140, 8
    %p142 = scmp.lt.s32.totalorder %s141, 15
    %s143 = scalar_select %p142, %s141, 15
    %s144 = sadd.s32 %s29, 1
    %s145 = smul.u32 %s144, 8
    %p146 = scmp.lt.s32.totalorder %s145, 15
    %s147 = scalar_select %p146, %s145, 15
    %s148 = ssub.s32 %s21, %s33
    %s149 = ssub.s32 %s143, %s147
    %s150 = sor.u32 %s148, %s149
    %p151 = scmp.eq.s32.totalorder %s150, 0
    %s153 = sadd.s32 %s152, 1
    %s154 = scalar_select %p151, %s152, %s153
    %p157 = pneg %p151
    %p158 = scmp.eq.s32.totalorder %s14, 3
    %p159 = por %p157, %p158
    %p160 = scmp.ne.s32.totalorder %s152, %s155
    %p161 = scmp.eq.s32.totalorder %s14, 0
    %p162 = por %p160, %p161
    %p163 = scmp.ne.s32.totalorder %s152, %s155
    %p164 = scmp.eq.s32.totalorder %s19, 3
    %p165 = por %p163, %p164
    %p166 = scmp.ne.s32.totalorder %s155, %s156
    %p167 = scmp.eq.s32.totalorder %s19, 0
    %p168 = por %p166, %p167
    %p169 = scmp.ne.s32.totalorder %s155, %s156
    %p170 = scmp.eq.s32.totalorder %s20, 3
    %p171 = por %p169, %p170
    %p173 = scmp.ne.s32.totalorder %s156, %s172
    %p174 = scmp.eq.s32.totalorder %s20, 0
    %p175 = por %p173, %p174
    %s177 = sadd.s32 %s176, 1
    %p180 = scmp.eq.s32.totalorder %s14, 3
    %p181 = scmp.ne.s32.totalorder %s176, %s178
    %p182 = scmp.eq.s32.totalorder %s14, 0
    %p183 = por %p181, %p182
    %p184 = scmp.ne.s32.totalorder %s176, %s178
    %p185 = scmp.eq.s32.totalorder %s19, 3
    %p186 = por %p184, %p185
    %p187 = scmp.ne.s32.totalorder %s178, %s179
    %p188 = scmp.eq.s32.totalorder %s19, 0
    %p189 = por %p187, %p188
    %p190 = scmp.ne.s32.totalorder %s178, %s179
    %p191 = scmp.eq.s32.totalorder %s20, 3
    %p192 = por %p190, %p191
    %p194 = scmp.ne.s32.totalorder %s179, %s193
    %p195 = scmp.eq.s32.totalorder %s20, 0
    %p196 = por %p194, %p195
    %s197 = ssub.s32 %s21, %s33
    %s198 = ssub.s32 %s22, %s29
    %s199 = sor.u32 %s197, %s198
    %p200 = scmp.eq.s32.totalorder %s199, 0
    %s202 = sadd.s32 %s201, 1
    %s203 = scalar_select %p200, %s201, %s202
    %p206 = pneg %p200
    %p207 = scmp.eq.s32.totalorder %s14, 3
    %p208 = por %p206, %p207
    %p209 = scmp.ne.s32.totalorder %s201, %s204
    %p210 = scmp.eq.s32.totalorder %s14, 0
    %p211 = por %p209, %p210
    %p212 = scmp.ne.s32.totalorder %s201, %s204
    %p213 = scmp.eq.s32.totalorder %s19, 3
    %p214 = por %p212, %p213
    %p215 = scmp.ne.s32.totalorder %s204, %s205
    %p216 = scmp.eq.s32.totalorder %s19, 0
    %p217 = por %p215, %p216
    %p218 = scmp.ne.s32.totalorder %s204, %s205
    %p219 = scmp.eq.s32.totalorder %s20, 3
    %p220 = por %p218, %p219
    %p222 = scmp.ne.s32.totalorder %s205, %s221
    %p223 = scmp.eq.s32.totalorder %s20, 0
    %p224 = por %p222, %p223
    %s225 = ssub.s32 %s21, %s33
    %p226 = scmp.eq.s32.totalorder %s225, 0
    %s228 = sadd.s32 %s227, 1
    %s229 = scalar_select %p226, %s227, %s228
    %p232 = pneg %p226
    %p233 = scmp.eq.s32.totalorder %s14, 3
    %p234 = por %p232, %p233
    %p235 = scmp.ne.s32.totalorder %s227, %s230
    %p236 = scmp.eq.s32.totalorder %s14, 0
    %p237 = por %p235, %p236
    %p238 = scmp.ne.s32.totalorder %s227, %s230
    %p239 = scmp.eq.s32.totalorder %s19, 3
    %p240 = por %p238, %p239
    %p241 = scmp.ne.s32.totalorder %s230, %s231
    %p242 = scmp.eq.s32.totalorder %s19, 0
    %p243 = por %p241, %p242
    %p244 = scmp.ne.s32.totalorder %s230, %s231
    %p245 = scmp.eq.s32.totalorder %s20, 3
    %p246 = por %p244, %p245
    %p248 = scmp.ne.s32.totalorder %s231, %s247
    %p249 = scmp.eq.s32.totalorder %s20, 0
    %p250 = por %p248, %p249
    %p251 = scmp.le.s32.totalorder 1, %s14
    %p252 = scmp.lt.s32.totalorder %s14, 5
    %p253 = pnand %p251, %p252
    %p254 = pneg %p253
    // Predicated region
    $region9: #{bottleneck_forward.5} parent=5 // pred_check
      _
    $region10: #{bottleneck_forward.5} parent=5 // pred_check_branch
      %256 = sbr.rel (%p253) target = $region12
    $region11: #{bottleneck_forward.5} parent=5 // pred_region
      %s257 = ssub.s32 %s14, 1
      // Predicated region
      $region13: #{bottleneck_forward.5} parent=11 // pred_check
        %p258 = pneg %p47
      $region14: #{bottleneck_forward.5} parent=11 // pred_check_branch
        %260 = sbr.rel (%p258) target = $region16
      $region15: #{bottleneck_forward.5} parent=11 // pred_region
        _
      $region16: #{bottleneck_forward.5} parent=11 // pred_fallthru
        _
      // Predicated region
      $region17: #{bottleneck_forward.5} parent=11 // pred_check
        %p261 = pneg %p68
      $region18: #{bottleneck_forward.5} parent=11 // pred_check_branch
        %263 = sbr.rel (%p261) target = $region20
      $region19: #{bottleneck_forward.5} parent=11 // pred_region
        _
      $region20: #{bottleneck_forward.5} parent=11 // pred_fallthru
        _
      // Predicated region
      $region21: #{bottleneck_forward.5} parent=11 // pred_check
        %p264 = pneg %p189
      $region22: #{bottleneck_forward.5} parent=11 // pred_check_branch
        %266 = sbr.rel (%p264) target = $region24
      $region23: #{bottleneck_forward.5} parent=11 // pred_region
        _
      $region24: #{bottleneck_forward.5} parent=11 // pred_fallthru
        _
    $region12: #{bottleneck_forward.5} parent=5 // pred_fallthru
      _
    %p267 = scmp.lt.s32.totalorder %s14, 4
    // Predicated region
    $region25: #{bottleneck_forward.5} parent=5 // pred_check
      %p268 = pneg %p267
    $region26: #{bottleneck_forward.5} parent=5 // pred_check_branch
      %270 = sbr.rel (%p268) target = $region28
    $region27: #{bottleneck_forward.5} parent=5 // pred_region
      // Predicated region
      $region29: #{bottleneck_forward.5} parent=27 // pred_check
        %p271 = pneg %p90
      $region30: #{bottleneck_forward.5} parent=27 // pred_check_branch
        %273 = sbr.rel (%p271) target = $region32
      $region31: #{bottleneck_forward.5} parent=27 // pred_region
        %s274 = smul.u32 8, %s22
        %p275 = scmp.lt.s32.totalorder %s21, 1
        %s276 = scalar_select %p275, %s21, 1
        %p277 = scmp.lt.s32.totalorder %s274, 15
        %s278 = scalar_select %p277, %s274, 15
        %s279 = smul.addr %s278, 2
        %s280 = smul.addr %s276, 32
        %s281 = sadd.s32 %s279, %s280
        %s282 = smul.addr %s281, 4
        %s283 = scalar_lea.vmem %s2, %s282
        %s284 = smul.u32 8, %s22
      $region32: #{bottleneck_forward.5} parent=27 // pred_fallthru
        _
      // Predicated region
      $region33: #{bottleneck_forward.5} parent=27 // pred_check
        %p285 = pneg %p126
      $region34: #{bottleneck_forward.5} parent=27 // pred_check_branch
        %287 = sbr.rel (%p285) target = $region36
      $region35: #{bottleneck_forward.5} parent=27 // pred_region
        %s288 = smul.u32 %s22, 8
        %s289 = ssub.s32 %s288, 1
        %p290 = scmp.gt.s32.totalorder %s289, 0
        %s291 = scalar_select %p290, %s289, 0
        %p292 = scmp.lt.s32.totalorder %s21, 1
        %s293 = scalar_select %p292, %s21, 1
        %p294 = scmp.lt.s32.totalorder %s291, 15
        %s295 = scalar_select %p294, %s291, 15
        %s296 = smul.addr %s295, 2
        %s297 = smul.addr %s293, 32
        %s298 = sadd.s32 %s296, %s297
        %s299 = smul.addr %s298, 4
        %s300 = scalar_lea.vmem %s3, %s299
        %s301 = smul.u32 %s22, 8
        %s302 = ssub.s32 %s301, 1
        %p303 = scmp.gt.s32.totalorder %s302, 0
        %s304 = scalar_select %p303, %s302, 0
      $region36: #{bottleneck_forward.5} parent=27 // pred_fallthru
        _
      // Predicated region
      $region37: #{bottleneck_forward.5} parent=27 // pred_check
        %p305 = pneg %p162
      $region38: #{bottleneck_forward.5} parent=27 // pred_check_branch
        %307 = sbr.rel (%p305) target = $region40
      $region39: #{bottleneck_forward.5} parent=27 // pred_region
        %s308 = sadd.s32 %s22, 1
        %s309 = smul.u32 %s308, 8
        %p310 = scmp.lt.s32.totalorder %s309, 15
        %s311 = scalar_select %p310, %s309, 15
        %p312 = scmp.lt.s32.totalorder %s21, 1
        %s313 = scalar_select %p312, %s21, 1
        %p314 = scmp.lt.s32.totalorder %s311, 15
        %s315 = scalar_select %p314, %s311, 15
        %s316 = smul.addr %s315, 2
        %s317 = smul.addr %s313, 32
        %s318 = sadd.s32 %s316, %s317
        %s319 = smul.addr %s318, 4
        %s320 = scalar_lea.vmem %s4, %s319
        %s321 = sadd.s32 %s22, 1
        %s322 = smul.u32 %s321, 8
        %p323 = scmp.lt.s32.totalorder %s322, 15
        %s324 = scalar_select %p323, %s322, 15
      $region40: #{bottleneck_forward.5} parent=27 // pred_fallthru
        _
    $region28: #{bottleneck_forward.5} parent=5 // pred_fallthru
      _
    %p325 = scmp.le.s32.totalorder 1, %s14
    %p326 = scmp.lt.s32.totalorder %s14, 5
    %p327 = pnand %p325, %p326
    %p328 = pneg %p327
    // Predicated region
    $region41: #{bottleneck_forward.5} parent=5 // pred_check
      _
    $region42: #{bottleneck_forward.5} parent=5 // pred_check_branch
      %330 = sbr.rel (%p327) target = $region44
    $region43: #{bottleneck_forward.5} parent=5 // pred_region
      %s331 = ssub.s32 %s14, 1
      %p332 = pneg %p47
      %p333 = pneg %p44
      %p334 = pneg %p68
      %p335 = pneg %p65
      %s336 = smul.u32 8, %s24
      %p337 = scmp.lt.s32.totalorder %s23, 1
      %s338 = scalar_select %p337, %s23, 1
      %p339 = scmp.lt.s32.totalorder %s336, 15
      %s340 = scalar_select %p339, %s336, 15
      %s341 = smul.addr %s340, 2
      %s342 = smul.addr %s338, 32
      %s343 = sadd.s32 %s341, %s342
      %s344 = smul.addr %s343, 4
      %s345 = scalar_lea.vmem %s2, %s344
      %p346 = pneg %p96
      %p347 = pneg %p93
      %s348 = smul.u32 %s24, 8
      %s349 = ssub.s32 %s348, 1
      %p350 = scmp.gt.s32.totalorder %s349, 0
      %s351 = scalar_select %p350, %s349, 0
      %p352 = scmp.lt.s32.totalorder %s23, 1
      %s353 = scalar_select %p352, %s23, 1
      %p354 = scmp.lt.s32.totalorder %s351, 15
      %s355 = scalar_select %p354, %s351, 15
      %s356 = smul.addr %s355, 2
      %s357 = smul.addr %s353, 32
      %s358 = sadd.s32 %s356, %s357
      %s359 = smul.addr %s358, 4
      %s360 = scalar_lea.vmem %s3, %s359
      %p361 = pneg %p132
      %p362 = pneg %p129
      %s363 = sadd.s32 %s24, 1
      %s364 = smul.u32 %s363, 8
      %p365 = scmp.lt.s32.totalorder %s364, 15
      %s366 = scalar_select %p365, %s364, 15
      %p367 = scmp.lt.s32.totalorder %s23, 1
      %s368 = scalar_select %p367, %s23, 1
      %p369 = scmp.lt.s32.totalorder %s366, 15
      %s370 = scalar_select %p369, %s366, 15
      %s371 = smul.addr %s370, 2
      %s372 = smul.addr %s368, 32
      %s373 = sadd.s32 %s371, %s372
      %s374 = smul.addr %s373, 4
      %s375 = scalar_lea.vmem %s4, %s374
      %p376 = pneg %p168
      %p377 = pneg %p165
      %p378 = pneg %p189
      %p379 = pneg %p186
      %p380 = pneg %p217
      %p381 = pneg %p214
      %s382 = smul.u32 8, %s24
      %p383 = scmp.lt.s32.totalorder %s23, 1
      %s384 = scalar_select %p383, %s23, 1
      %p385 = scmp.lt.s32.totalorder %s382, 15
      %s386 = scalar_select %p385, %s382, 15
      %s387 = smul.addr %s386, 2
      %s388 = smul.addr %s384, 32
      %s389 = sadd.s32 %s387, %s388
      %s390 = smul.addr %s389, 4
      %s391 = scalar_lea.vmem %s6, %s390
      %p392 = pneg %p243
      %p393 = pneg %p240
      %p394 = scmp.lt.s32.totalorder %s23, 1
      %s395 = scalar_select %p394, %s23, 1
      %s396 = smul.addr %s395, 2
      %s397 = scalar_lea.vmem %s7, %s396
      %s398 = smul.u32 8, %s24
      %p399 = scmp.lt.s32.totalorder %s23, 1
      %s400 = scalar_select %p399, %s23, 1
      %p401 = scmp.lt.s32.totalorder %s398, 15
      %s402 = scalar_select %p401, %s398, 15
      %s403 = smul.addr %s402, 2
      %s404 = smul.addr %s400, 32
      %s405 = sadd.s32 %s403, %s404
      %s406 = smul.addr %s405, 4
      %s407 = scalar_lea.vmem %s2, %s406
      %s408 = smul.u32 8, %s24
      %s409 = smul.u32 %s24, 8
      %s410 = ssub.s32 %s409, 1
      %p411 = scmp.gt.s32.totalorder %s410, 0
      %s412 = scalar_select %p411, %s410, 0
      %p413 = scmp.lt.s32.totalorder %s23, 1
      %s414 = scalar_select %p413, %s23, 1
      %p415 = scmp.lt.s32.totalorder %s412, 15
      %s416 = scalar_select %p415, %s412, 15
      %s417 = smul.addr %s416, 2
      %s418 = smul.addr %s414, 32
      %s419 = sadd.s32 %s417, %s418
      %s420 = smul.addr %s419, 4
      %s421 = scalar_lea.vmem %s3, %s420
      %s422 = smul.u32 %s24, 8
      %s423 = ssub.s32 %s422, 1
      %p424 = scmp.gt.s32.totalorder %s423, 0
      %s425 = scalar_select %p424, %s423, 0
      %s426 = sadd.s32 %s24, 1
      %s427 = smul.u32 %s426, 8
      %p428 = scmp.lt.s32.totalorder %s427, 15
      %s429 = scalar_select %p428, %s427, 15
      %p430 = scmp.lt.s32.totalorder %s23, 1
      %s431 = scalar_select %p430, %s23, 1
      %p432 = scmp.lt.s32.totalorder %s429, 15
      %s433 = scalar_select %p432, %s429, 15
      %s434 = smul.addr %s433, 2
      %s435 = smul.addr %s431, 32
      %s436 = sadd.s32 %s434, %s435
      %s437 = smul.addr %s436, 4
      %s438 = scalar_lea.vmem %s4, %s437
      %s439 = sadd.s32 %s24, 1
      %s440 = smul.u32 %s439, 8
      %p441 = scmp.lt.s32.totalorder %s440, 15
      %s442 = scalar_select %p441, %s440, 15
      %s443 = smul.u32 8, %s24
      %p444 = scmp.lt.s32.totalorder %s23, 1
      %s445 = scalar_select %p444, %s23, 1
      %p446 = scmp.lt.s32.totalorder %s443, 15
      %s447 = scalar_select %p446, %s443, 15
      %s448 = smul.addr %s447, 2
      %s449 = smul.addr %s445, 32
      %s450 = sadd.s32 %s448, %s449
      %s451 = smul.addr %s450, 4
      %s452 = scalar_lea.vmem %s6, %s451
      %s453 = smul.u32 8, %s24
      %p454 = scmp.lt.s32.totalorder %s23, 1
      %s455 = scalar_select %p454, %s23, 1
      %s456 = smul.addr %s455, 2
      %s457 = scalar_lea.vmem %s7, %s456
      %v459 = vld [vmem:[%s407] sm:$0xf]
      %v460 = vld [vmem:[%s407 + $0x4] sm:$0xf]
      %v461 = vld [vmem:[%s407 + $0x8] sm:$0xf]
      %v462 = vld [vmem:[%s407 + $0xc] sm:$0xf]
      %v463 = vld [vmem:[%s407 + $0x10] sm:$0xf]
      %v464 = vld [vmem:[%s407 + $0x14] sm:$0xf]
      %v465 = vld [vmem:[%s407 + $0x18] sm:$0xf]
      %v466 = vld [vmem:[%s407 + $0x1c] sm:$0xf]
      %v467 = vld [vmem:[%s407 + $0x20] sm:$0xf]
      %v468 = vld [vmem:[%s407 + $0x24] sm:$0xf]
      %v469 = vld [vmem:[%s407 + $0x28] sm:$0xf]
      %v470 = vld [vmem:[%s407 + $0x2c] sm:$0xf]
      %v471 = vld [vmem:[%s407 + $0x30] sm:$0xf]
      %v472 = vld [vmem:[%s407 + $0x34] sm:$0xf]
      %v473 = vld [vmem:[%s407 + $0x38] sm:$0xf]
      %v474 = vld [vmem:[%s407 + $0x3c] sm:$0xf]
      %v475 = vunpack.c.l.bf16 %v459
      %v476 = vunpack.c.l.bf16 %v460
      %v477 = vunpack.c.l.bf16 %v461
      %v478 = vunpack.c.l.bf16 %v462
      %v479 = vunpack.c.l.bf16 %v463
      %v480 = vunpack.c.l.bf16 %v464
      %v481 = vunpack.c.l.bf16 %v465
      %v482 = vunpack.c.l.bf16 %v466
      %v483 = vunpack.c.l.bf16 %v467
      %v484 = vunpack.c.l.bf16 %v468
      %v485 = vunpack.c.l.bf16 %v469
      %v486 = vunpack.c.l.bf16 %v470
      %v487 = vunpack.c.l.bf16 %v471
      %v488 = vunpack.c.l.bf16 %v472
      %v489 = vunpack.c.l.bf16 %v473
      %v490 = vunpack.c.l.bf16 %v474
      %v491 = vld [vmem:[%s0] sm:$0x1]
      %v493 = vlaneseq
      %v494 = vshrl.u32 %v493, 7
      %v495 = vsub.s32 0, %v494
      %v496 = vrot.slane %v491, %v495
      %v498 = vmul.f32 %v475, %v496
      %v499 = vmul.f32 %v476, %v496
      %v500 = vmul.f32 %v477, %v496
      %v501 = vmul.f32 %v478, %v496
      %v502 = vmul.f32 %v479, %v496
      %v503 = vmul.f32 %v480, %v496
      %v504 = vmul.f32 %v481, %v496
      %v505 = vmul.f32 %v482, %v496
      %v506 = vmul.f32 %v483, %v496
      %v507 = vmul.f32 %v484, %v496
      %v508 = vmul.f32 %v485, %v496
      %v509 = vmul.f32 %v486, %v496
      %v510 = vmul.f32 %v487, %v496
      %v511 = vmul.f32 %v488, %v496
      %v512 = vmul.f32 %v489, %v496
      %v513 = vmul.f32 %v490, %v496
      %v514 = vld [vmem:[%s1] sm:$0x1]
      %v516 = vlaneseq
      %v517 = vshrl.u32 %v516, 7
      %v518 = vsub.s32 0, %v517
      %v519 = vrot.slane %v514, %v518
      %v521 = vadd.f32 %v498, %v519
      %v522 = vadd.f32 %v499, %v519
      %v523 = vadd.f32 %v500, %v519
      %v524 = vadd.f32 %v501, %v519
      %v525 = vadd.f32 %v502, %v519
      %v526 = vadd.f32 %v503, %v519
      %v527 = vadd.f32 %v504, %v519
      %v528 = vadd.f32 %v505, %v519
      %v529 = vadd.f32 %v506, %v519
      %v530 = vadd.f32 %v507, %v519
      %v531 = vadd.f32 %v508, %v519
      %v532 = vadd.f32 %v509, %v519
      %v533 = vadd.f32 %v510, %v519
      %v534 = vadd.f32 %v511, %v519
      %v535 = vadd.f32 %v512, %v519
      %v536 = vadd.f32 %v513, %v519
      %v537 = vmax.f32 %v521, 0.0
      %v538 = vmax.f32 %v522, 0.0
      %v539 = vmax.f32 %v523, 0.0
      %v540 = vmax.f32 %v524, 0.0
      %v541 = vmax.f32 %v525, 0.0
      %v542 = vmax.f32 %v526, 0.0
      %v543 = vmax.f32 %v527, 0.0
      %v544 = vmax.f32 %v528, 0.0
      %v545 = vmax.f32 %v529, 0.0
      %v546 = vmax.f32 %v530, 0.0
      %v547 = vmax.f32 %v531, 0.0
      %v548 = vmax.f32 %v532, 0.0
      %v549 = vmax.f32 %v533, 0.0
      %v550 = vmax.f32 %v534, 0.0
      %v551 = vmax.f32 %v535, 0.0
      %v552 = vmax.f32 %v536, 0.0
      %p553 = scmp.gt.s32.totalorder %s24, 0
      %v554 = vld [vmem:[%s421] sm:$0xf]
      %v555 = vld [vmem:[%s421 + $0x4] sm:$0xf]
      %v556 = vunpack.c.l.bf16 %v554
      %v557 = vunpack.c.l.bf16 %v555
      %v558 = vmul.f32 %v556, %v496
      %v559 = vmul.f32 %v557, %v496
      %v560 = vadd.f32 %v558, %v519
      %v561 = vadd.f32 %v559, %v519
      %v562 = vmax.f32 %v560, 0.0
      %v563 = vmax.f32 %v561, 0.0
      %s564 = scalar_select %p553, 1, 0
      %v565 = vstv %s564
      %vm566 = vcmp.eq.s32.totalorder %v565, 1
      %v567 = vsel %vm566, %v562, 0.0
      %v568 = vsel %vm566, %v563, 0.0
      %p569 = scmp.lt.s32.totalorder %s24, 1
      %v570 = vld [vmem:[%s438] sm:$0xf]
      %v571 = vld [vmem:[%s438 + $0x4] sm:$0xf]
      %v572 = vunpack.c.l.bf16 %v570
      %v573 = vunpack.c.l.bf16 %v571
      %v574 = vmul.f32 %v572, %v496
      %v575 = vmul.f32 %v573, %v496
      %v576 = vadd.f32 %v574, %v519
      %v577 = vadd.f32 %v575, %v519
      %v578 = vmax.f32 %v576, 0.0
      %v579 = vmax.f32 %v577, 0.0
      %s580 = scalar_select %p569, 1, 0
      %v581 = vstv %s580
      %vm582 = vcmp.eq.s32.totalorder %v581, 1
      %v583 = vsel %vm582, %v578, 0.0
      %v584 = vsel %vm582, %v579, 0.0
      %v585 = vpack.c.bf16 %v568, %v567
      %v586 = vpack.c.bf16 %v538, %v537
      %v587 = vpack.c.bf16 %v540, %v539
      %v588 = vpack.c.bf16 %v542, %v541
      %v589 = vpack.c.bf16 %v544, %v543
      %v590 = vpack.c.bf16 %v546, %v545
      %v591 = vpack.c.bf16 %v548, %v547
      %v592 = vpack.c.bf16 %v550, %v549
      %v593 = vpack.c.bf16 %v552, %v551
      %v594 = vpack.c.bf16 %v584, %v583
      %v596 = vshrl.u32 %v585, 16
      %v598 = vrot.slane %v596, 7
      %v599 = vshll.u32 %v585, 16
      %v601 = vor.u32 %v598, %v599
      %v603 = vshrl.u32 %v586, 16
      %v605 = vrot.slane %v603, 7
      %v606 = vshll.u32 %v586, 16
      %v608 = vor.u32 %v605, %v606
      %v610 = vshrl.u32 %v587, 16
      %v612 = vrot.slane %v610, 7
      %v613 = vshll.u32 %v587, 16
      %v615 = vor.u32 %v612, %v613
      %v617 = vshrl.u32 %v588, 16
      %v619 = vrot.slane %v617, 7
      %v620 = vshll.u32 %v588, 16
      %v622 = vor.u32 %v619, %v620
      %v624 = vshrl.u32 %v589, 16
      %v626 = vrot.slane %v624, 7
      %v627 = vshll.u32 %v589, 16
      %v629 = vor.u32 %v626, %v627
      %v631 = vshrl.u32 %v590, 16
      %v633 = vrot.slane %v631, 7
      %v634 = vshll.u32 %v590, 16
      %v636 = vor.u32 %v633, %v634
      %v638 = vshrl.u32 %v591, 16
      %v640 = vrot.slane %v638, 7
      %v641 = vshll.u32 %v591, 16
      %v643 = vor.u32 %v640, %v641
      %v645 = vshrl.u32 %v592, 16
      %v647 = vrot.slane %v645, 7
      %v648 = vshll.u32 %v592, 16
      %v650 = vor.u32 %v647, %v648
      %v652 = vshrl.u32 %v593, 16
      %v654 = vrot.slane %v652, 7
      %v655 = vshll.u32 %v593, 16
      %v657 = vor.u32 %v654, %v655
      %v659 = vshrl.u32 %v594, 16
      %v661 = vrot.slane %v659, 7
      %v662 = vshll.u32 %v594, 16
      %v664 = vor.u32 %v661, %v662
      %vm675 = vcmask 1040384
      %vm676 = vsmask.f32 256
      %vm677 = vmand %vm675, %vm676
      %v678 = vsel %vm677, 0, %v601
      %v679 = vsel %vm677, 0, %v608
      %v680 = vsel %vm677, 0, %v615
      %v681 = vsel %vm677, 0, %v622
      %v682 = vsel %vm677, 0, %v629
      %v683 = vsel %vm677, 0, %v636
      %v684 = vsel %vm677, 0, %v643
      %v685 = vsel %vm677, 0, %v650
      %v686 = vsel %vm677, 0, %v657
      %v687 = vsel %vm677, 0, %v664
      %v688 = vrot.slane %v599, 1
      %v689 = vor.u32 %v596, %v688
      %v690 = vrot.slane %v606, 1
      %v691 = vor.u32 %v603, %v690
      %v692 = vrot.slane %v613, 1
      %v693 = vor.u32 %v610, %v692
      %v694 = vrot.slane %v620, 1
      %v695 = vor.u32 %v617, %v694
      %v696 = vrot.slane %v627, 1
      %v697 = vor.u32 %v624, %v696
      %v698 = vrot.slane %v634, 1
      %v699 = vor.u32 %v631, %v698
      %v700 = vrot.slane %v641, 1
      %v701 = vor.u32 %v638, %v700
      %v702 = vrot.slane %v648, 1
      %v703 = vor.u32 %v645, %v702
      %v704 = vrot.slane %v655, 1
      %v705 = vor.u32 %v652, %v704
      %v706 = vrot.slane %v662, 1
      %v707 = vor.u32 %v659, %v706
      %vm718 = vcmask 1047552
      %vm719 = vsmask.f32 7424
      %vm720 = vmand %vm718, %vm719
      %v721 = vsel %vm720, %v689, 0
      %v722 = vsel %vm720, %v691, 0
      %v723 = vsel %vm720, %v693, 0
      %v724 = vsel %vm720, %v695, 0
      %v725 = vsel %vm720, %v697, 0
      %v726 = vsel %vm720, %v699, 0
      %v727 = vsel %vm720, %v701, 0
      %v728 = vsel %vm720, %v703, 0
      %v729 = vsel %vm720, %v705, 0
      %v730 = vsel %vm720, %v707, 0
      %741 = vrot.lane.b32.xlu0 %v585, 32
      %v742 = vpop.permute.xlu0 %741
      %743 = vrot.lane.b32.xlu0 %v586, 32
      %v744 = vpop.permute.xlu0 %743
      %745 = vrot.lane.b32.xlu0 %v587, 32
      %v746 = vpop.permute.xlu0 %745
      %747 = vrot.lane.b32.xlu0 %v588, 32
      %v748 = vpop.permute.xlu0 %747
      %749 = vrot.lane.b32.xlu0 %v589, 32
      %v750 = vpop.permute.xlu0 %749
      %751 = vrot.lane.b32.xlu0 %v590, 32
      %v752 = vpop.permute.xlu0 %751
      %753 = vrot.lane.b32.xlu0 %v591, 32
      %v754 = vpop.permute.xlu0 %753
      %755 = vrot.lane.b32.xlu0 %v592, 32
      %v756 = vpop.permute.xlu0 %755
      %757 = vrot.lane.b32.xlu0 %v593, 32
      %v758 = vpop.permute.xlu0 %757
      %759 = vrot.lane.b32.xlu0 %v594, 32
      %v760 = vpop.permute.xlu0 %759
      %771 = vrot.lane.b32.xlu0 %v721, 64
      %v772 = vpop.permute.xlu0 %771
      %773 = vrot.lane.b32.xlu0 %v722, 64
      %v774 = vpop.permute.xlu0 %773
      %775 = vrot.lane.b32.xlu0 %v723, 64
      %v776 = vpop.permute.xlu0 %775
      %777 = vrot.lane.b32.xlu0 %v724, 64
      %v778 = vpop.permute.xlu0 %777
      %779 = vrot.lane.b32.xlu0 %v725, 64
      %v780 = vpop.permute.xlu0 %779
      %781 = vrot.lane.b32.xlu0 %v726, 64
      %v782 = vpop.permute.xlu0 %781
      %783 = vrot.lane.b32.xlu0 %v727, 64
      %v784 = vpop.permute.xlu0 %783
      %785 = vrot.lane.b32.xlu0 %v728, 64
      %v786 = vpop.permute.xlu0 %785
      %787 = vrot.lane.b32.xlu0 %v729, 64
      %v788 = vpop.permute.xlu0 %787
      %789 = vrot.lane.b32.xlu0 %v730, 64
      %v790 = vpop.permute.xlu0 %789
      %vm791 = vcmask 261120
      %v794 = vsel %vm791, %v678, %v742
      %v797 = vsel %vm791, %v679, %v744
      %v800 = vsel %vm791, %v680, %v746
      %v803 = vsel %vm791, %v681, %v748
      %v806 = vsel %vm791, %v682, %v750
      %v809 = vsel %vm791, %v683, %v752
      %v812 = vsel %vm791, %v684, %v754
      %v815 = vsel %vm791, %v685, %v756
      %v818 = vsel %vm791, %v686, %v758
      %v821 = vsel %vm791, %v687, %v760
      %vm822 = vcmask 523264
      %v824 = vsel %vm822, %v794, %v772
      %v826 = vsel %vm822, %v797, %v774
      %v828 = vsel %vm822, %v800, %v776
      %v830 = vsel %vm822, %v803, %v778
      %v832 = vsel %vm822, %v806, %v780
      %v834 = vsel %vm822, %v809, %v782
      %v836 = vsel %vm822, %v812, %v784
      %v838 = vsel %vm822, %v815, %v786
      %v840 = vsel %vm822, %v818, %v788
      %v842 = vsel %vm822, %v821, %v790
      %851 = vrot.lane.b32.xlu0 %v826, 96
      %v852 = vpop.permute.xlu0 %851
      %853 = vrot.lane.b32.xlu0 %v828, 96
      %v854 = vpop.permute.xlu0 %853
      %855 = vrot.lane.b32.xlu0 %v830, 96
      %v856 = vpop.permute.xlu0 %855
      %857 = vrot.lane.b32.xlu0 %v832, 96
      %v858 = vpop.permute.xlu0 %857
      %859 = vrot.lane.b32.xlu0 %v834, 96
      %v860 = vpop.permute.xlu0 %859
      %861 = vrot.lane.b32.xlu0 %v836, 96
      %v862 = vpop.permute.xlu0 %861
      %863 = vrot.lane.b32.xlu0 %v838, 96
      %v864 = vpop.permute.xlu0 %863
      %865 = vrot.lane.b32.xlu0 %v840, 96
      %v866 = vpop.permute.xlu0 %865
      %868 = vrot.lane.b32.xlu0 %v828, 64
      %v869 = vpop.permute.xlu0 %868
      %870 = vrot.lane.b32.xlu0 %v830, 64
      %v871 = vpop.permute.xlu0 %870
      %872 = vrot.lane.b32.xlu0 %v832, 64
      %v873 = vpop.permute.xlu0 %872
      %874 = vrot.lane.b32.xlu0 %v834, 64
      %v875 = vpop.permute.xlu0 %874
      %876 = vrot.lane.b32.xlu0 %v836, 64
      %v877 = vpop.permute.xlu0 %876
      %878 = vrot.lane.b32.xlu0 %v838, 64
      %v879 = vpop.permute.xlu0 %878
      %880 = vrot.lane.b32.xlu0 %v840, 64
      %v881 = vpop.permute.xlu0 %880
      %882 = vrot.lane.b32.xlu0 %v842, 64
      %v883 = vpop.permute.xlu0 %882
      %vm884 = vcmask 785408
      %v886 = vsel %vm884, %v824, %v852
      %v889 = vsel %vm884, %v826, %v854
      %v892 = vsel %vm884, %v828, %v856
      %v895 = vsel %vm884, %v830, %v858
      %v898 = vsel %vm884, %v832, %v860
      %v901 = vsel %vm884, %v834, %v862
      %v904 = vsel %vm884, %v836, %v864
      %v907 = vsel %vm884, %v838, %v866
      %v910 = vsel %vm822, %v852, %v869
      %v913 = vsel %vm822, %v854, %v871
      %v916 = vsel %vm822, %v856, %v873
      %v919 = vsel %vm822, %v858, %v875
      %v922 = vsel %vm822, %v860, %v877
      %v925 = vsel %vm822, %v862, %v879
      %v928 = vsel %vm822, %v864, %v881
      %v931 = vsel %vm822, %v866, %v883
      %v933 = vld [vmem:[%s5] sm:$0xf]
      %v934 = vld [vmem:[%s5 + $0x4] sm:$0xf]
      %v935 = vld [vmem:[%s5 + $0x8] sm:$0xf]
      %v936 = vld [vmem:[%s5 + $0xc] sm:$0xf]
      %v937 = vld [vmem:[%s5 + $0x10] sm:$0xf]
      %v938 = vld [vmem:[%s5 + $0x14] sm:$0xf]
      %v939 = vld [vmem:[%s5 + $0x18] sm:$0xf]
      %v940 = vld [vmem:[%s5 + $0x1c] sm:$0xf]
      %v941 = vld [vmem:[%s5 + $0x20] sm:$0xf]
      %v942 = vld [vmem:[%s5 + $0x24] sm:$0xf]
      %v943 = vld [vmem:[%s5 + $0x28] sm:$0xf]
      %v944 = vld [vmem:[%s5 + $0x2c] sm:$0xf]
      %v945 = vld [vmem:[%s5 + $0x30] sm:$0xf]
      %v946 = vld [vmem:[%s5 + $0x34] sm:$0xf]
      %v947 = vld [vmem:[%s5 + $0x38] sm:$0xf]
      %v948 = vld [vmem:[%s5 + $0x3c] sm:$0xf]
      %v949 = vld [vmem:[%s5 + $0x40] sm:$0xf]
      %v950 = vld [vmem:[%s5 + $0x44] sm:$0xf]
      %v951 = vld [vmem:[%s5 + $0x48] sm:$0xf]
      %v952 = vld [vmem:[%s5 + $0x4c] sm:$0xf]
      %v953 = vld [vmem:[%s5 + $0x50] sm:$0xf]
      %v954 = vld [vmem:[%s5 + $0x54] sm:$0xf]
      %v955 = vld [vmem:[%s5 + $0x58] sm:$0xf]
      %v956 = vld [vmem:[%s5 + $0x5c] sm:$0xf]
      %v957 = vld [vmem:[%s5 + $0x60] sm:$0xf]
      %v958 = vld [vmem:[%s5 + $0x64] sm:$0xf]
      %v959 = vld [vmem:[%s5 + $0x68] sm:$0xf]
      %v960 = vld [vmem:[%s5 + $0x6c] sm:$0xf]
      %v961 = vld [vmem:[%s5 + $0x70] sm:$0xf]
      %v962 = vld [vmem:[%s5 + $0x74] sm:$0xf]
      %v963 = vld [vmem:[%s5 + $0x78] sm:$0xf]
      %v964 = vld [vmem:[%s5 + $0x7c] sm:$0xf]
      %v965 = vld [vmem:[%s5 + $0x80] sm:$0xf]
      %v966 = vld [vmem:[%s5 + $0x84] sm:$0xf]
      %v967 = vld [vmem:[%s5 + $0x88] sm:$0xf]
      %v968 = vld [vmem:[%s5 + $0x8c] sm:$0xf]
      %v1005 = vunpack.c.l.b16 %v933
      %v1006 = vunpack.c.l.b16 %v934
      %v1007 = vunpack.c.l.b16 %v935
      %v1008 = vunpack.c.l.b16 %v936
      %v1009 = vunpack.c.l.b16 %v937
      %v1010 = vunpack.c.l.b16 %v938
      %v1011 = vunpack.c.l.b16 %v939
      %v1012 = vunpack.c.l.b16 %v940
      %v1013 = vunpack.c.l.b16 %v941
      %v1014 = vunpack.c.l.b16 %v942
      %v1015 = vunpack.c.l.b16 %v943
      %v1016 = vunpack.c.l.b16 %v944
      %v1017 = vunpack.c.l.b16 %v945
      %v1018 = vunpack.c.l.b16 %v946
      %v1019 = vunpack.c.l.b16 %v947
      %v1020 = vunpack.c.l.b16 %v948
      %v1021 = vunpack.c.l.b16 %v949
      %v1022 = vunpack.c.l.b16 %v950
      %v1023 = vunpack.c.l.b16 %v951
      %v1024 = vunpack.c.l.b16 %v952
      %v1025 = vunpack.c.l.b16 %v953
      %v1026 = vunpack.c.l.b16 %v954
      %v1027 = vunpack.c.l.b16 %v955
      %v1028 = vunpack.c.l.b16 %v956
      %v1029 = vunpack.c.l.b16 %v957
      %v1030 = vunpack.c.l.b16 %v958
      %v1031 = vunpack.c.l.b16 %v959
      %v1032 = vunpack.c.l.b16 %v960
      %v1033 = vunpack.c.l.b16 %v961
      %v1034 = vunpack.c.l.b16 %v962
      %v1035 = vunpack.c.l.b16 %v963
      %v1036 = vunpack.c.l.b16 %v964
      %v1037 = vunpack.c.l.b16 %v965
      %v1038 = vunpack.c.l.b16 %v966
      %v1039 = vunpack.c.l.b16 %v967
      %v1040 = vunpack.c.l.b16 %v968
      %v1041 = vpack.c.b16 %v1006, %v1005
      %v1042 = vpack.c.b16 %v1008, %v1007
      %v1043 = vpack.c.b16 %v1010, %v1009
      %v1044 = vpack.c.b16 %v1012, %v1011
      %v1045 = vpack.c.b16 %v1014, %v1013
      %v1046 = vpack.c.b16 %v1016, %v1015
      %v1047 = vpack.c.b16 %v1018, %v1017
      %v1048 = vpack.c.b16 %v1020, %v1019
      %v1049 = vpack.c.b16 %v1022, %v1021
      %v1050 = vpack.c.b16 %v1024, %v1023
      %v1051 = vpack.c.b16 %v1026, %v1025
      %v1052 = vpack.c.b16 %v1028, %v1027
      %v1053 = vpack.c.b16 %v1030, %v1029
      %v1054 = vpack.c.b16 %v1032, %v1031
      %v1055 = vpack.c.b16 %v1034, %v1033
      %v1056 = vpack.c.b16 %v1036, %v1035
      %v1057 = vpack.c.b16 %v1038, %v1037
      %v1058 = vpack.c.b16 %v1040, %v1039
      %v1077 = vsel %vm791, %v869, 0
      %v1079 = vsel %vm791, %v871, 0
      %v1081 = vsel %vm791, %v873, 0
      %v1083 = vsel %vm791, %v875, 0
      %v1085 = vsel %vm791, %v877, 0
      %v1087 = vsel %vm791, %v879, 0
      %v1089 = vsel %vm791, %v881, 0
      %v1091 = vsel %vm791, %v883, 0
      %1093 = vmatprep.subr.bf16.mxu0 0
      %1094 = vmatpush1.bf16.msra.mxu0 %v1048
      %1095 = vmatprep.subr.bf16.mxu0 0
      %1096 = vmatpush1.bf16.msra.mxu0 %v1047
      %1097 = vmatprep.subr.bf16.mxu0 0
      %1098 = vmatpush1.bf16.msra.mxu0 %v1046
      %1099 = vmatprep.subr.bf16.mxu0 0
      %1100 = vmatpush1.bf16.msra.mxu0 %v1045
      %1101 = vmatprep.subr.bf16.mxu0 0
      %1102 = vmatpush1.bf16.msra.mxu0 %v1044
      %1103 = vmatprep.subr.bf16.mxu0 0
      %1104 = vmatpush1.bf16.msra.mxu0 %v1043
      %1105 = vmatprep.subr.bf16.mxu0 0
      %1106 = vmatpush1.bf16.msra.mxu0 %v1042
      %1107 = vmatprep.subr.bf16.mxu0 0
      %1108 = vmatpush1.bf16.msra.mxu0 %v1041
      %1109 = vmatprep.subr.bf16.mxu0 0
      %1110 = vmatpush2.bf16.msra.mxu0 %v1056
      %1111 = vmatprep.subr.bf16.mxu0 0
      %1112 = vmatpush2.bf16.msra.mxu0 %v1055
      %1113 = vmatprep.subr.bf16.mxu0 0
      %1114 = vmatpush2.bf16.msra.mxu0 %v1054
      %1115 = vmatprep.subr.bf16.mxu0 0
      %1116 = vmatpush2.bf16.msra.mxu0 %v1053
      %1117 = vmatprep.subr.bf16.mxu0 0
      %1118 = vmatpush2.bf16.msra.mxu0 %v1052
      %1119 = vmatprep.subr.bf16.mxu0 0
      %1120 = vmatpush2.bf16.msra.mxu0 %v1051
      %1121 = vmatprep.subr.bf16.mxu0 0
      %1122 = vmatpush2.bf16.msra.mxu0 %v1050
      %1123 = vmatprep.subr.bf16.mxu0 0
      %1124 = vmatpush2.bf16.msra.mxu0 %v1049
      %1125 = vmatprep.mubr.bf16.mxu0 %v910
      %1126 = vmatmul.mubr.bf16.gmra.mxu0 %v886
      %v1127 = vpop.f32.mrf.mxu0
      %v1128 = vadd.f32 0.0, %v1127
      %v1129 = vpop.f32.mrf.mxu0
      %v1130 = vpop.f32.mrf.mxu0
      %v1131 = vadd.f32 0.0, %v1130
      %v1132 = vpop.f32.mrf.mxu0
      %1133 = vmatprep.mubr.bf16.mxu0 %v913
      %1134 = vmatmul.mubr.bf16.gmra.mxu0 %v889
      %v1135 = vpop.f32.mrf.mxu0
      %v1136 = vadd.f32 0.0, %v1135
      %v1137 = vpop.f32.mrf.mxu0
      %v1138 = vpop.f32.mrf.mxu0
      %v1139 = vadd.f32 0.0, %v1138
      %v1140 = vpop.f32.mrf.mxu0
      %1141 = vmatprep.mubr.bf16.mxu0 %v916
      %1142 = vmatmul.mubr.bf16.gmra.mxu0 %v892
      %v1143 = vpop.f32.mrf.mxu0
      %v1144 = vadd.f32 0.0, %v1143
      %v1145 = vpop.f32.mrf.mxu0
      %v1146 = vpop.f32.mrf.mxu0
      %v1147 = vadd.f32 0.0, %v1146
      %v1148 = vpop.f32.mrf.mxu0
      %1149 = vmatprep.mubr.bf16.mxu0 %v919
      %1150 = vmatmul.mubr.bf16.gmra.mxu0 %v895
      %v1151 = vpop.f32.mrf.mxu0
      %v1152 = vadd.f32 0.0, %v1151
      %v1153 = vpop.f32.mrf.mxu0
      %v1154 = vpop.f32.mrf.mxu0
      %v1155 = vadd.f32 0.0, %v1154
      %v1156 = vpop.f32.mrf.mxu0
      %1157 = vmatprep.mubr.bf16.mxu0 %v922
      %1158 = vmatmul.mubr.bf16.gmra.mxu0 %v898
      %v1159 = vpop.f32.mrf.mxu0
      %v1160 = vadd.f32 0.0, %v1159
      %v1161 = vpop.f32.mrf.mxu0
      %v1162 = vpop.f32.mrf.mxu0
      %v1163 = vadd.f32 0.0, %v1162
      %v1164 = vpop.f32.mrf.mxu0
      %1165 = vmatprep.mubr.bf16.mxu0 %v925
      %1166 = vmatmul.mubr.bf16.gmra.mxu0 %v901
      %v1167 = vpop.f32.mrf.mxu0
      %v1168 = vadd.f32 0.0, %v1167
      %v1169 = vpop.f32.mrf.mxu0
      %v1170 = vpop.f32.mrf.mxu0
      %v1171 = vadd.f32 0.0, %v1170
      %v1172 = vpop.f32.mrf.mxu0
      %1173 = vmatprep.mubr.bf16.mxu0 %v928
      %1174 = vmatmul.mubr.bf16.gmra.mxu0 %v904
      %v1175 = vpop.f32.mrf.mxu0
      %v1176 = vadd.f32 0.0, %v1175
      %v1177 = vpop.f32.mrf.mxu0
      %v1178 = vpop.f32.mrf.mxu0
      %v1179 = vadd.f32 0.0, %v1178
      %v1180 = vpop.f32.mrf.mxu0
      %1181 = vmatprep.mubr.bf16.mxu0 %v931
      %1182 = vmatmul.mubr.bf16.gmra.mxu0 %v907
      %v1183 = vpop.f32.mrf.mxu0
      %v1184 = vadd.f32 0.0, %v1183
      %v1185 = vpop.f32.mrf.mxu0
      %v1186 = vpop.f32.mrf.mxu0
      %v1187 = vadd.f32 0.0, %v1186
      %v1188 = vpop.f32.mrf.mxu0
      %1189 = vdwg.mxu0
      %1190 = vmatprep.subr.bf16.mxu0 0
      %1191 = vmatpush1.bf16.msra.mxu0 0
      %1192 = vmatprep.subr.bf16.mxu0 0
      %1193 = vmatpush1.bf16.msra.mxu0 0
      %1194 = vmatprep.subr.bf16.mxu0 0
      %1195 = vmatpush1.bf16.msra.mxu0 0
      %1196 = vmatprep.subr.bf16.mxu0 0
      %1197 = vmatpush1.bf16.msra.mxu0 0
      %1198 = vmatprep.subr.bf16.mxu0 0
      %1199 = vmatpush1.bf16.msra.mxu0 0
      %1200 = vmatprep.subr.bf16.mxu0 0
      %1201 = vmatpush1.bf16.msra.mxu0 0
      %1202 = vmatprep.subr.bf16.mxu0 0
      %1203 = vmatpush1.bf16.msra.mxu0 %v1058
      %1204 = vmatprep.subr.bf16.mxu0 0
      %1205 = vmatpush1.bf16.msra.mxu0 %v1057
      %1206 = vmatprep.subr.bf16.mxu0 0
      %1207 = vmatpush2.bf16.msra.mxu0 0
      %1208 = vmatprep.subr.bf16.mxu0 0
      %1209 = vmatpush2.bf16.msra.mxu0 0
      %1210 = vmatprep.subr.bf16.mxu0 0
      %1211 = vmatpush2.bf16.msra.mxu0 0
      %1212 = vmatprep.subr.bf16.mxu0 0
      %1213 = vmatpush2.bf16.msra.mxu0 0
      %1214 = vmatprep.subr.bf16.mxu0 0
      %1215 = vmatpush2.bf16.msra.mxu0 0
      %1216 = vmatprep.subr.bf16.mxu0 0
      %1217 = vmatpush2.bf16.msra.mxu0 0
      %1218 = vmatprep.subr.bf16.mxu0 0
      %1219 = vmatpush2.bf16.msra.mxu0 0
      %1220 = vmatprep.subr.bf16.mxu0 0
      %1221 = vmatpush2.bf16.msra.mxu0 0
      %1222 = vmatprep.mubr.bf16.mxu0 0
      %1223 = vmatmul.mubr.bf16.gmra.mxu0 %v1077
      %v1224 = vpop.f32.mrf.mxu0
      %v1225 = vadd.f32 %v1128, %v1224
      %v1226 = vpop.f32.mrf.mxu0
      %v1227 = vpop.f32.mrf.mxu0
      %v1228 = vadd.f32 %v1131, %v1227
      %v1229 = vpop.f32.mrf.mxu0
      %1230 = vmatprep.mubr.bf16.mxu0 0
      %1231 = vmatmul.mubr.bf16.gmra.mxu0 %v1079
      %v1232 = vpop.f32.mrf.mxu0
      %v1233 = vadd.f32 %v1136, %v1232
      %v1234 = vpop.f32.mrf.mxu0
      %v1235 = vpop.f32.mrf.mxu0
      %v1236 = vadd.f32 %v1139, %v1235
      %v1237 = vpop.f32.mrf.mxu0
      %1238 = vmatprep.mubr.bf16.mxu0 0
      %1239 = vmatmul.mubr.bf16.gmra.mxu0 %v1081
      %v1240 = vpop.f32.mrf.mxu0
      %v1241 = vadd.f32 %v1144, %v1240
      %v1242 = vpop.f32.mrf.mxu0
      %v1243 = vpop.f32.mrf.mxu0
      %v1244 = vadd.f32 %v1147, %v1243
      %v1245 = vpop.f32.mrf.mxu0
      %1246 = vmatprep.mubr.bf16.mxu0 0
      %1247 = vmatmul.mubr.bf16.gmra.mxu0 %v1083
      %v1248 = vpop.f32.mrf.mxu0
      %v1249 = vadd.f32 %v1152, %v1248
      %v1250 = vpop.f32.mrf.mxu0
      %v1251 = vpop.f32.mrf.mxu0
      %v1252 = vadd.f32 %v1155, %v1251
      %v1253 = vpop.f32.mrf.mxu0
      %1254 = vmatprep.mubr.bf16.mxu0 0
      %1255 = vmatmul.mubr.bf16.gmra.mxu0 %v1085
      %v1256 = vpop.f32.mrf.mxu0
      %v1257 = vadd.f32 %v1160, %v1256
      %v1258 = vpop.f32.mrf.mxu0
      %v1259 = vpop.f32.mrf.mxu0
      %v1260 = vadd.f32 %v1163, %v1259
      %v1261 = vpop.f32.mrf.mxu0
      %1262 = vmatprep.mubr.bf16.mxu0 0
      %1263 = vmatmul.mubr.bf16.gmra.mxu0 %v1087
      %v1264 = vpop.f32.mrf.mxu0
      %v1265 = vadd.f32 %v1168, %v1264
      %v1266 = vpop.f32.mrf.mxu0
      %v1267 = vpop.f32.mrf.mxu0
      %v1268 = vadd.f32 %v1171, %v1267
      %v1269 = vpop.f32.mrf.mxu0
      %1270 = vmatprep.mubr.bf16.mxu0 0
      %1271 = vmatmul.mubr.bf16.gmra.mxu0 %v1089
      %v1272 = vpop.f32.mrf.mxu0
      %v1273 = vadd.f32 %v1176, %v1272
      %v1274 = vpop.f32.mrf.mxu0
      %v1275 = vpop.f32.mrf.mxu0
      %v1276 = vadd.f32 %v1179, %v1275
      %v1277 = vpop.f32.mrf.mxu0
      %1278 = vmatprep.mubr.bf16.mxu0 0
      %1279 = vmatmul.mubr.bf16.gmra.mxu0 %v1091
      %v1280 = vpop.f32.mrf.mxu0
      %v1281 = vadd.f32 %v1184, %v1280
      %v1282 = vpop.f32.mrf.mxu0
      %v1283 = vpop.f32.mrf.mxu0
      %v1284 = vadd.f32 %v1187, %v1283
      %v1285 = vpop.f32.mrf.mxu0
      %1286 = vdwg.mxu0
      %v1287 = vsel %vm791, %v1225, 0.0
      %v1288 = vsel %vm791, %v1228, 0.0
      %v1289 = vadd.f32 %v1287, %v1288
      %v1290 = vsel %vm791, %v1233, 0.0
      %v1291 = vadd.f32 %v1289, %v1290
      %v1292 = vsel %vm791, %v1236, 0.0
      %v1293 = vadd.f32 %v1291, %v1292
      %v1294 = vsel %vm791, %v1241, 0.0
      %v1295 = vadd.f32 %v1293, %v1294
      %v1296 = vsel %vm791, %v1244, 0.0
      %v1297 = vadd.f32 %v1295, %v1296
      %v1298 = vsel %vm791, %v1249, 0.0
      %v1299 = vadd.f32 %v1297, %v1298
      %v1300 = vsel %vm791, %v1252, 0.0
      %v1301 = vadd.f32 %v1299, %v1300
      %v1302 = vsel %vm791, %v1257, 0.0
      %v1303 = vadd.f32 %v1301, %v1302
      %v1304 = vsel %vm791, %v1260, 0.0
      %v1305 = vadd.f32 %v1303, %v1304
      %v1306 = vsel %vm791, %v1265, 0.0
      %v1307 = vadd.f32 %v1305, %v1306
      %v1308 = vsel %vm791, %v1268, 0.0
      %v1309 = vadd.f32 %v1307, %v1308
      %v1310 = vsel %vm791, %v1273, 0.0
      %v1311 = vadd.f32 %v1309, %v1310
      %v1312 = vsel %vm791, %v1276, 0.0
      %v1313 = vadd.f32 %v1311, %v1312
      %v1314 = vsel %vm791, %v1281, 0.0
      %v1315 = vadd.f32 %v1313, %v1314
      %v1316 = vsel %vm791, %v1284, 0.0
      %v1317 = vadd.f32 %v1315, %v1316
      %v1318 = vrot.slane %v1317, 4
      %v1319 = vadd.f32 %v1317, %v1318
      %v1320 = vrot.slane %v1319, 2
      %v1321 = vadd.f32 %v1319, %v1320
      %v1322 = vrot.slane %v1321, 1
      %v1323 = vadd.f32 %v1321, %v1322
      %v1324 = vmul.f32 %v1225, %v1225
      %v1325 = vmul.f32 %v1228, %v1228
      %v1326 = vmul.f32 %v1233, %v1233
      %v1327 = vmul.f32 %v1236, %v1236
      %v1328 = vmul.f32 %v1241, %v1241
      %v1329 = vmul.f32 %v1244, %v1244
      %v1330 = vmul.f32 %v1249, %v1249
      %v1331 = vmul.f32 %v1252, %v1252
      %v1332 = vmul.f32 %v1257, %v1257
      %v1333 = vmul.f32 %v1260, %v1260
      %v1334 = vmul.f32 %v1265, %v1265
      %v1335 = vmul.f32 %v1268, %v1268
      %v1336 = vmul.f32 %v1273, %v1273
      %v1337 = vmul.f32 %v1276, %v1276
      %v1338 = vmul.f32 %v1281, %v1281
      %v1339 = vmul.f32 %v1284, %v1284
      %v1340 = vsel %vm791, %v1324, 0.0
      %v1341 = vsel %vm791, %v1325, 0.0
      %v1342 = vadd.f32 %v1340, %v1341
      %v1343 = vsel %vm791, %v1326, 0.0
      %v1344 = vadd.f32 %v1342, %v1343
      %v1345 = vsel %vm791, %v1327, 0.0
      %v1346 = vadd.f32 %v1344, %v1345
      %v1347 = vsel %vm791, %v1328, 0.0
      %v1348 = vadd.f32 %v1346, %v1347
      %v1349 = vsel %vm791, %v1329, 0.0
      %v1350 = vadd.f32 %v1348, %v1349
      %v1351 = vsel %vm791, %v1330, 0.0
      %v1352 = vadd.f32 %v1350, %v1351
      %v1353 = vsel %vm791, %v1331, 0.0
      %v1354 = vadd.f32 %v1352, %v1353
      %v1355 = vsel %vm791, %v1332, 0.0
      %v1356 = vadd.f32 %v1354, %v1355
      %v1357 = vsel %vm791, %v1333, 0.0
      %v1358 = vadd.f32 %v1356, %v1357
      %v1359 = vsel %vm791, %v1334, 0.0
      %v1360 = vadd.f32 %v1358, %v1359
      %v1361 = vsel %vm791, %v1335, 0.0
      %v1362 = vadd.f32 %v1360, %v1361
      %v1363 = vsel %vm791, %v1336, 0.0
      %v1364 = vadd.f32 %v1362, %v1363
      %v1365 = vsel %vm791, %v1337, 0.0
      %v1366 = vadd.f32 %v1364, %v1365
      %v1367 = vsel %vm791, %v1338, 0.0
      %v1368 = vadd.f32 %v1366, %v1367
      %v1369 = vsel %vm791, %v1339, 0.0
      %v1370 = vadd.f32 %v1368, %v1369
      %v1371 = vrot.slane %v1370, 4
      %v1372 = vadd.f32 %v1370, %v1371
      %v1373 = vrot.slane %v1372, 2
      %v1374 = vadd.f32 %v1372, %v1373
      %v1375 = vrot.slane %v1374, 1
      %v1376 = vadd.f32 %v1374, %v1375
      %vm1377 = vcmask 1040384
      %v1378 = vsel %vm1377, %v1323, %v1376
      %p1379 = scmp.eq.s32.totalorder %s24, 0
      // Predicated region
      $region45: #{bottleneck_forward.5} parent=43 // pred_check
        %p1380 = pneg %p1379
      $region46: #{bottleneck_forward.5} parent=43 // pred_check_branch
        %1382 = sbr.rel (%p1380) target = $region48
      $region47: #{bottleneck_forward.5} parent=43 // pred_region
        %vm1383 = vcmask 254976
        %1384 = vst.msk [vmem:[%s457] sm:$0x3] %vm1383, %v1378
      $region48: #{bottleneck_forward.5} parent=43 // pred_fallthru
        _
      // Predicated region
      $region49: #{bottleneck_forward.5} parent=43 // pred_check
        %p1385 = pneg %p553
      $region50: #{bottleneck_forward.5} parent=43 // pred_check_branch
        %1387 = sbr.rel (%p1385) target = $region52
      $region51: #{bottleneck_forward.5} parent=43 // pred_region
        %v1388 = vld [vmem:[%s457] sm:$0x3]
        %v1389 = vadd.f32 %v1388, %v1378
        %vm1390 = vcmask 254976
        %1391 = vst.msk [vmem:[%s457] sm:$0x3] %vm1390, %v1389
      $region52: #{bottleneck_forward.5} parent=43 // pred_fallthru
        _
      %v1392 = vpack.c.bf16 %v1228, %v1225
      %v1393 = vpack.c.bf16 %v1236, %v1233
      %v1394 = vpack.c.bf16 %v1244, %v1241
      %v1395 = vpack.c.bf16 %v1252, %v1249
      %v1396 = vpack.c.bf16 %v1260, %v1257
      %v1397 = vpack.c.bf16 %v1268, %v1265
      %v1398 = vpack.c.bf16 %v1276, %v1273
      %v1399 = vpack.c.bf16 %v1284, %v1281
      %v1408 = vunpack.c.l.b16 %v1392
      %v1409 = vunpack.c.h.b16 %v1392
      %v1410 = vunpack.c.l.b16 %v1393
      %v1411 = vunpack.c.h.b16 %v1393
      %v1412 = vunpack.c.l.b16 %v1394
      %v1413 = vunpack.c.h.b16 %v1394
      %v1414 = vunpack.c.l.b16 %v1395
      %v1415 = vunpack.c.h.b16 %v1395
      %v1416 = vunpack.c.l.b16 %v1396
      %v1417 = vunpack.c.h.b16 %v1396
      %v1418 = vunpack.c.l.b16 %v1397
      %v1419 = vunpack.c.h.b16 %v1397
      %v1420 = vunpack.c.l.b16 %v1398
      %v1421 = vunpack.c.h.b16 %v1398
      %v1422 = vunpack.c.l.b16 %v1399
      %v1423 = vunpack.c.h.b16 %v1399
      %v1424 = vpack.c.b16 %v1408, %v1408
      %v1425 = vpack.c.b16 %v1409, %v1409
      %v1426 = vpack.c.b16 %v1410, %v1410
      %v1427 = vpack.c.b16 %v1411, %v1411
      %v1428 = vpack.c.b16 %v1412, %v1412
      %v1429 = vpack.c.b16 %v1413, %v1413
      %v1430 = vpack.c.b16 %v1414, %v1414
      %v1431 = vpack.c.b16 %v1415, %v1415
      %v1432 = vpack.c.b16 %v1416, %v1416
      %v1433 = vpack.c.b16 %v1417, %v1417
      %v1434 = vpack.c.b16 %v1418, %v1418
      %v1435 = vpack.c.b16 %v1419, %v1419
      %v1436 = vpack.c.b16 %v1420, %v1420
      %v1437 = vpack.c.b16 %v1421, %v1421
      %v1438 = vpack.c.b16 %v1422, %v1422
      %v1439 = vpack.c.b16 %v1423, %v1423
      %vm1456 = vcmask 257024
      %1457 = vst.msk [vmem:[%s452] sm:$0xf] %vm1456, %v1424
      %1458 = vst.msk [vmem:[%s452 + $0x4] sm:$0xf] %vm1456, %v1425
      %1459 = vst.msk [vmem:[%s452 + $0x8] sm:$0xf] %vm1456, %v1426
      %1460 = vst.msk [vmem:[%s452 + $0xc] sm:$0xf] %vm1456, %v1427
      %1461 = vst.msk [vmem:[%s452 + $0x10] sm:$0xf] %vm1456, %v1428
      %1462 = vst.msk [vmem:[%s452 + $0x14] sm:$0xf] %vm1456, %v1429
      %1463 = vst.msk [vmem:[%s452 + $0x18] sm:$0xf] %vm1456, %v1430
      %1464 = vst.msk [vmem:[%s452 + $0x1c] sm:$0xf] %vm1456, %v1431
      %1465 = vst.msk [vmem:[%s452 + $0x20] sm:$0xf] %vm1456, %v1432
      %1466 = vst.msk [vmem:[%s452 + $0x24] sm:$0xf] %vm1456, %v1433
      %1467 = vst.msk [vmem:[%s452 + $0x28] sm:$0xf] %vm1456, %v1434
      %1468 = vst.msk [vmem:[%s452 + $0x2c] sm:$0xf] %vm1456, %v1435
      %1469 = vst.msk [vmem:[%s452 + $0x30] sm:$0xf] %vm1456, %v1436
      %1470 = vst.msk [vmem:[%s452 + $0x34] sm:$0xf] %vm1456, %v1437
      %1471 = vst.msk [vmem:[%s452 + $0x38] sm:$0xf] %vm1456, %v1438
      %1472 = vst.msk [vmem:[%s452 + $0x3c] sm:$0xf] %vm1456, %v1439
      %s1473 = smul.u32 8, %s24
      %p1474 = scmp.lt.s32.totalorder %s23, 1
      %s1475 = scalar_select %p1474, %s23, 1
      %p1476 = scmp.lt.s32.totalorder %s1473, 15
      %s1477 = scalar_select %p1476, %s1473, 15
      %s1478 = smul.addr %s1477, 2
      %s1479 = smul.addr %s1475, 32
      %s1480 = sadd.s32 %s1478, %s1479
      %s1481 = smul.addr %s1480, 4
      %s1482 = scalar_lea.vmem %s6, %s1481
      %p1483 = scmp.lt.s32.totalorder %s23, 1
      %s1484 = scalar_select %p1483, %s23, 1
      %s1485 = smul.addr %s1484, 2
      %s1486 = scalar_lea.vmem %s7, %s1485
      // Predicated region
      $region53: #{bottleneck_forward.5} parent=43 // pred_check
        %p1487 = pneg %p214
      $region54: #{bottleneck_forward.5} parent=43 // pred_check_branch
        %1489 = sbr.rel (%p1487) target = $region56
      $region55: #{bottleneck_forward.5} parent=43 // pred_region
        %s1490 = smul.u32 8, %s24
      $region56: #{bottleneck_forward.5} parent=43 // pred_fallthru
        _
      // Predicated region
      $region57: #{bottleneck_forward.5} parent=43 // pred_check
        %p1491 = pneg %p240
      $region58: #{bottleneck_forward.5} parent=43 // pred_check_branch
        %1493 = sbr.rel (%p1491) target = $region60
      $region59: #{bottleneck_forward.5} parent=43 // pred_region
        _
      $region60: #{bottleneck_forward.5} parent=43 // pred_fallthru
        _
    $region44: #{bottleneck_forward.5} parent=5 // pred_fallthru
      _
    %p1494 = scmp.le.s32.totalorder 2, %s14
    // Predicated region
    $region61: #{bottleneck_forward.5} parent=5 // pred_check
      %p1495 = pneg %p1494
    $region62: #{bottleneck_forward.5} parent=5 // pred_check_branch
      %1497 = sbr.rel (%p1495) target = $region64
    $region63: #{bottleneck_forward.5} parent=5 // pred_region
      %s1498 = ssub.s32 %s14, 2
      // Predicated region
      $region65: #{bottleneck_forward.5} parent=63 // pred_check
        %p1499 = pneg %p220
      $region66: #{bottleneck_forward.5} parent=63 // pred_check_branch
        %1501 = sbr.rel (%p1499) target = $region68
      $region67: #{bottleneck_forward.5} parent=63 // pred_region
        %s1502 = smul.u32 8, %s26
        %p1503 = scmp.lt.s32.totalorder %s25, 1
        %s1504 = scalar_select %p1503, %s25, 1
        %p1505 = scmp.lt.s32.totalorder %s1502, 15
        %s1506 = scalar_select %p1505, %s1502, 15
        %s1507 = smul.addr %s1506, 2
        %s1508 = smul.addr %s1504, 32
        %s1509 = sadd.s32 %s1507, %s1508
        %s1510 = smul.addr %s1509, 4
        %s1511 = scalar_lea.vmem %s6, %s1510
      $region68: #{bottleneck_forward.5} parent=63 // pred_fallthru
        _
      // Predicated region
      $region69: #{bottleneck_forward.5} parent=63 // pred_check
        %p1512 = pneg %p246
      $region70: #{bottleneck_forward.5} parent=63 // pred_check_branch
        %1514 = sbr.rel (%p1512) target = $region72
      $region71: #{bottleneck_forward.5} parent=63 // pred_region
        %p1515 = scmp.lt.s32.totalorder %s25, 1
        %s1516 = scalar_select %p1515, %s25, 1
        %s1517 = smul.addr %s1516, 2
        %s1518 = scalar_lea.vmem %s7, %s1517
      $region72: #{bottleneck_forward.5} parent=63 // pred_fallthru
        _
    $region64: #{bottleneck_forward.5} parent=5 // pred_fallthru
      _
  $region6: #{bottleneck_forward.5} parent=0 // loop_footer
    %s18 = sadd.s32 1, %s14
  $region7: #{bottleneck_forward.5} parent=0 // loop_footer_branch
    %13 = sbr.rel target = $region3
  $region8: #{bottleneck_forward.5} parent=0 // loop_exit
    _

</llo_original>
